<compile_context>
chip_gen: v5e
topology: v5e:2x2
jax: 0.10.0
libtpu: 0.0.40
codegen_flags: <defaults>
</compile_context>

<pallas_src>
import functools

import jax
import jax.numpy as jnp
from jax import lax
from jax.experimental import pallas as pl
from jax.experimental.pallas import tpu as pltpu

BN_EPS = 1e-5


# --------------------------------------------------------------------------
# kernels
# --------------------------------------------------------------------------
def _conv1_kernel(x_ref, w1_ref, z1_ref, st1_ref, *, mxu_dtype):
    """1x1 conv as a matmul + per-tile BN1 partial (sum, sum_sq)."""
    z1 = jnp.dot(x_ref[...].astype(mxu_dtype), w1_ref[...],
                 preferred_element_type=jnp.float32)           # (Rt, P) f32
    z1_ref[...] = z1
    s = jnp.sum(z1, axis=0, keepdims=True)
    sq = jnp.sum(z1 * z1, axis=0, keepdims=True)
    st1_ref[...] = jnp.concatenate([s, sq], axis=0)[None]      # (1, 2, P)


def _conv2_kernel(z1_ref, scale1_ref, bias1_ref, w2_ref, mask_ref,
                  z2_ref, st2_ref, cols_ref, *, W, P, Rt, mxu_dtype):
    """bn1 + relu, 3x3 conv as ONE K=9P matmul, per-tile BN2 partials."""
    h1 = jnp.maximum(z1_ref[...] * scale1_ref[...] + bias1_ref[...], 0.0)
    # Pad by W+1 rows so every 3x3 tap is a static row-shifted slice; the
    # precomputed per-row masks implement the conv's zero padding (and stop
    # rows of one image leaking into a neighbour inside the tile).
    zpad = jnp.zeros((W + 1, P), jnp.float32)
    h1p = jnp.concatenate([zpad, h1, zpad], axis=0)            # (Rt+2W+2, P)
    for idx in range(9):
        dh, dw = idx // 3 - 1, idx % 3 - 1
        k = dh * W + dw                                        # row shift
        view = h1p[W + 1 + k:W + 1 + k + Rt, :]                # (Rt, P)
        if not (dh == 0 and dw == 0):
            view = view * mask_ref[:, idx:idx + 1]             # boundary mask
        cols_ref[:, idx * P:(idx + 1) * P] = view              # im2col pack
    z2 = jnp.dot(cols_ref[...].astype(mxu_dtype), w2_ref[...],
                 preferred_element_type=jnp.float32)           # (Rt, P)
    z2_ref[...] = z2
    s = jnp.sum(z2, axis=0, keepdims=True)
    sq = jnp.sum(z2 * z2, axis=0, keepdims=True)
    st2_ref[...] = jnp.concatenate([s, sq], axis=0)[None]


def _conv3_kernel(z2_ref, scale2_ref, bias2_ref, w3_ref, z3_ref, st3_ref, *,
                  mxu_dtype):
    """bn2 + relu, 1x1 conv to 4P channels, per-tile BN3 partials."""
    h2 = jnp.maximum(z2_ref[...] * scale2_ref[...] + bias2_ref[...], 0.0)
    z3 = jnp.dot(h2.astype(mxu_dtype), w3_ref[...],
                 preferred_element_type=jnp.float32)           # (Rt, 4P)
    z3_ref[...] = z3
    s = jnp.sum(z3, axis=0, keepdims=True)
    sq = jnp.sum(z3 * z3, axis=0, keepdims=True)
    st3_ref[...] = jnp.concatenate([s, sq], axis=0)[None]


def _residual_kernel(z3_ref, x_ref, scale3_ref, bias3_ref, out_ref):
    """bn3 + identity residual + relu."""
    out_ref[...] = jnp.maximum(
        z3_ref[...] * scale3_ref[...] + bias3_ref[...] + x_ref[...], 0.0)


# --------------------------------------------------------------------------
# wrapper
# --------------------------------------------------------------------------
def _fold_bn(partial_stats, count, gamma, beta, eps=BN_EPS):
    """Reduce per-tile (sum, sum_sq) and fold batch stats + affine -> scale/bias."""
    total = jnp.sum(partial_stats, axis=0)                     # (2, C)
    mean = total[0] / count
    var = jnp.maximum(total[1] / count - mean * mean, 0.0)     # biased var
    scale = gamma * lax.rsqrt(var + eps)
    bias = beta - mean * scale
    c = scale.shape[0]
    return scale.reshape(1, c), bias.reshape(1, c)


def _pick_tile_imgs(N, H, W, Cin, P, budget_bytes=8 << 20):
    """Largest whole-image row tile whose rough f32 working set fits budget."""
    rows = H * W
    per_img = rows * (2 * Cin + 12 * P) * 4
    valid = [d for d in range(1, N + 1)
             if N % d == 0 and (d == N or (d * rows) % 8 == 0)]
    fitting = [d for d in valid if d * per_img <= budget_bytes]
    return max(fitting) if fitting else min(valid)


def bottleneck_forward(x_nchw, params, *, tile_imgs=None,
                       mxu_dtype=jnp.bfloat16):
    """Fused Bottleneck forward. x_nchw: (N, Cin, H, W) with Cin == 4*planes."""
    N, Cin, H, W = x_nchw.shape
    P = params["w1"].shape[1]
    Cout = 4 * P
    assert Cin == Cout, "identity residual requires inplanes == planes * 4"
    assert H * W > W + 1, "spatial extent too small for row-shifted 3x3 taps"
    R = N * H * W

    if tile_imgs is None:
        tile_imgs = _pick_tile_imgs(N, H, W, Cin, P)
    assert N % tile_imgs == 0, "tile_imgs must divide the batch"
    T = N // tile_imgs
    Rt = tile_imgs * H * W
    assert T == 1 or Rt % 8 == 0, "row tile must be sublane (8) aligned"

    # glue: NCHW -> NHWC -> (R, C); intermediates z1/z2/z3 stay f32 so BN sees
    # exact conv outputs (could be bf16 if bandwidth-bound).
    x2d = jnp.transpose(x_nchw, (0, 2, 3, 1)).reshape(R, Cin).astype(jnp.float32)
    w1 = params["w1"].astype(mxu_dtype)                        # (Cin, P)
    w2 = params["w2"].astype(mxu_dtype)                        # (9P, P)
    w3 = params["w3"].astype(mxu_dtype)                        # (P, 4P)

    # Per-row 3x3 boundary masks; the (h, w) pattern repeats every image so a
    # single (Rt, 9) table serves every tile and stays resident in VMEM.
    r = jnp.arange(Rt, dtype=jnp.int32)
    hh, ww = (r // W) % H, r % W
    tap_valid = jnp.stack(
        [((hh + dh >= 0) & (hh + dh < H) & (ww + dw >= 0) & (ww + dw < W))
         for dh in (-1, 0, 1) for dw in (-1, 0, 1)],
        axis=1).astype(jnp.float32)                            # (Rt, 9)

    def rows(c):
        return pl.BlockSpec((Rt, c), lambda i: (i, 0))

    def whole(shape):
        return pl.BlockSpec(shape, lambda i: tuple(0 for _ in shape))

    def stats(c):
        return pl.BlockSpec((1, 2, c), lambda i: (i, 0, 0))

    cparams = pltpu.CompilerParams(dimension_semantics=("parallel",))
    f32 = jnp.float32

    # ---- stage A: conv1 (1x1) --------------------------------------------
    z1, st1 = pl.pallas_call(
        functools.partial(_conv1_kernel, mxu_dtype=mxu_dtype),
        grid=(T,),
        in_specs=[rows(Cin), whole((Cin, P))],
        out_specs=(rows(P), stats(P)),
        out_shape=(jax.ShapeDtypeStruct((R, P), f32),
                   jax.ShapeDtypeStruct((T, 2, P), f32)),
        compiler_params=cparams,
    )(x2d, w1)
    scale1, bias1 = _fold_bn(st1, R, params["g1"], params["b1"])

    # ---- stage B: bn1 + relu + 3x3 conv2 (single K=9P matmul) ------------
    z2, st2 = pl.pallas_call(
        functools.partial(_conv2_kernel, W=W, P=P, Rt=Rt, mxu_dtype=mxu_dtype),
        grid=(T,),
        in_specs=[rows(P), whole((1, P)), whole((1, P)),
                  whole((9 * P, P)), whole((Rt, 9))],
        out_specs=(rows(P), stats(P)),
        out_shape=(jax.ShapeDtypeStruct((R, P), f32),
                   jax.ShapeDtypeStruct((T, 2, P), f32)),
        scratch_shapes=[pltpu.VMEM((Rt, 9 * P), f32)],
        compiler_params=cparams,
    )(z1, scale1, bias1, w2, tap_valid)
    scale2, bias2 = _fold_bn(st2, R, params["g2"], params["b2"])

    # ---- stage C: bn2 + relu + conv3 (1x1) -------------------------------
    z3, st3 = pl.pallas_call(
        functools.partial(_conv3_kernel, mxu_dtype=mxu_dtype),
        grid=(T,),
        in_specs=[rows(P), whole((1, P)), whole((1, P)), whole((P, Cout))],
        out_specs=(rows(Cout), stats(Cout)),
        out_shape=(jax.ShapeDtypeStruct((R, Cout), f32),
                   jax.ShapeDtypeStruct((T, 2, Cout), f32)),
        compiler_params=cparams,
    )(z2, scale2, bias2, w3)
    scale3, bias3 = _fold_bn(st3, R, params["g3"], params["b3"])

    # ---- stage D: bn3 + residual + relu ----------------------------------
    out2d = pl.pallas_call(
        _residual_kernel,
        grid=(T,),
        in_specs=[rows(Cout), rows(Cout), whole((1, Cout)), whole((1, Cout))],
        out_specs=rows(Cout),
        out_shape=jax.ShapeDtypeStruct((R, Cout), f32),
        compiler_params=cparams,
    )(z3, x2d, scale3, bias3)

    # glue: (R, Cout) -> NHWC -> NCHW
    return jnp.transpose(out2d.reshape(N, H, W, Cout), (0, 3, 1, 2))


# --------------------------------------------------------------------------
# plain-JAX reference (mirrors the PyTorch forward, training-mode BN)
# --------------------------------------------------------------------------
def _reference(x, W1, W2, W3, gammas, betas, *, operand_dtype=None):
    """If operand_dtype is set, conv operands are cast to it (matching the
    kernel's MXU precision policy); accumulation stays f32."""
    dn = ("NCHW", "OIHW", "NCHW")

    def conv(inp, w, padding):
        if operand_dtype is not None:
            inp, w = inp.astype(operand_dtype), w.astype(operand_dtype)
        return lax.conv_general_dilated(inp, w, (1, 1), padding,
                                        dimension_numbers=dn,
                                        preferred_element_type=jnp.float32)

    def bn(z, g, b):
        mean = jnp.mean(z, axis=(0, 2, 3), keepdims=True)
        var = jnp.mean((z - mean) ** 2, axis=(0, 2, 3), keepdims=True)
        zn = (z - mean) * lax.rsqrt(var + BN_EPS)
        return zn * g.reshape(1, -1, 1, 1) + b.reshape(1, -1, 1, 1)

    h1 = jax.nn.relu(bn(conv(x, W1, "VALID"), gammas[0], betas[0]))
    h2 = jax.nn.relu(bn(conv(h1, W2, [(1, 1), (1, 1)]), gammas[1], betas[1]))
    z3 = bn(conv(h2, W3, "VALID"), gammas[2], betas[2])
    return jax.nn.relu(z3 + x)


if __name__ == "__main__":
    # Small shapes consistent with the module: planes=4, inplanes=4*planes=16.
    N, planes, H, W = 2, 4, 16, 16
    inplanes = planes * 4
    Cout = planes * 4

    key = jax.random.PRNGKey(0)
    k1, k2, k3, kx, kg = jax.random.split(key, 5)

    # Torch-shaped conv weights (OIHW), deterministic synthetic init.
    W1 = jax.random.normal(k1, (planes, inplanes, 1, 1), jnp.float32) * 0.1
    W2 = jax.random.normal(k2, (planes, planes, 3, 3), jnp.float32) * 0.1
    W3 = jax.random.normal(k3, (Cout, planes, 1, 1), jnp.float32) * 0.1

    # BatchNorm affine params (non-trivial values to exercise the folding).
    gb = jax.random.normal(kg, (3, 2, Cout), jnp.float32) * 0.1
    g1, b1 = 1.0 + gb[0, 0, :planes], gb[0, 1, :planes]
    g2, b2 = 1.0 + gb[1, 0, :planes], gb[1, 1, :planes]
    g3, b3 = 1.0 + gb[2, 0, :], gb[2, 1, :]

    params = {
        "w1": W1[:, :, 0, 0].T,                                       # (Cin, P)
        "w2": jnp.transpose(W2, (2, 3, 1, 0)).reshape(9 * planes, planes),  # (9P, P)
        "w3": W3[:, :, 0, 0].T,                                       # (P, 4P)
        "g1": g1, "b1": b1, "g2": g2, "b2": b2, "g3": g3, "b3": b3,
    }

    x = jax.random.normal(kx, (N, inplanes, H, W), jnp.float32)

    fwd = jax.jit(functools.partial(bottleneck_forward, tile_imgs=1))
    out = jax.block_until_ready(fwd(x, params))
    assert out.shape == (N, Cout, H, W)

    gammas, betas = (g1, g2, g3), (b1, b2, b3)

    # Main correctness gate: reference with the same bf16-operand / f32-accum
    # matmul policy as the kernel.  Tolerance allows isolated one-ulp bf16
    # rounding flips of intermediate activations getting amplified by BN.
    ref_bf16 = _reference(x, W1, W2, W3, gammas, betas,
                          operand_dtype=jnp.bfloat16)
    err = float(jnp.max(jnp.abs(out - ref_bf16)))
    assert err < 2e-2, f"mismatch vs bf16-operand reference: {err}"

    # Loose sanity check vs the pure-f32 reference (bounds total bf16 MXU
    # rounding; catches gross/structural errors).
    ref_f32 = _reference(x, W1, W2, W3, gammas, betas)
    err32 = float(jnp.max(jnp.abs(out - ref_f32)))
    assert err32 < 0.5, f"excessive deviation from f32 reference: {err32}"

    print("KERNEL_OK")
</pallas_src>

<mosaic_0001>
module attributes {stable_mosaic.version = 11 : i64} {
  func.func @_conv1_kernel(%arg0: i32, %arg1: memref<256x16xf32, #tpu.memory_space<vmem>>, %arg2: memref<16x4xbf16, #tpu.memory_space<vmem>>, %arg3: memref<256x4xf32, #tpu.memory_space<vmem>>, %arg4: memref<1x2x4xf32, #tpu.memory_space<vmem>>) attributes {dimension_semantics = [#tpu.dimension_semantics<parallel>], iteration_bounds = array<i64: 2>, scalar_prefetch = 0 : i64, scratch_operands = 0 : i64, tpu.core_type = #tpu.core_type<tc>, window_params = [{transform_indices = @transform_0, window_bounds = array<i64: 256, 16>}, {pipeline_mode = #tpu.pipeline_mode<synchronous>, transform_indices = @transform_1, window_bounds = array<i64: 16, 4>}, {transform_indices = @transform_2, window_bounds = array<i64: 256, 4>}, {transform_indices = @transform_3, window_bounds = array<i64: 1, 2, 4>}]} {
    %c0 = arith.constant 0 : index
    %c0_0 = arith.constant 0 : index
    %0 = vector.load %arg1[%c0, %c0_0] : memref<256x16xf32, #tpu.memory_space<vmem>>, vector<256x16xf32>
    %1 = arith.truncf %0 : vector<256x16xf32> to vector<256x16xbf16>
    %c0_1 = arith.constant 0 : index
    %c0_2 = arith.constant 0 : index
    %2 = vector.load %arg2[%c0_1, %c0_2] : memref<16x4xbf16, #tpu.memory_space<vmem>>, vector<16x4xbf16>
    %cst = arith.constant dense<0.000000e+00> : vector<256x4xf32>
    %3 = tpu.matmul %1, %2, %cst {dimension_numbers = #tpu.dot_dimension_numbers<[1], [0], [0], [1], [0, 0, 1, 1], [], []>} : vector<256x16xbf16>, vector<16x4xbf16>, vector<256x4xf32> -> vector<256x4xf32>
    %c0_3 = arith.constant 0 : index
    %c0_4 = arith.constant 0 : index
    %4 = vector.load %arg3[%c0_3, %c0_4] : memref<256x4xf32, #tpu.memory_space<vmem>>, vector<256x4xf32>
    tpu.vector_store %arg3[%c0_3, %c0_4], %3 {strides = array<i32>} : memref<256x4xf32, #tpu.memory_space<vmem>>, vector<256x4xf32>,
    %cst_5 = arith.constant dense<0.000000e+00> : vector<4xf32>
    %5 = vector.multi_reduction <add>, %3, %cst_5 [0] : vector<256x4xf32> to vector<4xf32>
    %6 = vector.shape_cast %5 : vector<4xf32> to vector<1x4xf32>
    %7 = arith.mulf %3, %3 : vector<256x4xf32>
    %cst_6 = arith.constant dense<0.000000e+00> : vector<4xf32>
    %8 = vector.multi_reduction <add>, %7, %cst_6 [0] : vector<256x4xf32> to vector<4xf32>
    %9 = vector.shape_cast %8 : vector<4xf32> to vector<1x4xf32>
    %10 = tpu.concatenate %6, %9 in 0 : vector<1x4xf32>, vector<1x4xf32> -> vector<2x4xf32>
    %11 = vector.shape_cast %10 : vector<2x4xf32> to vector<1x2x4xf32>
    %c0_7 = arith.constant 0 : index
    %c0_8 = arith.constant 0 : index
    %c0_9 = arith.constant 0 : index
    %12 = vector.load %arg4[%c0_7, %c0_8, %c0_9] : memref<1x2x4xf32, #tpu.memory_space<vmem>>, vector<1x2x4xf32>
    tpu.vector_store %arg4[%c0_7, %c0_8, %c0_9], %11 {strides = array<i32>} : memref<1x2x4xf32, #tpu.memory_space<vmem>>, vector<1x2x4xf32>,
    return
  }
  func.func @transform_0(%arg0: i32) -> (i32, i32) {
    %c0_i32 = arith.constant 0 : i32
    %c0_i32_0 = arith.constant 0 : i32
    return %arg0, %c0_i32 : i32, i32
  }
  func.func @transform_1(%arg0: i32) -> (i32, i32) {
    %c0_i32 = arith.constant 0 : i32
    %c0_i32_0 = arith.constant 0 : i32
    %c0_i32_1 = arith.constant 0 : i32
    return %c0_i32, %c0_i32_0 : i32, i32
  }
  func.func @transform_2(%arg0: i32) -> (i32, i32) {
    %c0_i32 = arith.constant 0 : i32
    %c0_i32_0 = arith.constant 0 : i32
    return %arg0, %c0_i32 : i32, i32
  }
  func.func @transform_3(%arg0: i32) -> (i32, i32, i32) {
    %c0_i32 = arith.constant 0 : i32
    %c0_i32_0 = arith.constant 0 : i32
    %c0_i32_1 = arith.constant 0 : i32
    return %arg0, %c0_i32, %c0_i32_0 : i32, i32, i32
  }
}

module attributes {stable_mosaic.version = 11 : i64} {
  func.func @_conv2_kernel(%arg0: i32, %arg1: memref<256x4xf32, #tpu.memory_space<vmem>>, %arg2: memref<1x4xf32, #tpu.memory_space<vmem>>, %arg3: memref<1x4xf32, #tpu.memory_space<vmem>>, %arg4: memref<36x4xbf16, #tpu.memory_space<vmem>>, %arg5: memref<256x9xf32, #tpu.memory_space<vmem>>, %arg6: memref<256x4xf32, #tpu.memory_space<vmem>>, %arg7: memref<1x2x4xf32, #tpu.memory_space<vmem>>, %arg8: memref<256x36xf32, #tpu.memory_space<vmem>>) attributes {dimension_semantics = [#tpu.dimension_semantics<parallel>], iteration_bounds = array<i64: 2>, scalar_prefetch = 0 : i64, scratch_operands = 1 : i64, tpu.core_type = #tpu.core_type<tc>, window_params = [{transform_indices = @transform_0, window_bounds = array<i64: 256, 4>}, {pipeline_mode = #tpu.pipeline_mode<synchronous>, transform_indices = @transform_1, window_bounds = array<i64: 1, 4>}, {pipeline_mode = #tpu.pipeline_mode<synchronous>, transform_indices = @transform_2, window_bounds = array<i64: 1, 4>}, {pipeline_mode = #tpu.pipeline_mode<synchronous>, transform_indices = @transform_3, window_bounds = array<i64: 36, 4>}, {pipeline_mode = #tpu.pipeline_mode<synchronous>, transform_indices = @transform_4, window_bounds = array<i64: 256, 9>}, {transform_indices = @transform_5, window_bounds = array<i64: 256, 4>}, {transform_indices = @transform_6, window_bounds = array<i64: 1, 2, 4>}]} {
    %c0 = arith.constant 0 : index
    %c0_0 = arith.constant 0 : index
    %0 = vector.load %arg1[%c0, %c0_0] : memref<256x4xf32, #tpu.memory_space<vmem>>, vector<256x4xf32>
    %c0_1 = arith.constant 0 : index
    %c0_2 = arith.constant 0 : index
    %1 = vector.load %arg2[%c0_1, %c0_2] : memref<1x4xf32, #tpu.memory_space<vmem>>, vector<1x4xf32>
    %2 = vector.broadcast %1 : vector<1x4xf32> to vector<256x4xf32>
    %3 = arith.mulf %0, %2 : vector<256x4xf32>
    %c0_3 = arith.constant 0 : index
    %c0_4 = arith.constant 0 : index
    %4 = vector.load %arg3[%c0_3, %c0_4] : memref<1x4xf32, #tpu.memory_space<vmem>>, vector<1x4xf32>
    %5 = vector.broadcast %4 : vector<1x4xf32> to vector<256x4xf32>
    %6 = arith.addf %3, %5 : vector<256x4xf32>
    %cst = arith.constant 0.000000e+00 : f32
    %7 = vector.broadcast %cst : f32 to vector<256x4xf32>
    %8 = arith.maximumf %6, %7 : vector<256x4xf32>
    %cst_5 = arith.constant 0.000000e+00 : f32
    %9 = vector.broadcast %cst_5 : f32 to vector<17x4xf32>
    %10 = tpu.concatenate %9, %8, %9 in 0 : vector<17x4xf32>, vector<256x4xf32>, vector<17x4xf32> -> vector<290x4xf32>
    %11 = vector.extract_strided_slice %10 {offsets = [0, 0], sizes = [256, 4], strides = [1, 1]} : vector<290x4xf32> to vector<256x4xf32>
    %c0_6 = arith.constant 0 : index
    %c0_7 = arith.constant 0 : index
    %12 = vector.load %arg5[%c0_6, %c0_7] : memref<256x9xf32, #tpu.memory_space<vmem>>, vector<256x1xf32>
    %13 = vector.broadcast %12 : vector<256x1xf32> to vector<256x4xf32>
    %14 = arith.mulf %11, %13 : vector<256x4xf32>
    %c0_8 = arith.constant 0 : index
    %c0_9 = arith.constant 0 : index
    %15 = vector.load %arg8[%c0_8, %c0_9] : memref<256x36xf32, #tpu.memory_space<vmem>>, vector<256x4xf32>
    tpu.vector_store %arg8[%c0_8, %c0_9], %14 {strides = array<i32>} : memref<256x36xf32, #tpu.memory_space<vmem>>, vector<256x4xf32>,
    %16 = vector.extract_strided_slice %10 {offsets = [1, 0], sizes = [256, 4], strides = [1, 1]} : vector<290x4xf32> to vector<256x4xf32>
    %c0_10 = arith.constant 0 : index
    %c1 = arith.constant 1 : index
    %17 = vector.load %arg5[%c0_10, %c1] : memref<256x9xf32, #tpu.memory_space<vmem>>, vector<256x1xf32>
    %18 = vector.broadcast %17 : vector<256x1xf32> to vector<256x4xf32>
    %19 = arith.mulf %16, %18 : vector<256x4xf32>
    %c0_11 = arith.constant 0 : index
    %c4 = arith.constant 4 : index
    %20 = vector.load %arg8[%c0_11, %c4] : memref<256x36xf32, #tpu.memory_space<vmem>>, vector<256x4xf32>
    tpu.vector_store %arg8[%c0_11, %c4], %19 {strides = array<i32>} : memref<256x36xf32, #tpu.memory_space<vmem>>, vector<256x4xf32>,
    %21 = vector.extract_strided_slice %10 {offsets = [2, 0], sizes = [256, 4], strides = [1, 1]} : vector<290x4xf32> to vector<256x4xf32>
    %c0_12 = arith.constant 0 : index
    %c2 = arith.constant 2 : index
    %22 = vector.load %arg5[%c0_12, %c2] : memref<256x9xf32, #tpu.memory_space<vmem>>, vector<256x1xf32>
    %23 = vector.broadcast %22 : vector<256x1xf32> to vector<256x4xf32>
    %24 = arith.mulf %21, %23 : vector<256x4xf32>
    %c0_13 = arith.constant 0 : index
    %c8 = arith.constant 8 : index
    %25 = vector.load %arg8[%c0_13, %c8] : memref<256x36xf32, #tpu.memory_space<vmem>>, vector<256x4xf32>
    tpu.vector_store %arg8[%c0_13, %c8], %24 {strides = array<i32>} : memref<256x36xf32, #tpu.memory_space<vmem>>, vector<256x4xf32>,
    %26 = vector.extract_strided_slice %10 {offsets = [16, 0], sizes = [256, 4], strides = [1, 1]} : vector<290x4xf32> to vector<256x4xf32>
    %c0_14 = arith.constant 0 : index
    %c3 = arith.constant 3 : index
    %27 = vector.load %arg5[%c0_14, %c3] : memref<256x9xf32, #tpu.memory_space<vmem>>, vector<256x1xf32>
    %28 = vector.broadcast %27 : vector<256x1xf32> to vector<256x4xf32>
    %29 = arith.mulf %26, %28 : vector<256x4xf32>
    %c0_15 = arith.constant 0 : index
    %c12 = arith.constant 12 : index
    %30 = vector.load %arg8[%c0_15, %c12] : memref<256x36xf32, #tpu.memory_space<vmem>>, vector<256x4xf32>
    tpu.vector_store %arg8[%c0_15, %c12], %29 {strides = array<i32>} : memref<256x36xf32, #tpu.memory_space<vmem>>, vector<256x4xf32>,
    %31 = vector.extract_strided_slice %10 {offsets = [17, 0], sizes = [256, 4], strides = [1, 1]} : vector<290x4xf32> to vector<256x4xf32>
    %c0_16 = arith.constant 0 : index
    %c16 = arith.constant 16 : index
    %32 = vector.load %arg8[%c0_16, %c16] : memref<256x36xf32, #tpu.memory_space<vmem>>, vector<256x4xf32>
    tpu.vector_store %arg8[%c0_16, %c16], %31 {strides = array<i32>} : memref<256x36xf32, #tpu.memory_space<vmem>>, vector<256x4xf32>,
    %33 = vector.extract_strided_slice %10 {offsets = [18, 0], sizes = [256, 4], strides = [1, 1]} : vector<290x4xf32> to vector<256x4xf32>
    %c0_17 = arith.constant 0 : index
    %c5 = arith.constant 5 : index
    %34 = vector.load %arg5[%c0_17, %c5] : memref<256x9xf32, #tpu.memory_space<vmem>>, vector<256x1xf32>
    %35 = vector.broadcast %34 : vector<256x1xf32> to vector<256x4xf32>
    %36 = arith.mulf %33, %35 : vector<256x4xf32>
    %c0_18 = arith.constant 0 : index
    %c20 = arith.constant 20 : index
    %37 = vector.load %arg8[%c0_18, %c20] : memref<256x36xf32, #tpu.memory_space<vmem>>, vector<256x4xf32>
    tpu.vector_store %arg8[%c0_18, %c20], %36 {strides = array<i32>} : memref<256x36xf32, #tpu.memory_space<vmem>>, vector<256x4xf32>,
    %38 = vector.extract_strided_slice %10 {offsets = [32, 0], sizes = [256, 4], strides = [1, 1]} : vector<290x4xf32> to vector<256x4xf32>
    %c0_19 = arith.constant 0 : index
    %c6 = arith.constant 6 : index
    %39 = vector.load %arg5[%c0_19, %c6] : memref<256x9xf32, #tpu.memory_space<vmem>>, vector<256x1xf32>
    %40 = vector.broadcast %39 : vector<256x1xf32> to vector<256x4xf32>
    %41 = arith.mulf %38, %40 : vector<256x4xf32>
    %c0_20 = arith.constant 0 : index
    %c24 = arith.constant 24 : index
    %42 = vector.load %arg8[%c0_20, %c24] : memref<256x36xf32, #tpu.memory_space<vmem>>, vector<256x4xf32>
    tpu.vector_store %arg8[%c0_20, %c24], %41 {strides = array<i32>} : memref<256x36xf32, #tpu.memory_space<vmem>>, vector<256x4xf32>,
    %43 = vector.extract_strided_slice %10 {offsets = [33, 0], sizes = [256, 4], strides = [1, 1]} : vector<290x4xf32> to vector<256x4xf32>
    %c0_21 = arith.constant 0 : index
    %c7 = arith.constant 7 : index
    %44 = vector.load %arg5[%c0_21, %c7] : memref<256x9xf32, #tpu.memory_space<vmem>>, vector<256x1xf32>
    %45 = vector.broadcast %44 : vector<256x1xf32> to vector<256x4xf32>
    %46 = arith.mulf %43, %45 : vector<256x4xf32>
    %c0_22 = arith.constant 0 : index
    %c28 = arith.constant 28 : index
    %47 = vector.load %arg8[%c0_22, %c28] : memref<256x36xf32, #tpu.memory_space<vmem>>, vector<256x4xf32>
    tpu.vector_store %arg8[%c0_22, %c28], %46 {strides = array<i32>} : memref<256x36xf32, #tpu.memory_space<vmem>>, vector<256x4xf32>,
    %48 = vector.extract_strided_slice %10 {offsets = [34, 0], sizes = [256, 4], strides = [1, 1]} : vector<290x4xf32> to vector<256x4xf32>
    %c0_23 = arith.constant 0 : index
    %c8_24 = arith.constant 8 : index
    %49 = vector.load %arg5[%c0_23, %c8_24] : memref<256x9xf32, #tpu.memory_space<vmem>>, vector<256x1xf32>
    %50 = vector.broadcast %49 : vector<256x1xf32> to vector<256x4xf32>
    %51 = arith.mulf %48, %50 : vector<256x4xf32>
    %c0_25 = arith.constant 0 : index
    %c32 = arith.constant 32 : index
    %52 = vector.load %arg8[%c0_25, %c32] : memref<256x36xf32, #tpu.memory_space<vmem>>, vector<256x4xf32>
    tpu.vector_store %arg8[%c0_25, %c32], %51 {strides = array<i32>} : memref<256x36xf32, #tpu.memory_space<vmem>>, vector<256x4xf32>,
    %c0_26 = arith.constant 0 : index
    %c0_27 = arith.constant 0 : index
    %53 = vector.load %arg8[%c0_26, %c0_27] : memref<256x36xf32, #tpu.memory_space<vmem>>, vector<256x36xf32>
    %54 = arith.truncf %53 : vector<256x36xf32> to vector<256x36xbf16>
    %c0_28 = arith.constant 0 : index
    %c0_29 = arith.constant 0 : index
    %55 = vector.load %arg4[%c0_28, %c0_29] : memref<36x4xbf16, #tpu.memory_space<vmem>>, vector<36x4xbf16>
    %cst_30 = arith.constant dense<0.000000e+00> : vector<256x4xf32>
    %56 = tpu.matmul %54, %55, %cst_30 {dimension_numbers = #tpu.dot_dimension_numbers<[1], [0], [0], [1], [0, 0, 1, 1], [], []>} : vector<256x36xbf16>, vector<36x4xbf16>, vector<256x4xf32> -> vector<256x4xf32>
    %c0_31 = arith.constant 0 : index
    %c0_32 = arith.constant 0 : index
    %57 = vector.load %arg6[%c0_31, %c0_32] : memref<256x4xf32, #tpu.memory_space<vmem>>, vector<256x4xf32>
    tpu.vector_store %arg6[%c0_31, %c0_32], %56 {strides = array<i32>} : memref<256x4xf32, #tpu.memory_space<vmem>>, vector<256x4xf32>,
    %cst_33 = arith.constant dense<0.000000e+00> : vector<4xf32>
    %58 = vector.multi_reduction <add>, %56, %cst_33 [0] : vector<256x4xf32> to vector<4xf32>
    %59 = vector.shape_cast %58 : vector<4xf32> to vector<1x4xf32>
    %60 = arith.mulf %56, %56 : vector<256x4xf32>
    %cst_34 = arith.constant dense<0.000000e+00> : vector<4xf32>
    %61 = vector.multi_reduction <add>, %60, %cst_34 [0] : vector<256x4xf32> to vector<4xf32>
    %62 = vector.shape_cast %61 : vector<4xf32> to vector<1x4xf32>
    %63 = tpu.concatenate %59, %62 in 0 : vector<1x4xf32>, vector<1x4xf32> -> vector<2x4xf32>
    %64 = vector.shape_cast %63 : vector<2x4xf32> to vector<1x2x4xf32>
    %c0_35 = arith.constant 0 : index
    %c0_36 = arith.constant 0 : index
    %c0_37 = arith.constant 0 : index
    %65 = vector.load %arg7[%c0_35, %c0_36, %c0_37] : memref<1x2x4xf32, #tpu.memory_space<vmem>>, vector<1x2x4xf32>
    tpu.vector_store %arg7[%c0_35, %c0_36, %c0_37], %64 {strides = array<i32>} : memref<1x2x4xf32, #tpu.memory_space<vmem>>, vector<1x2x4xf32>,
    return
  }
  func.func @transform_0(%arg0: i32) -> (i32, i32) {
    %c0_i32 = arith.constant 0 : i32
    %c0_i32_0 = arith.constant 0 : i32
    return %arg0, %c0_i32 : i32, i32
  }
  func.func @transform_1(%arg0: i32) -> (i32, i32) {
    %c0_i32 = arith.constant 0 : i32
    %c0_i32_0 = arith.constant 0 : i32
    %c0_i32_1 = arith.constant 0 : i32
    return %c0_i32, %c0_i32_0 : i32, i32
  }
  func.func @transform_2(%arg0: i32) -> (i32, i32) {
    %c0_i32 = arith.constant 0 : i32
    %c0_i32_0 = arith.constant 0 : i32
    %c0_i32_1 = arith.constant 0 : i32
    return %c0_i32, %c0_i32_0 : i32, i32
  }
  func.func @transform_3(%arg0: i32) -> (i32, i32) {
    %c0_i32 = arith.constant 0 : i32
    %c0_i32_0 = arith.constant 0 : i32
    %c0_i32_1 = arith.constant 0 : i32
    return %c0_i32, %c0_i32_0 : i32, i32
  }
  func.func @transform_4(%arg0: i32) -> (i32, i32) {
    %c0_i32 = arith.constant 0 : i32
    %c0_i32_0 = arith.constant 0 : i32
    %c0_i32_1 = arith.constant 0 : i32
    return %c0_i32, %c0_i32_0 : i32, i32
  }
  func.func @transform_5(%arg0: i32) -> (i32, i32) {
    %c0_i32 = arith.constant 0 : i32
    %c0_i32_0 = arith.constant 0 : i32
    return %arg0, %c0_i32 : i32, i32
  }
  func.func @transform_6(%arg0: i32) -> (i32, i32, i32) {
    %c0_i32 = arith.constant 0 : i32
    %c0_i32_0 = arith.constant 0 : i32
    %c0_i32_1 = arith.constant 0 : i32
    return %arg0, %c0_i32, %c0_i32_0 : i32, i32, i32
  }
}

module attributes {stable_mosaic.version = 11 : i64} {
  func.func @_conv3_kernel(%arg0: i32, %arg1: memref<256x4xf32, #tpu.memory_space<vmem>>, %arg2: memref<1x4xf32, #tpu.memory_space<vmem>>, %arg3: memref<1x4xf32, #tpu.memory_space<vmem>>, %arg4: memref<4x16xbf16, #tpu.memory_space<vmem>>, %arg5: memref<256x16xf32, #tpu.memory_space<vmem>>, %arg6: memref<1x2x16xf32, #tpu.memory_space<vmem>>) attributes {dimension_semantics = [#tpu.dimension_semantics<parallel>], iteration_bounds = array<i64: 2>, scalar_prefetch = 0 : i64, scratch_operands = 0 : i64, tpu.core_type = #tpu.core_type<tc>, window_params = [{transform_indices = @transform_0, window_bounds = array<i64: 256, 4>}, {pipeline_mode = #tpu.pipeline_mode<synchronous>, transform_indices = @transform_1, window_bounds = array<i64: 1, 4>}, {pipeline_mode = #tpu.pipeline_mode<synchronous>, transform_indices = @transform_2, window_bounds = array<i64: 1, 4>}, {pipeline_mode = #tpu.pipeline_mode<synchronous>, transform_indices = @transform_3, window_bounds = array<i64: 4, 16>}, {transform_indices = @transform_4, window_bounds = array<i64: 256, 16>}, {transform_indices = @transform_5, window_bounds = array<i64: 1, 2, 16>}]} {
    %c0 = arith.constant 0 : index
    %c0_0 = arith.constant 0 : index
    %0 = vector.load %arg1[%c0, %c0_0] : memref<256x4xf32, #tpu.memory_space<vmem>>, vector<256x4xf32>
    %c0_1 = arith.constant 0 : index
    %c0_2 = arith.constant 0 : index
    %1 = vector.load %arg2[%c0_1, %c0_2] : memref<1x4xf32, #tpu.memory_space<vmem>>, vector<1x4xf32>
    %2 = vector.broadcast %1 : vector<1x4xf32> to vector<256x4xf32>
    %3 = arith.mulf %0, %2 : vector<256x4xf32>
    %c0_3 = arith.constant 0 : index
    %c0_4 = arith.constant 0 : index
    %4 = vector.load %arg3[%c0_3, %c0_4] : memref<1x4xf32, #tpu.memory_space<vmem>>, vector<1x4xf32>
    %5 = vector.broadcast %4 : vector<1x4xf32> to vector<256x4xf32>
    %6 = arith.addf %3, %5 : vector<256x4xf32>
    %cst = arith.constant 0.000000e+00 : f32
    %7 = vector.broadcast %cst : f32 to vector<256x4xf32>
    %8 = arith.maximumf %6, %7 : vector<256x4xf32>
    %9 = arith.truncf %8 : vector<256x4xf32> to vector<256x4xbf16>
    %c0_5 = arith.constant 0 : index
    %c0_6 = arith.constant 0 : index
    %10 = vector.load %arg4[%c0_5, %c0_6] : memref<4x16xbf16, #tpu.memory_space<vmem>>, vector<4x16xbf16>
    %cst_7 = arith.constant dense<0.000000e+00> : vector<256x16xf32>
    %11 = tpu.matmul %9, %10, %cst_7 {dimension_numbers = #tpu.dot_dimension_numbers<[1], [0], [0], [1], [0, 0, 1, 1], [], []>} : vector<256x4xbf16>, vector<4x16xbf16>, vector<256x16xf32> -> vector<256x16xf32>
    %c0_8 = arith.constant 0 : index
    %c0_9 = arith.constant 0 : index
    %12 = vector.load %arg5[%c0_8, %c0_9] : memref<256x16xf32, #tpu.memory_space<vmem>>, vector<256x16xf32>
    tpu.vector_store %arg5[%c0_8, %c0_9], %11 {strides = array<i32>} : memref<256x16xf32, #tpu.memory_space<vmem>>, vector<256x16xf32>,
    %cst_10 = arith.constant dense<0.000000e+00> : vector<16xf32>
    %13 = vector.multi_reduction <add>, %11, %cst_10 [0] : vector<256x16xf32> to vector<16xf32>
    %14 = vector.shape_cast %13 : vector<16xf32> to vector<1x16xf32>
    %15 = arith.mulf %11, %11 : vector<256x16xf32>
    %cst_11 = arith.constant dense<0.000000e+00> : vector<16xf32>
    %16 = vector.multi_reduction <add>, %15, %cst_11 [0] : vector<256x16xf32> to vector<16xf32>
    %17 = vector.shape_cast %16 : vector<16xf32> to vector<1x16xf32>
    %18 = tpu.concatenate %14, %17 in 0 : vector<1x16xf32>, vector<1x16xf32> -> vector<2x16xf32>
    %19 = vector.shape_cast %18 : vector<2x16xf32> to vector<1x2x16xf32>
    %c0_12 = arith.constant 0 : index
    %c0_13 = arith.constant 0 : index
    %c0_14 = arith.constant 0 : index
    %20 = vector.load %arg6[%c0_12, %c0_13, %c0_14] : memref<1x2x16xf32, #tpu.memory_space<vmem>>, vector<1x2x16xf32>
    tpu.vector_store %arg6[%c0_12, %c0_13, %c0_14], %19 {strides = array<i32>} : memref<1x2x16xf32, #tpu.memory_space<vmem>>, vector<1x2x16xf32>,
    return
  }
  func.func @transform_0(%arg0: i32) -> (i32, i32) {
    %c0_i32 = arith.constant 0 : i32
    %c0_i32_0 = arith.constant 0 : i32
    return %arg0, %c0_i32 : i32, i32
  }
  func.func @transform_1(%arg0: i32) -> (i32, i32) {
    %c0_i32 = arith.constant 0 : i32
    %c0_i32_0 = arith.constant 0 : i32
    %c0_i32_1 = arith.constant 0 : i32
    return %c0_i32, %c0_i32_0 : i32, i32
  }
  func.func @transform_2(%arg0: i32) -> (i32, i32) {
    %c0_i32 = arith.constant 0 : i32
    %c0_i32_0 = arith.constant 0 : i32
    %c0_i32_1 = arith.constant 0 : i32
    return %c0_i32, %c0_i32_0 : i32, i32
  }
  func.func @transform_3(%arg0: i32) -> (i32, i32) {
    %c0_i32 = arith.constant 0 : i32
    %c0_i32_0 = arith.constant 0 : i32
    %c0_i32_1 = arith.constant 0 : i32
    return %c0_i32, %c0_i32_0 : i32, i32
  }
  func.func @transform_4(%arg0: i32) -> (i32, i32) {
    %c0_i32 = arith.constant 0 : i32
    %c0_i32_0 = arith.constant 0 : i32
    return %arg0, %c0_i32 : i32, i32
  }
  func.func @transform_5(%arg0: i32) -> (i32, i32, i32) {
    %c0_i32 = arith.constant 0 : i32
    %c0_i32_0 = arith.constant 0 : i32
    %c0_i32_1 = arith.constant 0 : i32
    return %arg0, %c0_i32, %c0_i32_0 : i32, i32, i32
  }
}

module attributes {stable_mosaic.version = 11 : i64} {
  func.func @_residual_kernel(%arg0: i32, %arg1: memref<256x16xf32, #tpu.memory_space<vmem>>, %arg2: memref<256x16xf32, #tpu.memory_space<vmem>>, %arg3: memref<1x16xf32, #tpu.memory_space<vmem>>, %arg4: memref<1x16xf32, #tpu.memory_space<vmem>>, %arg5: memref<256x16xf32, #tpu.memory_space<vmem>>) attributes {dimension_semantics = [#tpu.dimension_semantics<parallel>], iteration_bounds = array<i64: 2>, scalar_prefetch = 0 : i64, scratch_operands = 0 : i64, tpu.core_type = #tpu.core_type<tc>, window_params = [{transform_indices = @transform_0, window_bounds = array<i64: 256, 16>}, {transform_indices = @transform_1, window_bounds = array<i64: 256, 16>}, {pipeline_mode = #tpu.pipeline_mode<synchronous>, transform_indices = @transform_2, window_bounds = array<i64: 1, 16>}, {pipeline_mode = #tpu.pipeline_mode<synchronous>, transform_indices = @transform_3, window_bounds = array<i64: 1, 16>}, {transform_indices = @transform_4, window_bounds = array<i64: 256, 16>}]} {
    %c0 = arith.constant 0 : index
    %c0_0 = arith.constant 0 : index
    %0 = vector.load %arg1[%c0, %c0_0] : memref<256x16xf32, #tpu.memory_space<vmem>>, vector<256x16xf32>
    %c0_1 = arith.constant 0 : index
    %c0_2 = arith.constant 0 : index
    %1 = vector.load %arg3[%c0_1, %c0_2] : memref<1x16xf32, #tpu.memory_space<vmem>>, vector<1x16xf32>
    %2 = vector.broadcast %1 : vector<1x16xf32> to vector<256x16xf32>
    %3 = arith.mulf %0, %2 : vector<256x16xf32>
    %c0_3 = arith.constant 0 : index
    %c0_4 = arith.constant 0 : index
    %4 = vector.load %arg4[%c0_3, %c0_4] : memref<1x16xf32, #tpu.memory_space<vmem>>, vector<1x16xf32>
    %5 = vector.broadcast %4 : vector<1x16xf32> to vector<256x16xf32>
    %6 = arith.addf %3, %5 : vector<256x16xf32>
    %c0_5 = arith.constant 0 : index
    %c0_6 = arith.constant 0 : index
    %7 = vector.load %arg2[%c0_5, %c0_6] : memref<256x16xf32, #tpu.memory_space<vmem>>, vector<256x16xf32>
    %8 = arith.addf %6, %7 : vector<256x16xf32>
    %cst = arith.constant 0.000000e+00 : f32
    %9 = vector.broadcast %cst : f32 to vector<256x16xf32>
    %10 = arith.maximumf %8, %9 : vector<256x16xf32>
    %c0_7 = arith.constant 0 : index
    %c0_8 = arith.constant 0 : index
    %11 = vector.load %arg5[%c0_7, %c0_8] : memref<256x16xf32, #tpu.memory_space<vmem>>, vector<256x16xf32>
    tpu.vector_store %arg5[%c0_7, %c0_8], %10 {strides = array<i32>} : memref<256x16xf32, #tpu.memory_space<vmem>>, vector<256x16xf32>,
    return
  }
  func.func @transform_0(%arg0: i32) -> (i32, i32) {
    %c0_i32 = arith.constant 0 : i32
    %c0_i32_0 = arith.constant 0 : i32
    return %arg0, %c0_i32 : i32, i32
  }
  func.func @transform_1(%arg0: i32) -> (i32, i32) {
    %c0_i32 = arith.constant 0 : i32
    %c0_i32_0 = arith.constant 0 : i32
    return %arg0, %c0_i32 : i32, i32
  }
  func.func @transform_2(%arg0: i32) -> (i32, i32) {
    %c0_i32 = arith.constant 0 : i32
    %c0_i32_0 = arith.constant 0 : i32
    %c0_i32_1 = arith.constant 0 : i32
    return %c0_i32, %c0_i32_0 : i32, i32
  }
  func.func @transform_3(%arg0: i32) -> (i32, i32) {
    %c0_i32 = arith.constant 0 : i32
    %c0_i32_0 = arith.constant 0 : i32
    %c0_i32_1 = arith.constant 0 : i32
    return %c0_i32, %c0_i32_0 : i32, i32
  }
  func.func @transform_4(%arg0: i32) -> (i32, i32) {
    %c0_i32 = arith.constant 0 : i32
    %c0_i32_0 = arith.constant 0 : i32
    return %arg0, %c0_i32 : i32, i32
  }
}

</mosaic_0001>

<llo_original>
// kernel: bottleneck_forward.4
$region0: #{bottleneck_forward.4}
  #allocation0 [shape = 'u32[]', space=smem, size = 0x4, offset = 0x4, fixed_abs, tag = 'smem constant byte address 0x4 - core index']
  #allocation1 [shape = 'u32[72,128]{1,0:T(1,128)}', space=vmem, size = 0x9000, scoped, tag = 'internal scratch']
  %s0 = inlined_call_operand.vmem [shape: f32[512,16], index: 0, kind: input, shape index: {}]
  %s1 = inlined_call_operand.vmem [shape: bf16[16,4], index: 1, kind: input, shape index: {}]
  %s2 = inlined_call_operand.vmem [shape: f32[512,4], index: 2, kind: output, shape index: {0}]
  %s3 = inlined_call_operand.vmem [shape: f32[2,2,4], index: 3, kind: output, shape index: {1}]
  %4 = xla_tuple %s2, %s3
  %s5 = sld [smem:[#allocation0]]
  $region49: #{bottleneck_forward.4} parent=0
    _
  %s7 = ssub.s32 1, %s5
  %s8 = scalar_select 0, %s7, %s5
  loop: start=0, step=1, limit=4
  $region2: #{bottleneck_forward.4} parent=0 // loop_pre_header
    _
  $region3: #{bottleneck_forward.4} parent=0 // loop_header
    %s10 = sphi 0, %s14
    %p11 = scmp.ge.s32.totalorder %s10, 4
    %s20 = sphi 0, %s22
    %s23 = sphi 0, %s20
    %s24 = sphi 0, %s23
    %s40 = sphi 0, %s24
    %s44 = sphi 0, %s44
    %s46 = sphi 0, %s44
    %s47 = sphi 0, %s46
    %s61 = sphi 0, %s47
    %s67 = sphi 0, %s69
    %s70 = sphi 0, %s67
    %s71 = sphi 0, %s70
    %s87 = sphi 0, %s71
    %s93 = sphi 0, %s95
    %s96 = sphi 0, %s93
    %s97 = sphi 0, %s96
    %s113 = sphi 0, %s97
  $region4: #{bottleneck_forward.4} parent=0 // loop_header_branch
    %13 = sbr.rel (%p11) target = $region8
  $region5: #{bottleneck_forward.4} parent=0 // loop_body
    %s15 = ssub.s32 %s10, 1
    %s16 = ssub.s32 %s10, 2
    %s17 = sadd.s32 %s10, 1
    %s18 = ssub.s32 %s10, %s17
    %p19 = scmp.eq.s32.totalorder %s18, 0
    %s21 = sadd.s32 %s20, 1
    %s22 = scalar_select %p19, %s20, %s21
    %p25 = pneg %p19
    %p26 = scmp.eq.s32.totalorder %s10, 1
    %p27 = por %p25, %p26
    %p28 = scmp.ne.s32.totalorder %s20, %s23
    %p29 = scmp.eq.s32.totalorder %s10, 0
    %p30 = por %p28, %p29
    %p31 = scmp.ne.s32.totalorder %s20, %s23
    %p32 = scmp.eq.s32.totalorder %s15, 1
    %p33 = por %p31, %p32
    %p34 = scmp.ne.s32.totalorder %s23, %s24
    %p35 = scmp.eq.s32.totalorder %s15, 0
    %p36 = por %p34, %p35
    %p37 = scmp.ne.s32.totalorder %s23, %s24
    %p38 = scmp.eq.s32.totalorder %s16, 1
    %p39 = por %p37, %p38
    %p41 = scmp.ne.s32.totalorder %s24, %s40
    %p42 = scmp.eq.s32.totalorder %s16, 0
    %p43 = por %p41, %p42
    %s45 = sadd.s32 %s44, 1
    %p48 = scmp.eq.s32.totalorder %s10, 1
    %p49 = scmp.ne.s32.totalorder %s44, %s46
    %p50 = scmp.eq.s32.totalorder %s10, 0
    %p51 = por %p49, %p50
    %p52 = scmp.ne.s32.totalorder %s44, %s46
    %p53 = scmp.eq.s32.totalorder %s15, 1
    %p54 = por %p52, %p53
    %p55 = scmp.ne.s32.totalorder %s46, %s47
    %p56 = scmp.eq.s32.totalorder %s15, 0
    %p57 = por %p55, %p56
    %p58 = scmp.ne.s32.totalorder %s46, %s47
    %p59 = scmp.eq.s32.totalorder %s16, 1
    %p60 = por %p58, %p59
    %p62 = scmp.ne.s32.totalorder %s47, %s61
    %p63 = scmp.eq.s32.totalorder %s16, 0
    %p64 = por %p62, %p63
    %s65 = ssub.s32 %s10, %s17
    %p66 = scmp.eq.s32.totalorder %s65, 0
    %s68 = sadd.s32 %s67, 1
    %s69 = scalar_select %p66, %s67, %s68
    %p72 = pneg %p66
    %p73 = scmp.eq.s32.totalorder %s10, 1
    %p74 = por %p72, %p73
    %p75 = scmp.ne.s32.totalorder %s67, %s70
    %p76 = scmp.eq.s32.totalorder %s10, 0
    %p77 = por %p75, %p76
    %p78 = scmp.ne.s32.totalorder %s67, %s70
    %p79 = scmp.eq.s32.totalorder %s15, 1
    %p80 = por %p78, %p79
    %p81 = scmp.ne.s32.totalorder %s70, %s71
    %p82 = scmp.eq.s32.totalorder %s15, 0
    %p83 = por %p81, %p82
    %p84 = scmp.ne.s32.totalorder %s70, %s71
    %p85 = scmp.eq.s32.totalorder %s16, 1
    %p86 = por %p84, %p85
    %p88 = scmp.ne.s32.totalorder %s71, %s87
    %p89 = scmp.eq.s32.totalorder %s16, 0
    %p90 = por %p88, %p89
    %s91 = ssub.s32 %s10, %s17
    %p92 = scmp.eq.s32.totalorder %s91, 0
    %s94 = sadd.s32 %s93, 1
    %s95 = scalar_select %p92, %s93, %s94
    %p98 = pneg %p92
    %p99 = scmp.eq.s32.totalorder %s10, 1
    %p100 = por %p98, %p99
    %p101 = scmp.ne.s32.totalorder %s93, %s96
    %p102 = scmp.eq.s32.totalorder %s10, 0
    %p103 = por %p101, %p102
    %p104 = scmp.ne.s32.totalorder %s93, %s96
    %p105 = scmp.eq.s32.totalorder %s15, 1
    %p106 = por %p104, %p105
    %p107 = scmp.ne.s32.totalorder %s96, %s97
    %p108 = scmp.eq.s32.totalorder %s15, 0
    %p109 = por %p107, %p108
    %p110 = scmp.ne.s32.totalorder %s96, %s97
    %p111 = scmp.eq.s32.totalorder %s16, 1
    %p112 = por %p110, %p111
    %p114 = scmp.ne.s32.totalorder %s97, %s113
    %p115 = scmp.eq.s32.totalorder %s16, 0
    %p116 = por %p114, %p115
    %p117 = scmp.le.s32.totalorder 1, %s10
    %p118 = scmp.lt.s32.totalorder %s10, 3
    %p119 = pnand %p117, %p118
    %p120 = pneg %p119
    // Predicated region
    $region9: #{bottleneck_forward.4} parent=5 // pred_check
      _
    $region10: #{bottleneck_forward.4} parent=5 // pred_check_branch
      %122 = sbr.rel (%p119) target = $region12
    $region11: #{bottleneck_forward.4} parent=5 // pred_region
      %s123 = ssub.s32 %s10, 1
      // Predicated region
      $region13: #{bottleneck_forward.4} parent=11 // pred_check
        %p124 = pneg %p57
      $region14: #{bottleneck_forward.4} parent=11 // pred_check_branch
        %126 = sbr.rel (%p124) target = $region16
      $region15: #{bottleneck_forward.4} parent=11 // pred_region
        _
      $region16: #{bottleneck_forward.4} parent=11 // pred_fallthru
        _
    $region12: #{bottleneck_forward.4} parent=5 // pred_fallthru
      _
    %p127 = scmp.lt.s32.totalorder %s10, 2
    // Predicated region
    $region17: #{bottleneck_forward.4} parent=5 // pred_check
      %p128 = pneg %p127
    $region18: #{bottleneck_forward.4} parent=5 // pred_check_branch
      %130 = sbr.rel (%p128) target = $region20
    $region19: #{bottleneck_forward.4} parent=5 // pred_region
      // Predicated region
      $region21: #{bottleneck_forward.4} parent=19 // pred_check
        %p131 = pneg %p30
      $region22: #{bottleneck_forward.4} parent=19 // pred_check_branch
        %133 = sbr.rel (%p131) target = $region24
      $region23: #{bottleneck_forward.4} parent=19 // pred_region
        %s134 = smul.u32 32, %s10
        %p135 = scmp.lt.s32.totalorder %s134, 63
        %s136 = scalar_select %p135, %s134, 63
        %s137 = smul.addr %s136, 8
        %s138 = scalar_lea.vmem %s0, %s137
        %s139 = smul.u32 32, %s10
      $region24: #{bottleneck_forward.4} parent=19 // pred_fallthru
        _
    $region20: #{bottleneck_forward.4} parent=5 // pred_fallthru
      _
    %p140 = scmp.le.s32.totalorder 1, %s10
    %p141 = scmp.lt.s32.totalorder %s10, 3
    %p142 = pnand %p140, %p141
    %p143 = pneg %p142
    // Predicated region
    $region25: #{bottleneck_forward.4} parent=5 // pred_check
      _
    $region26: #{bottleneck_forward.4} parent=5 // pred_check_branch
      %145 = sbr.rel (%p142) target = $region28
    $region27: #{bottleneck_forward.4} parent=5 // pred_region
      %s146 = ssub.s32 %s10, 1
      %s147 = smul.u32 32, %s15
      %p148 = scmp.lt.s32.totalorder %s147, 63
      %s149 = scalar_select %p148, %s147, 63
      %s150 = smul.addr %s149, 8
      %s151 = scalar_lea.vmem %s0, %s150
      %p152 = pneg %p36
      %p153 = pneg %p33
      %p154 = pneg %p57
      %p155 = pneg %p54
      %p156 = pneg %p83
      %p157 = pneg %p80
      %s158 = smul.u32 32, %s15
      %p159 = scmp.lt.s32.totalorder %s158, 63
      %s160 = scalar_select %p159, %s158, 63
      %s161 = smul.addr %s160, 8
      %s162 = scalar_lea.vmem %s2, %s161
      %p163 = pneg %p109
      %p164 = pneg %p106
      %p165 = scmp.lt.s32.totalorder %s15, 1
      %s166 = scalar_select %p165, %s15, 1
      %s167 = smul.addr %s166, 2
      %s168 = scalar_lea.vmem %s3, %s167
      %s169 = smul.u32 32, %s15
      %p170 = scmp.lt.s32.totalorder %s169, 63
      %s171 = scalar_select %p170, %s169, 63
      %s172 = smul.addr %s171, 8
      %s173 = scalar_lea.vmem %s0, %s172
      %s174 = smul.u32 32, %s15
      %s175 = smul.u32 32, %s15
      %p176 = scmp.lt.s32.totalorder %s175, 63
      %s177 = scalar_select %p176, %s175, 63
      %s178 = smul.addr %s177, 8
      %s179 = scalar_lea.vmem %s2, %s178
      %s180 = smul.u32 32, %s15
      %p181 = scmp.lt.s32.totalorder %s15, 1
      %s182 = scalar_select %p181, %s15, 1
      %s183 = smul.addr %s182, 2
      %s184 = scalar_lea.vmem %s3, %s183
      %v186 = vld [vmem:[%s173] sm:$0xff]
      %v187 = vld [vmem:[%s173 + $0x8] sm:$0xff]
      %v188 = vld [vmem:[%s173 + $0x10] sm:$0xff]
      %v189 = vld [vmem:[%s173 + $0x18] sm:$0xff]
      %v190 = vld [vmem:[%s173 + $0x20] sm:$0xff]
      %v191 = vld [vmem:[%s173 + $0x28] sm:$0xff]
      %v192 = vld [vmem:[%s173 + $0x30] sm:$0xff]
      %v193 = vld [vmem:[%s173 + $0x38] sm:$0xff]
      %v194 = vld [vmem:[%s173 + $0x40] sm:$0xff]
      %v195 = vld [vmem:[%s173 + $0x48] sm:$0xff]
      %v196 = vld [vmem:[%s173 + $0x50] sm:$0xff]
      %v197 = vld [vmem:[%s173 + $0x58] sm:$0xff]
      %v198 = vld [vmem:[%s173 + $0x60] sm:$0xff]
      %v199 = vld [vmem:[%s173 + $0x68] sm:$0xff]
      %v200 = vld [vmem:[%s173 + $0x70] sm:$0xff]
      %v201 = vld [vmem:[%s173 + $0x78] sm:$0xff]
      %v202 = vld [vmem:[%s173 + $0x80] sm:$0xff]
      %v203 = vld [vmem:[%s173 + $0x88] sm:$0xff]
      %v204 = vld [vmem:[%s173 + $0x90] sm:$0xff]
      %v205 = vld [vmem:[%s173 + $0x98] sm:$0xff]
      %v206 = vld [vmem:[%s173 + $0xa0] sm:$0xff]
      %v207 = vld [vmem:[%s173 + $0xa8] sm:$0xff]
      %v208 = vld [vmem:[%s173 + $0xb0] sm:$0xff]
      %v209 = vld [vmem:[%s173 + $0xb8] sm:$0xff]
      %v210 = vld [vmem:[%s173 + $0xc0] sm:$0xff]
      %v211 = vld [vmem:[%s173 + $0xc8] sm:$0xff]
      %v212 = vld [vmem:[%s173 + $0xd0] sm:$0xff]
      %v213 = vld [vmem:[%s173 + $0xd8] sm:$0xff]
      %v214 = vld [vmem:[%s173 + $0xe0] sm:$0xff]
      %v215 = vld [vmem:[%s173 + $0xe8] sm:$0xff]
      %v216 = vld [vmem:[%s173 + $0xf0] sm:$0xff]
      %v217 = vld [vmem:[%s173 + $0xf8] sm:$0xff]
      %v218 = vpack.c.bf16 %v187, %v186
      %v219 = vpack.c.bf16 %v189, %v188
      %v220 = vpack.c.bf16 %v191, %v190
      %v221 = vpack.c.bf16 %v193, %v192
      %v222 = vpack.c.bf16 %v195, %v194
      %v223 = vpack.c.bf16 %v197, %v196
      %v224 = vpack.c.bf16 %v199, %v198
      %v225 = vpack.c.bf16 %v201, %v200
      %v226 = vpack.c.bf16 %v203, %v202
      %v227 = vpack.c.bf16 %v205, %v204
      %v228 = vpack.c.bf16 %v207, %v206
      %v229 = vpack.c.bf16 %v209, %v208
      %v230 = vpack.c.bf16 %v211, %v210
      %v231 = vpack.c.bf16 %v213, %v212
      %v232 = vpack.c.bf16 %v215, %v214
      %v233 = vpack.c.bf16 %v217, %v216
      %v234 = vld [vmem:[%s1] sm:$0xf]
      %v235 = vld [vmem:[%s1 + $0x4] sm:$0xf]
      %v238 = vunpack.c.l.b16 %v234
      %v239 = vunpack.c.l.b16 %v235
      %v240 = vpack.c.b16 %v239, %v238
      %vm242 = vcmask 130048
      %v244 = vsel %vm242, %v218, 0
      %v247 = vsel %vm242, %v219, 0
      %v250 = vsel %vm242, %v220, 0
      %v253 = vsel %vm242, %v221, 0
      %v256 = vsel %vm242, %v222, 0
      %v259 = vsel %vm242, %v223, 0
      %v262 = vsel %vm242, %v224, 0
      %v265 = vsel %vm242, %v225, 0
      %v268 = vsel %vm242, %v226, 0
      %v271 = vsel %vm242, %v227, 0
      %v274 = vsel %vm242, %v228, 0
      %v277 = vsel %vm242, %v229, 0
      %v280 = vsel %vm242, %v230, 0
      %v283 = vsel %vm242, %v231, 0
      %v286 = vsel %vm242, %v232, 0
      %v289 = vsel %vm242, %v233, 0
      %291 = vmatpush.bf16.msra.mxu0 0
      %292 = vmatpush.bf16.msra.mxu0 0
      %293 = vmatpush.bf16.msra.mxu0 0
      %294 = vmatpush.bf16.msra.mxu0 0
      %295 = vmatpush.bf16.msra.mxu0 0
      %296 = vmatpush.bf16.msra.mxu0 0
      %297 = vmatpush.bf16.msra.mxu0 0
      %298 = vmatpush.bf16.msra.mxu0 %v240
      %299 = vmatmul.bf16.gmra.mxu0 %v244
      %v300 = vpop.f32.mrf.mxu0
      %v301 = vadd.f32 0.0, %v300
      %v302 = vpop.f32.mrf.mxu0
      %v303 = vadd.f32 0.0, %v302
      %304 = vmatmul.bf16.gmra.mxu0 %v247
      %v305 = vpop.f32.mrf.mxu0
      %v306 = vadd.f32 0.0, %v305
      %v307 = vpop.f32.mrf.mxu0
      %v308 = vadd.f32 0.0, %v307
      %309 = vmatmul.bf16.gmra.mxu0 %v250
      %v310 = vpop.f32.mrf.mxu0
      %v311 = vadd.f32 0.0, %v310
      %v312 = vpop.f32.mrf.mxu0
      %v313 = vadd.f32 0.0, %v312
      %314 = vmatmul.bf16.gmra.mxu0 %v253
      %v315 = vpop.f32.mrf.mxu0
      %v316 = vadd.f32 0.0, %v315
      %v317 = vpop.f32.mrf.mxu0
      %v318 = vadd.f32 0.0, %v317
      %319 = vmatmul.bf16.gmra.mxu0 %v256
      %v320 = vpop.f32.mrf.mxu0
      %v321 = vadd.f32 0.0, %v320
      %v322 = vpop.f32.mrf.mxu0
      %v323 = vadd.f32 0.0, %v322
      %324 = vmatmul.bf16.gmra.mxu0 %v259
      %v325 = vpop.f32.mrf.mxu0
      %v326 = vadd.f32 0.0, %v325
      %v327 = vpop.f32.mrf.mxu0
      %v328 = vadd.f32 0.0, %v327
      %329 = vmatmul.bf16.gmra.mxu0 %v262
      %v330 = vpop.f32.mrf.mxu0
      %v331 = vadd.f32 0.0, %v330
      %v332 = vpop.f32.mrf.mxu0
      %v333 = vadd.f32 0.0, %v332
      %334 = vmatmul.bf16.gmra.mxu0 %v265
      %v335 = vpop.f32.mrf.mxu0
      %v336 = vadd.f32 0.0, %v335
      %v337 = vpop.f32.mrf.mxu0
      %v338 = vadd.f32 0.0, %v337
      %339 = vmatmul.bf16.gmra.mxu0 %v268
      %v340 = vpop.f32.mrf.mxu0
      %v341 = vadd.f32 0.0, %v340
      %v342 = vpop.f32.mrf.mxu0
      %v343 = vadd.f32 0.0, %v342
      %344 = vmatmul.bf16.gmra.mxu0 %v271
      %v345 = vpop.f32.mrf.mxu0
      %v346 = vadd.f32 0.0, %v345
      %v347 = vpop.f32.mrf.mxu0
      %v348 = vadd.f32 0.0, %v347
      %349 = vmatmul.bf16.gmra.mxu0 %v274
      %v350 = vpop.f32.mrf.mxu0
      %v351 = vadd.f32 0.0, %v350
      %v352 = vpop.f32.mrf.mxu0
      %v353 = vadd.f32 0.0, %v352
      %354 = vmatmul.bf16.gmra.mxu0 %v277
      %v355 = vpop.f32.mrf.mxu0
      %v356 = vadd.f32 0.0, %v355
      %v357 = vpop.f32.mrf.mxu0
      %v358 = vadd.f32 0.0, %v357
      %359 = vmatmul.bf16.gmra.mxu0 %v280
      %v360 = vpop.f32.mrf.mxu0
      %v361 = vadd.f32 0.0, %v360
      %v362 = vpop.f32.mrf.mxu0
      %v363 = vadd.f32 0.0, %v362
      %364 = vmatmul.bf16.gmra.mxu0 %v283
      %v365 = vpop.f32.mrf.mxu0
      %v366 = vadd.f32 0.0, %v365
      %v367 = vpop.f32.mrf.mxu0
      %v368 = vadd.f32 0.0, %v367
      %369 = vmatmul.bf16.gmra.mxu0 %v286
      %v370 = vpop.f32.mrf.mxu0
      %v371 = vadd.f32 0.0, %v370
      %v372 = vpop.f32.mrf.mxu0
      %v373 = vadd.f32 0.0, %v372
      %374 = vmatmul.bf16.gmra.mxu0 %v289
      %v375 = vpop.f32.mrf.mxu0
      %v376 = vadd.f32 0.0, %v375
      %v377 = vpop.f32.mrf.mxu0
      %v378 = vadd.f32 0.0, %v377
      %379 = vdwg.mxu0
      %vm380 = vcmask 31744
      %381 = vst.msk [vmem:[%s179] sm:$0xff] %vm380, %v301
      %382 = vst.msk [vmem:[%s179 + $0x8] sm:$0xff] %vm380, %v303
      %383 = vst.msk [vmem:[%s179 + $0x10] sm:$0xff] %vm380, %v306
      %384 = vst.msk [vmem:[%s179 + $0x18] sm:$0xff] %vm380, %v308
      %385 = vst.msk [vmem:[%s179 + $0x20] sm:$0xff] %vm380, %v311
      %386 = vst.msk [vmem:[%s179 + $0x28] sm:$0xff] %vm380, %v313
      %387 = vst.msk [vmem:[%s179 + $0x30] sm:$0xff] %vm380, %v316
      %388 = vst.msk [vmem:[%s179 + $0x38] sm:$0xff] %vm380, %v318
      %389 = vst.msk [vmem:[%s179 + $0x40] sm:$0xff] %vm380, %v321
      %390 = vst.msk [vmem:[%s179 + $0x48] sm:$0xff] %vm380, %v323
      %391 = vst.msk [vmem:[%s179 + $0x50] sm:$0xff] %vm380, %v326
      %392 = vst.msk [vmem:[%s179 + $0x58] sm:$0xff] %vm380, %v328
      %393 = vst.msk [vmem:[%s179 + $0x60] sm:$0xff] %vm380, %v331
      %394 = vst.msk [vmem:[%s179 + $0x68] sm:$0xff] %vm380, %v333
      %395 = vst.msk [vmem:[%s179 + $0x70] sm:$0xff] %vm380, %v336
      %396 = vst.msk [vmem:[%s179 + $0x78] sm:$0xff] %vm380, %v338
      %397 = vst.msk [vmem:[%s179 + $0x80] sm:$0xff] %vm380, %v341
      %398 = vst.msk [vmem:[%s179 + $0x88] sm:$0xff] %vm380, %v343
      %399 = vst.msk [vmem:[%s179 + $0x90] sm:$0xff] %vm380, %v346
      %400 = vst.msk [vmem:[%s179 + $0x98] sm:$0xff] %vm380, %v348
      %401 = vst.msk [vmem:[%s179 + $0xa0] sm:$0xff] %vm380, %v351
      %402 = vst.msk [vmem:[%s179 + $0xa8] sm:$0xff] %vm380, %v353
      %403 = vst.msk [vmem:[%s179 + $0xb0] sm:$0xff] %vm380, %v356
      %404 = vst.msk [vmem:[%s179 + $0xb8] sm:$0xff] %vm380, %v358
      %405 = vst.msk [vmem:[%s179 + $0xc0] sm:$0xff] %vm380, %v361
      %406 = vst.msk [vmem:[%s179 + $0xc8] sm:$0xff] %vm380, %v363
      %407 = vst.msk [vmem:[%s179 + $0xd0] sm:$0xff] %vm380, %v366
      %408 = vst.msk [vmem:[%s179 + $0xd8] sm:$0xff] %vm380, %v368
      %409 = vst.msk [vmem:[%s179 + $0xe0] sm:$0xff] %vm380, %v371
      %410 = vst.msk [vmem:[%s179 + $0xe8] sm:$0xff] %vm380, %v373
      %411 = vst.msk [vmem:[%s179 + $0xf0] sm:$0xff] %vm380, %v376
      %412 = vst.msk [vmem:[%s179 + $0xf8] sm:$0xff] %vm380, %v378
      %v413 = vsel %vm380, %v301, 0.0
      %v414 = vsel %vm380, %v303, 0.0
      %v415 = vadd.f32 %v413, %v414
      %v416 = vsel %vm380, %v306, 0.0
      %v417 = vadd.f32 %v415, %v416
      %v418 = vsel %vm380, %v308, 0.0
      %v419 = vadd.f32 %v417, %v418
      %v420 = vsel %vm380, %v311, 0.0
      %v421 = vadd.f32 %v419, %v420
      %v422 = vsel %vm380, %v313, 0.0
      %v423 = vadd.f32 %v421, %v422
      %v424 = vsel %vm380, %v316, 0.0
      %v425 = vadd.f32 %v423, %v424
      %v426 = vsel %vm380, %v318, 0.0
      %v427 = vadd.f32 %v425, %v426
      %v428 = vsel %vm380, %v321, 0.0
      %v429 = vadd.f32 %v427, %v428
      %v430 = vsel %vm380, %v323, 0.0
      %v431 = vadd.f32 %v429, %v430
      %v432 = vsel %vm380, %v326, 0.0
      %v433 = vadd.f32 %v431, %v432
      %v434 = vsel %vm380, %v328, 0.0
      %v435 = vadd.f32 %v433, %v434
      %v436 = vsel %vm380, %v331, 0.0
      %v437 = vadd.f32 %v435, %v436
      %v438 = vsel %vm380, %v333, 0.0
      %v439 = vadd.f32 %v437, %v438
      %v440 = vsel %vm380, %v336, 0.0
      %v441 = vadd.f32 %v439, %v440
      %v442 = vsel %vm380, %v338, 0.0
      %v443 = vadd.f32 %v441, %v442
      %v444 = vsel %vm380, %v341, 0.0
      %v445 = vadd.f32 %v443, %v444
      %v446 = vsel %vm380, %v343, 0.0
      %v447 = vadd.f32 %v445, %v446
      %v448 = vsel %vm380, %v346, 0.0
      %v449 = vadd.f32 %v447, %v448
      %v450 = vsel %vm380, %v348, 0.0
      %v451 = vadd.f32 %v449, %v450
      %v452 = vsel %vm380, %v351, 0.0
      %v453 = vadd.f32 %v451, %v452
      %v454 = vsel %vm380, %v353, 0.0
      %v455 = vadd.f32 %v453, %v454
      %v456 = vsel %vm380, %v356, 0.0
      %v457 = vadd.f32 %v455, %v456
      %v458 = vsel %vm380, %v358, 0.0
      %v459 = vadd.f32 %v457, %v458
      %v460 = vsel %vm380, %v361, 0.0
      %v461 = vadd.f32 %v459, %v460
      %v462 = vsel %vm380, %v363, 0.0
      %v463 = vadd.f32 %v461, %v462
      %v464 = vsel %vm380, %v366, 0.0
      %v465 = vadd.f32 %v463, %v464
      %v466 = vsel %vm380, %v368, 0.0
      %v467 = vadd.f32 %v465, %v466
      %v468 = vsel %vm380, %v371, 0.0
      %v469 = vadd.f32 %v467, %v468
      %v470 = vsel %vm380, %v373, 0.0
      %v471 = vadd.f32 %v469, %v470
      %v472 = vsel %vm380, %v376, 0.0
      %v473 = vadd.f32 %v471, %v472
      %v474 = vsel %vm380, %v378, 0.0
      %v475 = vadd.f32 %v473, %v474
      %v476 = vrot.slane %v475, 4
      %v477 = vadd.f32 %v475, %v476
      %v478 = vrot.slane %v477, 2
      %v479 = vadd.f32 %v477, %v478
      %v480 = vrot.slane %v479, 1
      %v481 = vadd.f32 %v479, %v480
      %v482 = vmul.f32 %v301, %v301
      %v483 = vmul.f32 %v303, %v303
      %v484 = vmul.f32 %v306, %v306
      %v485 = vmul.f32 %v308, %v308
      %v486 = vmul.f32 %v311, %v311
      %v487 = vmul.f32 %v313, %v313
      %v488 = vmul.f32 %v316, %v316
      %v489 = vmul.f32 %v318, %v318
      %v490 = vmul.f32 %v321, %v321
      %v491 = vmul.f32 %v323, %v323
      %v492 = vmul.f32 %v326, %v326
      %v493 = vmul.f32 %v328, %v328
      %v494 = vmul.f32 %v331, %v331
      %v495 = vmul.f32 %v333, %v333
      %v496 = vmul.f32 %v336, %v336
      %v497 = vmul.f32 %v338, %v338
      %v498 = vmul.f32 %v341, %v341
      %v499 = vmul.f32 %v343, %v343
      %v500 = vmul.f32 %v346, %v346
      %v501 = vmul.f32 %v348, %v348
      %v502 = vmul.f32 %v351, %v351
      %v503 = vmul.f32 %v353, %v353
      %v504 = vmul.f32 %v356, %v356
      %v505 = vmul.f32 %v358, %v358
      %v506 = vmul.f32 %v361, %v361
      %v507 = vmul.f32 %v363, %v363
      %v508 = vmul.f32 %v366, %v366
      %v509 = vmul.f32 %v368, %v368
      %v510 = vmul.f32 %v371, %v371
      %v511 = vmul.f32 %v373, %v373
      %v512 = vmul.f32 %v376, %v376
      %v513 = vmul.f32 %v378, %v378
      %v514 = vsel %vm380, %v482, 0.0
      %v515 = vsel %vm380, %v483, 0.0
      %v516 = vadd.f32 %v514, %v515
      %v517 = vsel %vm380, %v484, 0.0
      %v518 = vadd.f32 %v516, %v517
      %v519 = vsel %vm380, %v485, 0.0
      %v520 = vadd.f32 %v518, %v519
      %v521 = vsel %vm380, %v486, 0.0
      %v522 = vadd.f32 %v520, %v521
      %v523 = vsel %vm380, %v487, 0.0
      %v524 = vadd.f32 %v522, %v523
      %v525 = vsel %vm380, %v488, 0.0
      %v526 = vadd.f32 %v524, %v525
      %v527 = vsel %vm380, %v489, 0.0
      %v528 = vadd.f32 %v526, %v527
      %v529 = vsel %vm380, %v490, 0.0
      %v530 = vadd.f32 %v528, %v529
      %v531 = vsel %vm380, %v491, 0.0
      %v532 = vadd.f32 %v530, %v531
      %v533 = vsel %vm380, %v492, 0.0
      %v534 = vadd.f32 %v532, %v533
      %v535 = vsel %vm380, %v493, 0.0
      %v536 = vadd.f32 %v534, %v535
      %v537 = vsel %vm380, %v494, 0.0
      %v538 = vadd.f32 %v536, %v537
      %v539 = vsel %vm380, %v495, 0.0
      %v540 = vadd.f32 %v538, %v539
      %v541 = vsel %vm380, %v496, 0.0
      %v542 = vadd.f32 %v540, %v541
      %v543 = vsel %vm380, %v497, 0.0
      %v544 = vadd.f32 %v542, %v543
      %v545 = vsel %vm380, %v498, 0.0
      %v546 = vadd.f32 %v544, %v545
      %v547 = vsel %vm380, %v499, 0.0
      %v548 = vadd.f32 %v546, %v547
      %v549 = vsel %vm380, %v500, 0.0
      %v550 = vadd.f32 %v548, %v549
      %v551 = vsel %vm380, %v501, 0.0
      %v552 = vadd.f32 %v550, %v551
      %v553 = vsel %vm380, %v502, 0.0
      %v554 = vadd.f32 %v552, %v553
      %v555 = vsel %vm380, %v503, 0.0
      %v556 = vadd.f32 %v554, %v555
      %v557 = vsel %vm380, %v504, 0.0
      %v558 = vadd.f32 %v556, %v557
      %v559 = vsel %vm380, %v505, 0.0
      %v560 = vadd.f32 %v558, %v559
      %v561 = vsel %vm380, %v506, 0.0
      %v562 = vadd.f32 %v560, %v561
      %v563 = vsel %vm380, %v507, 0.0
      %v564 = vadd.f32 %v562, %v563
      %v565 = vsel %vm380, %v508, 0.0
      %v566 = vadd.f32 %v564, %v565
      %v567 = vsel %vm380, %v509, 0.0
      %v568 = vadd.f32 %v566, %v567
      %v569 = vsel %vm380, %v510, 0.0
      %v570 = vadd.f32 %v568, %v569
      %v571 = vsel %vm380, %v511, 0.0
      %v572 = vadd.f32 %v570, %v571
      %v573 = vsel %vm380, %v512, 0.0
      %v574 = vadd.f32 %v572, %v573
      %v575 = vsel %vm380, %v513, 0.0
      %v576 = vadd.f32 %v574, %v575
      %v577 = vrot.slane %v576, 4
      %v578 = vadd.f32 %v576, %v577
      %v579 = vrot.slane %v578, 2
      %v580 = vadd.f32 %v578, %v579
      %v581 = vrot.slane %v580, 1
      %v582 = vadd.f32 %v580, %v581
      %vm583 = vcmask 1040384
      %v584 = vsel %vm583, %v481, %v582
      %vm585 = vcmask 25600
      %586 = vst.msk [vmem:[%s184] sm:$0x3] %vm585, %v584
      %s587 = smul.u32 32, %s15
      %p588 = scmp.lt.s32.totalorder %s587, 63
      %s589 = scalar_select %p588, %s587, 63
      %s590 = smul.addr %s589, 8
      %s591 = scalar_lea.vmem %s2, %s590
      %p592 = scmp.lt.s32.totalorder %s15, 1
      %s593 = scalar_select %p592, %s15, 1
      %s594 = smul.addr %s593, 2
      %s595 = scalar_lea.vmem %s3, %s594
      // Predicated region
      $region29: #{bottleneck_forward.4} parent=27 // pred_check
        %p596 = pneg %p80
      $region30: #{bottleneck_forward.4} parent=27 // pred_check_branch
        %598 = sbr.rel (%p596) target = $region32
      $region31: #{bottleneck_forward.4} parent=27 // pred_region
        %s599 = smul.u32 32, %s15
      $region32: #{bottleneck_forward.4} parent=27 // pred_fallthru
        _
      // Predicated region
      $region33: #{bottleneck_forward.4} parent=27 // pred_check
        %p600 = pneg %p106
      $region34: #{bottleneck_forward.4} parent=27 // pred_check_branch
        %602 = sbr.rel (%p600) target = $region36
      $region35: #{bottleneck_forward.4} parent=27 // pred_region
        _
      $region36: #{bottleneck_forward.4} parent=27 // pred_fallthru
        _
    $region28: #{bottleneck_forward.4} parent=5 // pred_fallthru
      _
    %p603 = scmp.le.s32.totalorder 2, %s10
    // Predicated region
    $region37: #{bottleneck_forward.4} parent=5 // pred_check
      %p604 = pneg %p603
    $region38: #{bottleneck_forward.4} parent=5 // pred_check_branch
      %606 = sbr.rel (%p604) target = $region40
    $region39: #{bottleneck_forward.4} parent=5 // pred_region
      %s607 = ssub.s32 %s10, 2
      // Predicated region
      $region41: #{bottleneck_forward.4} parent=39 // pred_check
        %p608 = pneg %p86
      $region42: #{bottleneck_forward.4} parent=39 // pred_check_branch
        %610 = sbr.rel (%p608) target = $region44
      $region43: #{bottleneck_forward.4} parent=39 // pred_region
        %s611 = smul.u32 32, %s16
        %p612 = scmp.lt.s32.totalorder %s611, 63
        %s613 = scalar_select %p612, %s611, 63
        %s614 = smul.addr %s613, 8
        %s615 = scalar_lea.vmem %s2, %s614
      $region44: #{bottleneck_forward.4} parent=39 // pred_fallthru
        _
      // Predicated region
      $region45: #{bottleneck_forward.4} parent=39 // pred_check
        %p616 = pneg %p112
      $region46: #{bottleneck_forward.4} parent=39 // pred_check_branch
        %618 = sbr.rel (%p616) target = $region48
      $region47: #{bottleneck_forward.4} parent=39 // pred_region
        %p619 = scmp.lt.s32.totalorder %s16, 1
        %s620 = scalar_select %p619, %s16, 1
        %s621 = smul.addr %s620, 2
        %s622 = scalar_lea.vmem %s3, %s621
      $region48: #{bottleneck_forward.4} parent=39 // pred_fallthru
        _
    $region40: #{bottleneck_forward.4} parent=5 // pred_fallthru
      _
  $region6: #{bottleneck_forward.4} parent=0 // loop_footer
    %s14 = sadd.s32 1, %s10
  $region7: #{bottleneck_forward.4} parent=0 // loop_footer_branch
    %9 = sbr.rel target = $region3
  $region8: #{bottleneck_forward.4} parent=0 // loop_exit
    _

// kernel: bottleneck_forward.7
$region0: #{bottleneck_forward.7}
  #allocation0 [shape = 'u32[]', space=smem, size = 0x4, offset = 0x4, fixed_abs, tag = 'smem constant byte address 0x4 - core index']
  #allocation1 [shape = 'u32[72,128]{1,0:T(1,128)}', space=vmem, size = 0x9000, scoped, tag = 'internal scratch']
  %s0 = inlined_call_operand.vmem [shape: f32[512,16], index: 0, kind: input, shape index: {}]
  %s1 = inlined_call_operand.vmem [shape: f32[512,16], index: 1, kind: input, shape index: {}]
  %s2 = inlined_call_operand.vmem [shape: f32[1,16], index: 2, kind: input, shape index: {}]
  %s3 = inlined_call_operand.vmem [shape: f32[1,16], index: 3, kind: input, shape index: {}]
  %s4 = inlined_call_operand.vmem [shape: f32[512,16], index: 4, kind: output, shape index: {}]
  %s5 = sld [smem:[#allocation0]]
  $region49: #{bottleneck_forward.7} parent=0
    _
  %s7 = ssub.s32 1, %s5
  %s8 = scalar_select 0, %s7, %s5
  loop: start=0, step=1, limit=4
  $region2: #{bottleneck_forward.7} parent=0 // loop_pre_header
    _
  $region3: #{bottleneck_forward.7} parent=0 // loop_header
    %s10 = sphi 0, %s14
    %p11 = scmp.ge.s32.totalorder %s10, 4
    %s20 = sphi 0, %s22
    %s23 = sphi 0, %s20
    %s24 = sphi 0, %s23
    %s40 = sphi 0, %s24
    %s46 = sphi 0, %s48
    %s49 = sphi 0, %s46
    %s50 = sphi 0, %s49
    %s66 = sphi 0, %s50
    %s70 = sphi 0, %s70
    %s72 = sphi 0, %s70
    %s73 = sphi 0, %s72
    %s87 = sphi 0, %s73
    %s91 = sphi 0, %s91
    %s93 = sphi 0, %s91
    %s94 = sphi 0, %s93
    %s108 = sphi 0, %s94
    %s114 = sphi 0, %s116
    %s117 = sphi 0, %s114
    %s118 = sphi 0, %s117
    %s134 = sphi 0, %s118
  $region4: #{bottleneck_forward.7} parent=0 // loop_header_branch
    %13 = sbr.rel (%p11) target = $region8
  $region5: #{bottleneck_forward.7} parent=0 // loop_body
    %s15 = ssub.s32 %s10, 1
    %s16 = ssub.s32 %s10, 2
    %s17 = sadd.s32 %s10, 1
    %s18 = ssub.s32 %s10, %s17
    %p19 = scmp.eq.s32.totalorder %s18, 0
    %s21 = sadd.s32 %s20, 1
    %s22 = scalar_select %p19, %s20, %s21
    %p25 = pneg %p19
    %p26 = scmp.eq.s32.totalorder %s10, 1
    %p27 = por %p25, %p26
    %p28 = scmp.ne.s32.totalorder %s20, %s23
    %p29 = scmp.eq.s32.totalorder %s10, 0
    %p30 = por %p28, %p29
    %p31 = scmp.ne.s32.totalorder %s20, %s23
    %p32 = scmp.eq.s32.totalorder %s15, 1
    %p33 = por %p31, %p32
    %p34 = scmp.ne.s32.totalorder %s23, %s24
    %p35 = scmp.eq.s32.totalorder %s15, 0
    %p36 = por %p34, %p35
    %p37 = scmp.ne.s32.totalorder %s23, %s24
    %p38 = scmp.eq.s32.totalorder %s16, 1
    %p39 = por %p37, %p38
    %p41 = scmp.ne.s32.totalorder %s24, %s40
    %p42 = scmp.eq.s32.totalorder %s16, 0
    %p43 = por %p41, %p42
    %s44 = ssub.s32 %s10, %s17
    %p45 = scmp.eq.s32.totalorder %s44, 0
    %s47 = sadd.s32 %s46, 1
    %s48 = scalar_select %p45, %s46, %s47
    %p51 = pneg %p45
    %p52 = scmp.eq.s32.totalorder %s10, 1
    %p53 = por %p51, %p52
    %p54 = scmp.ne.s32.totalorder %s46, %s49
    %p55 = scmp.eq.s32.totalorder %s10, 0
    %p56 = por %p54, %p55
    %p57 = scmp.ne.s32.totalorder %s46, %s49
    %p58 = scmp.eq.s32.totalorder %s15, 1
    %p59 = por %p57, %p58
    %p60 = scmp.ne.s32.totalorder %s49, %s50
    %p61 = scmp.eq.s32.totalorder %s15, 0
    %p62 = por %p60, %p61
    %p63 = scmp.ne.s32.totalorder %s49, %s50
    %p64 = scmp.eq.s32.totalorder %s16, 1
    %p65 = por %p63, %p64
    %p67 = scmp.ne.s32.totalorder %s50, %s66
    %p68 = scmp.eq.s32.totalorder %s16, 0
    %p69 = por %p67, %p68
    %s71 = sadd.s32 %s70, 1
    %p74 = scmp.eq.s32.totalorder %s10, 1
    %p75 = scmp.ne.s32.totalorder %s70, %s72
    %p76 = scmp.eq.s32.totalorder %s10, 0
    %p77 = por %p75, %p76
    %p78 = scmp.ne.s32.totalorder %s70, %s72
    %p79 = scmp.eq.s32.totalorder %s15, 1
    %p80 = por %p78, %p79
    %p81 = scmp.ne.s32.totalorder %s72, %s73
    %p82 = scmp.eq.s32.totalorder %s15, 0
    %p83 = por %p81, %p82
    %p84 = scmp.ne.s32.totalorder %s72, %s73
    %p85 = scmp.eq.s32.totalorder %s16, 1
    %p86 = por %p84, %p85
    %p88 = scmp.ne.s32.totalorder %s73, %s87
    %p89 = scmp.eq.s32.totalorder %s16, 0
    %p90 = por %p88, %p89
    %s92 = sadd.s32 %s91, 1
    %p95 = scmp.eq.s32.totalorder %s10, 1
    %p96 = scmp.ne.s32.totalorder %s91, %s93
    %p97 = scmp.eq.s32.totalorder %s10, 0
    %p98 = por %p96, %p97
    %p99 = scmp.ne.s32.totalorder %s91, %s93
    %p100 = scmp.eq.s32.totalorder %s15, 1
    %p101 = por %p99, %p100
    %p102 = scmp.ne.s32.totalorder %s93, %s94
    %p103 = scmp.eq.s32.totalorder %s15, 0
    %p104 = por %p102, %p103
    %p105 = scmp.ne.s32.totalorder %s93, %s94
    %p106 = scmp.eq.s32.totalorder %s16, 1
    %p107 = por %p105, %p106
    %p109 = scmp.ne.s32.totalorder %s94, %s108
    %p110 = scmp.eq.s32.totalorder %s16, 0
    %p111 = por %p109, %p110
    %s112 = ssub.s32 %s10, %s17
    %p113 = scmp.eq.s32.totalorder %s112, 0
    %s115 = sadd.s32 %s114, 1
    %s116 = scalar_select %p113, %s114, %s115
    %p119 = pneg %p113
    %p120 = scmp.eq.s32.totalorder %s10, 1
    %p121 = por %p119, %p120
    %p122 = scmp.ne.s32.totalorder %s114, %s117
    %p123 = scmp.eq.s32.totalorder %s10, 0
    %p124 = por %p122, %p123
    %p125 = scmp.ne.s32.totalorder %s114, %s117
    %p126 = scmp.eq.s32.totalorder %s15, 1
    %p127 = por %p125, %p126
    %p128 = scmp.ne.s32.totalorder %s117, %s118
    %p129 = scmp.eq.s32.totalorder %s15, 0
    %p130 = por %p128, %p129
    %p131 = scmp.ne.s32.totalorder %s117, %s118
    %p132 = scmp.eq.s32.totalorder %s16, 1
    %p133 = por %p131, %p132
    %p135 = scmp.ne.s32.totalorder %s118, %s134
    %p136 = scmp.eq.s32.totalorder %s16, 0
    %p137 = por %p135, %p136
    %p138 = scmp.le.s32.totalorder 1, %s10
    %p139 = scmp.lt.s32.totalorder %s10, 3
    %p140 = pnand %p138, %p139
    %p141 = pneg %p140
    // Predicated region
    $region9: #{bottleneck_forward.7} parent=5 // pred_check
      _
    $region10: #{bottleneck_forward.7} parent=5 // pred_check_branch
      %143 = sbr.rel (%p140) target = $region12
    $region11: #{bottleneck_forward.7} parent=5 // pred_region
      %s144 = ssub.s32 %s10, 1
      // Predicated region
      $region13: #{bottleneck_forward.7} parent=11 // pred_check
        %p145 = pneg %p83
      $region14: #{bottleneck_forward.7} parent=11 // pred_check_branch
        %147 = sbr.rel (%p145) target = $region16
      $region15: #{bottleneck_forward.7} parent=11 // pred_region
        _
      $region16: #{bottleneck_forward.7} parent=11 // pred_fallthru
        _
      // Predicated region
      $region17: #{bottleneck_forward.7} parent=11 // pred_check
        %p148 = pneg %p104
      $region18: #{bottleneck_forward.7} parent=11 // pred_check_branch
        %150 = sbr.rel (%p148) target = $region20
      $region19: #{bottleneck_forward.7} parent=11 // pred_region
        _
      $region20: #{bottleneck_forward.7} parent=11 // pred_fallthru
        _
    $region12: #{bottleneck_forward.7} parent=5 // pred_fallthru
      _
    %p151 = scmp.lt.s32.totalorder %s10, 2
    // Predicated region
    $region21: #{bottleneck_forward.7} parent=5 // pred_check
      %p152 = pneg %p151
    $region22: #{bottleneck_forward.7} parent=5 // pred_check_branch
      %154 = sbr.rel (%p152) target = $region24
    $region23: #{bottleneck_forward.7} parent=5 // pred_region
      // Predicated region
      $region25: #{bottleneck_forward.7} parent=23 // pred_check
        %p155 = pneg %p30
      $region26: #{bottleneck_forward.7} parent=23 // pred_check_branch
        %157 = sbr.rel (%p155) target = $region28
      $region27: #{bottleneck_forward.7} parent=23 // pred_region
        %s158 = smul.u32 32, %s10
        %p159 = scmp.lt.s32.totalorder %s158, 63
        %s160 = scalar_select %p159, %s158, 63
        %s161 = smul.addr %s160, 8
        %s162 = scalar_lea.vmem %s0, %s161
        %s163 = smul.u32 32, %s10
      $region28: #{bottleneck_forward.7} parent=23 // pred_fallthru
        _
      // Predicated region
      $region29: #{bottleneck_forward.7} parent=23 // pred_check
        %p164 = pneg %p56
      $region30: #{bottleneck_forward.7} parent=23 // pred_check_branch
        %166 = sbr.rel (%p164) target = $region32
      $region31: #{bottleneck_forward.7} parent=23 // pred_region
        %s167 = smul.u32 32, %s10
        %p168 = scmp.lt.s32.totalorder %s167, 63
        %s169 = scalar_select %p168, %s167, 63
        %s170 = smul.addr %s169, 8
        %s171 = scalar_lea.vmem %s1, %s170
        %s172 = smul.u32 32, %s10
      $region32: #{bottleneck_forward.7} parent=23 // pred_fallthru
        _
    $region24: #{bottleneck_forward.7} parent=5 // pred_fallthru
      _
    %p173 = scmp.le.s32.totalorder 1, %s10
    %p174 = scmp.lt.s32.totalorder %s10, 3
    %p175 = pnand %p173, %p174
    %p176 = pneg %p175
    // Predicated region
    $region33: #{bottleneck_forward.7} parent=5 // pred_check
      _
    $region34: #{bottleneck_forward.7} parent=5 // pred_check_branch
      %178 = sbr.rel (%p175) target = $region36
    $region35: #{bottleneck_forward.7} parent=5 // pred_region
      %s179 = ssub.s32 %s10, 1
      %s180 = smul.u32 32, %s15
      %p181 = scmp.lt.s32.totalorder %s180, 63
      %s182 = scalar_select %p181, %s180, 63
      %s183 = smul.addr %s182, 8
      %s184 = scalar_lea.vmem %s0, %s183
      %p185 = pneg %p36
      %p186 = pneg %p33
      %s187 = smul.u32 32, %s15
      %p188 = scmp.lt.s32.totalorder %s187, 63
      %s189 = scalar_select %p188, %s187, 63
      %s190 = smul.addr %s189, 8
      %s191 = scalar_lea.vmem %s1, %s190
      %p192 = pneg %p62
      %p193 = pneg %p59
      %p194 = pneg %p83
      %p195 = pneg %p80
      %p196 = pneg %p104
      %p197 = pneg %p101
      %p198 = pneg %p130
      %p199 = pneg %p127
      %s200 = smul.u32 32, %s15
      %p201 = scmp.lt.s32.totalorder %s200, 63
      %s202 = scalar_select %p201, %s200, 63
      %s203 = smul.addr %s202, 8
      %s204 = scalar_lea.vmem %s4, %s203
      %s205 = smul.u32 32, %s15
      %p206 = scmp.lt.s32.totalorder %s205, 63
      %s207 = scalar_select %p206, %s205, 63
      %s208 = smul.addr %s207, 8
      %s209 = scalar_lea.vmem %s0, %s208
      %s210 = smul.u32 32, %s15
      %s211 = smul.u32 32, %s15
      %p212 = scmp.lt.s32.totalorder %s211, 63
      %s213 = scalar_select %p212, %s211, 63
      %s214 = smul.addr %s213, 8
      %s215 = scalar_lea.vmem %s1, %s214
      %s216 = smul.u32 32, %s15
      %s217 = smul.u32 32, %s15
      %p218 = scmp.lt.s32.totalorder %s217, 63
      %s219 = scalar_select %p218, %s217, 63
      %s220 = smul.addr %s219, 8
      %s221 = scalar_lea.vmem %s4, %s220
      %s222 = smul.u32 32, %s15
      %v223 = vld [vmem:[%s209] sm:$0xff]
      %v224 = vld [vmem:[%s209 + $0x8] sm:$0xff]
      %v225 = vld [vmem:[%s209 + $0x10] sm:$0xff]
      %v226 = vld [vmem:[%s209 + $0x18] sm:$0xff]
      %v227 = vld [vmem:[%s209 + $0x20] sm:$0xff]
      %v228 = vld [vmem:[%s209 + $0x28] sm:$0xff]
      %v229 = vld [vmem:[%s209 + $0x30] sm:$0xff]
      %v230 = vld [vmem:[%s209 + $0x38] sm:$0xff]
      %v231 = vld [vmem:[%s209 + $0x40] sm:$0xff]
      %v232 = vld [vmem:[%s209 + $0x48] sm:$0xff]
      %v233 = vld [vmem:[%s209 + $0x50] sm:$0xff]
      %v234 = vld [vmem:[%s209 + $0x58] sm:$0xff]
      %v235 = vld [vmem:[%s209 + $0x60] sm:$0xff]
      %v236 = vld [vmem:[%s209 + $0x68] sm:$0xff]
      %v237 = vld [vmem:[%s209 + $0x70] sm:$0xff]
      %v238 = vld [vmem:[%s209 + $0x78] sm:$0xff]
      %v239 = vld [vmem:[%s209 + $0x80] sm:$0xff]
      %v240 = vld [vmem:[%s209 + $0x88] sm:$0xff]
      %v241 = vld [vmem:[%s209 + $0x90] sm:$0xff]
      %v242 = vld [vmem:[%s209 + $0x98] sm:$0xff]
      %v243 = vld [vmem:[%s209 + $0xa0] sm:$0xff]
      %v244 = vld [vmem:[%s209 + $0xa8] sm:$0xff]
      %v245 = vld [vmem:[%s209 + $0xb0] sm:$0xff]
      %v246 = vld [vmem:[%s209 + $0xb8] sm:$0xff]
      %v247 = vld [vmem:[%s209 + $0xc0] sm:$0xff]
      %v248 = vld [vmem:[%s209 + $0xc8] sm:$0xff]
      %v249 = vld [vmem:[%s209 + $0xd0] sm:$0xff]
      %v250 = vld [vmem:[%s209 + $0xd8] sm:$0xff]
      %v251 = vld [vmem:[%s209 + $0xe0] sm:$0xff]
      %v252 = vld [vmem:[%s209 + $0xe8] sm:$0xff]
      %v253 = vld [vmem:[%s209 + $0xf0] sm:$0xff]
      %v254 = vld [vmem:[%s209 + $0xf8] sm:$0xff]
      %v255 = vld [vmem:[%s2] sm:$0x1]
      %v257 = vperm.slane %v255, 0
      %v259 = vmul.f32 %v223, %v257
      %v260 = vmul.f32 %v224, %v257
      %v261 = vmul.f32 %v225, %v257
      %v262 = vmul.f32 %v226, %v257
      %v263 = vmul.f32 %v227, %v257
      %v264 = vmul.f32 %v228, %v257
      %v265 = vmul.f32 %v229, %v257
      %v266 = vmul.f32 %v230, %v257
      %v267 = vmul.f32 %v231, %v257
      %v268 = vmul.f32 %v232, %v257
      %v269 = vmul.f32 %v233, %v257
      %v270 = vmul.f32 %v234, %v257
      %v271 = vmul.f32 %v235, %v257
      %v272 = vmul.f32 %v236, %v257
      %v273 = vmul.f32 %v237, %v257
      %v274 = vmul.f32 %v238, %v257
      %v275 = vmul.f32 %v239, %v257
      %v276 = vmul.f32 %v240, %v257
      %v277 = vmul.f32 %v241, %v257
      %v278 = vmul.f32 %v242, %v257
      %v279 = vmul.f32 %v243, %v257
      %v280 = vmul.f32 %v244, %v257
      %v281 = vmul.f32 %v245, %v257
      %v282 = vmul.f32 %v246, %v257
      %v283 = vmul.f32 %v247, %v257
      %v284 = vmul.f32 %v248, %v257
      %v285 = vmul.f32 %v249, %v257
      %v286 = vmul.f32 %v250, %v257
      %v287 = vmul.f32 %v251, %v257
      %v288 = vmul.f32 %v252, %v257
      %v289 = vmul.f32 %v253, %v257
      %v290 = vmul.f32 %v254, %v257
      %v291 = vld [vmem:[%s3] sm:$0x1]
      %v293 = vperm.slane %v291, 0
      %v295 = vadd.f32 %v259, %v293
      %v296 = vadd.f32 %v260, %v293
      %v297 = vadd.f32 %v261, %v293
      %v298 = vadd.f32 %v262, %v293
      %v299 = vadd.f32 %v263, %v293
      %v300 = vadd.f32 %v264, %v293
      %v301 = vadd.f32 %v265, %v293
      %v302 = vadd.f32 %v266, %v293
      %v303 = vadd.f32 %v267, %v293
      %v304 = vadd.f32 %v268, %v293
      %v305 = vadd.f32 %v269, %v293
      %v306 = vadd.f32 %v270, %v293
      %v307 = vadd.f32 %v271, %v293
      %v308 = vadd.f32 %v272, %v293
      %v309 = vadd.f32 %v273, %v293
      %v310 = vadd.f32 %v274, %v293
      %v311 = vadd.f32 %v275, %v293
      %v312 = vadd.f32 %v276, %v293
      %v313 = vadd.f32 %v277, %v293
      %v314 = vadd.f32 %v278, %v293
      %v315 = vadd.f32 %v279, %v293
      %v316 = vadd.f32 %v280, %v293
      %v317 = vadd.f32 %v281, %v293
      %v318 = vadd.f32 %v282, %v293
      %v319 = vadd.f32 %v283, %v293
      %v320 = vadd.f32 %v284, %v293
      %v321 = vadd.f32 %v285, %v293
      %v322 = vadd.f32 %v286, %v293
      %v323 = vadd.f32 %v287, %v293
      %v324 = vadd.f32 %v288, %v293
      %v325 = vadd.f32 %v289, %v293
      %v326 = vadd.f32 %v290, %v293
      %v327 = vld [vmem:[%s215] sm:$0xff]
      %v328 = vld [vmem:[%s215 + $0x8] sm:$0xff]
      %v329 = vld [vmem:[%s215 + $0x10] sm:$0xff]
      %v330 = vld [vmem:[%s215 + $0x18] sm:$0xff]
      %v331 = vld [vmem:[%s215 + $0x20] sm:$0xff]
      %v332 = vld [vmem:[%s215 + $0x28] sm:$0xff]
      %v333 = vld [vmem:[%s215 + $0x30] sm:$0xff]
      %v334 = vld [vmem:[%s215 + $0x38] sm:$0xff]
      %v335 = vld [vmem:[%s215 + $0x40] sm:$0xff]
      %v336 = vld [vmem:[%s215 + $0x48] sm:$0xff]
      %v337 = vld [vmem:[%s215 + $0x50] sm:$0xff]
      %v338 = vld [vmem:[%s215 + $0x58] sm:$0xff]
      %v339 = vld [vmem:[%s215 + $0x60] sm:$0xff]
      %v340 = vld [vmem:[%s215 + $0x68] sm:$0xff]
      %v341 = vld [vmem:[%s215 + $0x70] sm:$0xff]
      %v342 = vld [vmem:[%s215 + $0x78] sm:$0xff]
      %v343 = vld [vmem:[%s215 + $0x80] sm:$0xff]
      %v344 = vld [vmem:[%s215 + $0x88] sm:$0xff]
      %v345 = vld [vmem:[%s215 + $0x90] sm:$0xff]
      %v346 = vld [vmem:[%s215 + $0x98] sm:$0xff]
      %v347 = vld [vmem:[%s215 + $0xa0] sm:$0xff]
      %v348 = vld [vmem:[%s215 + $0xa8] sm:$0xff]
      %v349 = vld [vmem:[%s215 + $0xb0] sm:$0xff]
      %v350 = vld [vmem:[%s215 + $0xb8] sm:$0xff]
      %v351 = vld [vmem:[%s215 + $0xc0] sm:$0xff]
      %v352 = vld [vmem:[%s215 + $0xc8] sm:$0xff]
      %v353 = vld [vmem:[%s215 + $0xd0] sm:$0xff]
      %v354 = vld [vmem:[%s215 + $0xd8] sm:$0xff]
      %v355 = vld [vmem:[%s215 + $0xe0] sm:$0xff]
      %v356 = vld [vmem:[%s215 + $0xe8] sm:$0xff]
      %v357 = vld [vmem:[%s215 + $0xf0] sm:$0xff]
      %v358 = vld [vmem:[%s215 + $0xf8] sm:$0xff]
      %v359 = vadd.f32 %v295, %v327
      %v360 = vadd.f32 %v296, %v328
      %v361 = vadd.f32 %v297, %v329
      %v362 = vadd.f32 %v298, %v330
      %v363 = vadd.f32 %v299, %v331
      %v364 = vadd.f32 %v300, %v332
      %v365 = vadd.f32 %v301, %v333
      %v366 = vadd.f32 %v302, %v334
      %v367 = vadd.f32 %v303, %v335
      %v368 = vadd.f32 %v304, %v336
      %v369 = vadd.f32 %v305, %v337
      %v370 = vadd.f32 %v306, %v338
      %v371 = vadd.f32 %v307, %v339
      %v372 = vadd.f32 %v308, %v340
      %v373 = vadd.f32 %v309, %v341
      %v374 = vadd.f32 %v310, %v342
      %v375 = vadd.f32 %v311, %v343
      %v376 = vadd.f32 %v312, %v344
      %v377 = vadd.f32 %v313, %v345
      %v378 = vadd.f32 %v314, %v346
      %v379 = vadd.f32 %v315, %v347
      %v380 = vadd.f32 %v316, %v348
      %v381 = vadd.f32 %v317, %v349
      %v382 = vadd.f32 %v318, %v350
      %v383 = vadd.f32 %v319, %v351
      %v384 = vadd.f32 %v320, %v352
      %v385 = vadd.f32 %v321, %v353
      %v386 = vadd.f32 %v322, %v354
      %v387 = vadd.f32 %v323, %v355
      %v388 = vadd.f32 %v324, %v356
      %v389 = vadd.f32 %v325, %v357
      %v390 = vadd.f32 %v326, %v358
      %v391 = vmax.f32 %v359, 0.0
      %v392 = vmax.f32 %v360, 0.0
      %v393 = vmax.f32 %v361, 0.0
      %v394 = vmax.f32 %v362, 0.0
      %v395 = vmax.f32 %v363, 0.0
      %v396 = vmax.f32 %v364, 0.0
      %v397 = vmax.f32 %v365, 0.0
      %v398 = vmax.f32 %v366, 0.0
      %v399 = vmax.f32 %v367, 0.0
      %v400 = vmax.f32 %v368, 0.0
      %v401 = vmax.f32 %v369, 0.0
      %v402 = vmax.f32 %v370, 0.0
      %v403 = vmax.f32 %v371, 0.0
      %v404 = vmax.f32 %v372, 0.0
      %v405 = vmax.f32 %v373, 0.0
      %v406 = vmax.f32 %v374, 0.0
      %v407 = vmax.f32 %v375, 0.0
      %v408 = vmax.f32 %v376, 0.0
      %v409 = vmax.f32 %v377, 0.0
      %v410 = vmax.f32 %v378, 0.0
      %v411 = vmax.f32 %v379, 0.0
      %v412 = vmax.f32 %v380, 0.0
      %v413 = vmax.f32 %v381, 0.0
      %v414 = vmax.f32 %v382, 0.0
      %v415 = vmax.f32 %v383, 0.0
      %v416 = vmax.f32 %v384, 0.0
      %v417 = vmax.f32 %v385, 0.0
      %v418 = vmax.f32 %v386, 0.0
      %v419 = vmax.f32 %v387, 0.0
      %v420 = vmax.f32 %v388, 0.0
      %v421 = vmax.f32 %v389, 0.0
      %v422 = vmax.f32 %v390, 0.0
      %vm423 = vcmask 130048
      %424 = vst.msk [vmem:[%s221] sm:$0xff] %vm423, %v391
      %425 = vst.msk [vmem:[%s221 + $0x8] sm:$0xff] %vm423, %v392
      %426 = vst.msk [vmem:[%s221 + $0x10] sm:$0xff] %vm423, %v393
      %427 = vst.msk [vmem:[%s221 + $0x18] sm:$0xff] %vm423, %v394
      %428 = vst.msk [vmem:[%s221 + $0x20] sm:$0xff] %vm423, %v395
      %429 = vst.msk [vmem:[%s221 + $0x28] sm:$0xff] %vm423, %v396
      %430 = vst.msk [vmem:[%s221 + $0x30] sm:$0xff] %vm423, %v397
      %431 = vst.msk [vmem:[%s221 + $0x38] sm:$0xff] %vm423, %v398
      %432 = vst.msk [vmem:[%s221 + $0x40] sm:$0xff] %vm423, %v399
      %433 = vst.msk [vmem:[%s221 + $0x48] sm:$0xff] %vm423, %v400
      %434 = vst.msk [vmem:[%s221 + $0x50] sm:$0xff] %vm423, %v401
      %435 = vst.msk [vmem:[%s221 + $0x58] sm:$0xff] %vm423, %v402
      %436 = vst.msk [vmem:[%s221 + $0x60] sm:$0xff] %vm423, %v403
      %437 = vst.msk [vmem:[%s221 + $0x68] sm:$0xff] %vm423, %v404
      %438 = vst.msk [vmem:[%s221 + $0x70] sm:$0xff] %vm423, %v405
      %439 = vst.msk [vmem:[%s221 + $0x78] sm:$0xff] %vm423, %v406
      %440 = vst.msk [vmem:[%s221 + $0x80] sm:$0xff] %vm423, %v407
      %441 = vst.msk [vmem:[%s221 + $0x88] sm:$0xff] %vm423, %v408
      %442 = vst.msk [vmem:[%s221 + $0x90] sm:$0xff] %vm423, %v409
      %443 = vst.msk [vmem:[%s221 + $0x98] sm:$0xff] %vm423, %v410
      %444 = vst.msk [vmem:[%s221 + $0xa0] sm:$0xff] %vm423, %v411
      %445 = vst.msk [vmem:[%s221 + $0xa8] sm:$0xff] %vm423, %v412
      %446 = vst.msk [vmem:[%s221 + $0xb0] sm:$0xff] %vm423, %v413
      %447 = vst.msk [vmem:[%s221 + $0xb8] sm:$0xff] %vm423, %v414
      %448 = vst.msk [vmem:[%s221 + $0xc0] sm:$0xff] %vm423, %v415
      %449 = vst.msk [vmem:[%s221 + $0xc8] sm:$0xff] %vm423, %v416
      %450 = vst.msk [vmem:[%s221 + $0xd0] sm:$0xff] %vm423, %v417
      %451 = vst.msk [vmem:[%s221 + $0xd8] sm:$0xff] %vm423, %v418
      %452 = vst.msk [vmem:[%s221 + $0xe0] sm:$0xff] %vm423, %v419
      %453 = vst.msk [vmem:[%s221 + $0xe8] sm:$0xff] %vm423, %v420
      %454 = vst.msk [vmem:[%s221 + $0xf0] sm:$0xff] %vm423, %v421
      %455 = vst.msk [vmem:[%s221 + $0xf8] sm:$0xff] %vm423, %v422
      %s456 = smul.u32 32, %s15
      %p457 = scmp.lt.s32.totalorder %s456, 63
      %s458 = scalar_select %p457, %s456, 63
      %s459 = smul.addr %s458, 8
      %s460 = scalar_lea.vmem %s4, %s459
      // Predicated region
      $region37: #{bottleneck_forward.7} parent=35 // pred_check
        %p461 = pneg %p127
      $region38: #{bottleneck_forward.7} parent=35 // pred_check_branch
        %463 = sbr.rel (%p461) target = $region40
      $region39: #{bottleneck_forward.7} parent=35 // pred_region
        %s464 = smul.u32 32, %s15
      $region40: #{bottleneck_forward.7} parent=35 // pred_fallthru
        _
    $region36: #{bottleneck_forward.7} parent=5 // pred_fallthru
      _
    %p465 = scmp.le.s32.totalorder 2, %s10
    // Predicated region
    $region41: #{bottleneck_forward.7} parent=5 // pred_check
      %p466 = pneg %p465
    $region42: #{bottleneck_forward.7} parent=5 // pred_check_branch
      %468 = sbr.rel (%p466) target = $region44
    $region43: #{bottleneck_forward.7} parent=5 // pred_region
      %s469 = ssub.s32 %s10, 2
      // Predicated region
      $region45: #{bottleneck_forward.7} parent=43 // pred_check
        %p470 = pneg %p133
      $region46: #{bottleneck_forward.7} parent=43 // pred_check_branch
        %472 = sbr.rel (%p470) target = $region48
      $region47: #{bottleneck_forward.7} parent=43 // pred_region
        %s473 = smul.u32 32, %s16
        %p474 = scmp.lt.s32.totalorder %s473, 63
        %s475 = scalar_select %p474, %s473, 63
        %s476 = smul.addr %s475, 8
        %s477 = scalar_lea.vmem %s4, %s476
      $region48: #{bottleneck_forward.7} parent=43 // pred_fallthru
        _
    $region44: #{bottleneck_forward.7} parent=5 // pred_fallthru
      _
  $region6: #{bottleneck_forward.7} parent=0 // loop_footer
    %s14 = sadd.s32 1, %s10
  $region7: #{bottleneck_forward.7} parent=0 // loop_footer_branch
    %9 = sbr.rel target = $region3
  $region8: #{bottleneck_forward.7} parent=0 // loop_exit
    _

// kernel: bottleneck_forward.6
$region0: #{bottleneck_forward.6}
  #allocation0 [shape = 'u32[]', space=smem, size = 0x4, offset = 0x4, fixed_abs, tag = 'smem constant byte address 0x4 - core index']
  #allocation1 [shape = 'u32[72,128]{1,0:T(1,128)}', space=vmem, size = 0x9000, scoped, tag = 'internal scratch']
  %s0 = inlined_call_operand.vmem [shape: f32[512,4], index: 0, kind: input, shape index: {}]
  %s1 = inlined_call_operand.vmem [shape: f32[1,4], index: 1, kind: input, shape index: {}]
  %s2 = inlined_call_operand.vmem [shape: f32[1,4], index: 2, kind: input, shape index: {}]
  %s3 = inlined_call_operand.vmem [shape: bf16[4,16], index: 3, kind: input, shape index: {}]
  %s4 = inlined_call_operand.vmem [shape: f32[512,16], index: 4, kind: output, shape index: {0}]
  %s5 = inlined_call_operand.vmem [shape: f32[2,2,16], index: 5, kind: output, shape index: {1}]
  %6 = xla_tuple %s4, %s5
  %s7 = sld [smem:[#allocation0]]
  $region57: #{bottleneck_forward.6} parent=0
    _
  %s9 = ssub.s32 1, %s7
  %s10 = scalar_select 0, %s9, %s7
  loop: start=0, step=1, limit=4
  $region2: #{bottleneck_forward.6} parent=0 // loop_pre_header
    _
  $region3: #{bottleneck_forward.6} parent=0 // loop_header
    %s12 = sphi 0, %s16
    %p13 = scmp.ge.s32.totalorder %s12, 4
    %s22 = sphi 0, %s24
    %s25 = sphi 0, %s22
    %s26 = sphi 0, %s25
    %s42 = sphi 0, %s26
    %s46 = sphi 0, %s46
    %s48 = sphi 0, %s46
    %s49 = sphi 0, %s48
    %s63 = sphi 0, %s49
    %s67 = sphi 0, %s67
    %s69 = sphi 0, %s67
    %s70 = sphi 0, %s69
    %s84 = sphi 0, %s70
    %s88 = sphi 0, %s88
    %s90 = sphi 0, %s88
    %s91 = sphi 0, %s90
    %s105 = sphi 0, %s91
    %s111 = sphi 0, %s113
    %s114 = sphi 0, %s111
    %s115 = sphi 0, %s114
    %s131 = sphi 0, %s115
    %s137 = sphi 0, %s139
    %s140 = sphi 0, %s137
    %s141 = sphi 0, %s140
    %s157 = sphi 0, %s141
  $region4: #{bottleneck_forward.6} parent=0 // loop_header_branch
    %15 = sbr.rel (%p13) target = $region8
  $region5: #{bottleneck_forward.6} parent=0 // loop_body
    %s17 = ssub.s32 %s12, 1
    %s18 = ssub.s32 %s12, 2
    %s19 = sadd.s32 %s12, 1
    %s20 = ssub.s32 %s12, %s19
    %p21 = scmp.eq.s32.totalorder %s20, 0
    %s23 = sadd.s32 %s22, 1
    %s24 = scalar_select %p21, %s22, %s23
    %p27 = pneg %p21
    %p28 = scmp.eq.s32.totalorder %s12, 1
    %p29 = por %p27, %p28
    %p30 = scmp.ne.s32.totalorder %s22, %s25
    %p31 = scmp.eq.s32.totalorder %s12, 0
    %p32 = por %p30, %p31
    %p33 = scmp.ne.s32.totalorder %s22, %s25
    %p34 = scmp.eq.s32.totalorder %s17, 1
    %p35 = por %p33, %p34
    %p36 = scmp.ne.s32.totalorder %s25, %s26
    %p37 = scmp.eq.s32.totalorder %s17, 0
    %p38 = por %p36, %p37
    %p39 = scmp.ne.s32.totalorder %s25, %s26
    %p40 = scmp.eq.s32.totalorder %s18, 1
    %p41 = por %p39, %p40
    %p43 = scmp.ne.s32.totalorder %s26, %s42
    %p44 = scmp.eq.s32.totalorder %s18, 0
    %p45 = por %p43, %p44
    %s47 = sadd.s32 %s46, 1
    %p50 = scmp.eq.s32.totalorder %s12, 1
    %p51 = scmp.ne.s32.totalorder %s46, %s48
    %p52 = scmp.eq.s32.totalorder %s12, 0
    %p53 = por %p51, %p52
    %p54 = scmp.ne.s32.totalorder %s46, %s48
    %p55 = scmp.eq.s32.totalorder %s17, 1
    %p56 = por %p54, %p55
    %p57 = scmp.ne.s32.totalorder %s48, %s49
    %p58 = scmp.eq.s32.totalorder %s17, 0
    %p59 = por %p57, %p58
    %p60 = scmp.ne.s32.totalorder %s48, %s49
    %p61 = scmp.eq.s32.totalorder %s18, 1
    %p62 = por %p60, %p61
    %p64 = scmp.ne.s32.totalorder %s49, %s63
    %p65 = scmp.eq.s32.totalorder %s18, 0
    %p66 = por %p64, %p65
    %s68 = sadd.s32 %s67, 1
    %p71 = scmp.eq.s32.totalorder %s12, 1
    %p72 = scmp.ne.s32.totalorder %s67, %s69
    %p73 = scmp.eq.s32.totalorder %s12, 0
    %p74 = por %p72, %p73
    %p75 = scmp.ne.s32.totalorder %s67, %s69
    %p76 = scmp.eq.s32.totalorder %s17, 1
    %p77 = por %p75, %p76
    %p78 = scmp.ne.s32.totalorder %s69, %s70
    %p79 = scmp.eq.s32.totalorder %s17, 0
    %p80 = por %p78, %p79
    %p81 = scmp.ne.s32.totalorder %s69, %s70
    %p82 = scmp.eq.s32.totalorder %s18, 1
    %p83 = por %p81, %p82
    %p85 = scmp.ne.s32.totalorder %s70, %s84
    %p86 = scmp.eq.s32.totalorder %s18, 0
    %p87 = por %p85, %p86
    %s89 = sadd.s32 %s88, 1
    %p92 = scmp.eq.s32.totalorder %s12, 1
    %p93 = scmp.ne.s32.totalorder %s88, %s90
    %p94 = scmp.eq.s32.totalorder %s12, 0
    %p95 = por %p93, %p94
    %p96 = scmp.ne.s32.totalorder %s88, %s90
    %p97 = scmp.eq.s32.totalorder %s17, 1
    %p98 = por %p96, %p97
    %p99 = scmp.ne.s32.totalorder %s90, %s91
    %p100 = scmp.eq.s32.totalorder %s17, 0
    %p101 = por %p99, %p100
    %p102 = scmp.ne.s32.totalorder %s90, %s91
    %p103 = scmp.eq.s32.totalorder %s18, 1
    %p104 = por %p102, %p103
    %p106 = scmp.ne.s32.totalorder %s91, %s105
    %p107 = scmp.eq.s32.totalorder %s18, 0
    %p108 = por %p106, %p107
    %s109 = ssub.s32 %s12, %s19
    %p110 = scmp.eq.s32.totalorder %s109, 0
    %s112 = sadd.s32 %s111, 1
    %s113 = scalar_select %p110, %s111, %s112
    %p116 = pneg %p110
    %p117 = scmp.eq.s32.totalorder %s12, 1
    %p118 = por %p116, %p117
    %p119 = scmp.ne.s32.totalorder %s111, %s114
    %p120 = scmp.eq.s32.totalorder %s12, 0
    %p121 = por %p119, %p120
    %p122 = scmp.ne.s32.totalorder %s111, %s114
    %p123 = scmp.eq.s32.totalorder %s17, 1
    %p124 = por %p122, %p123
    %p125 = scmp.ne.s32.totalorder %s114, %s115
    %p126 = scmp.eq.s32.totalorder %s17, 0
    %p127 = por %p125, %p126
    %p128 = scmp.ne.s32.totalorder %s114, %s115
    %p129 = scmp.eq.s32.totalorder %s18, 1
    %p130 = por %p128, %p129
    %p132 = scmp.ne.s32.totalorder %s115, %s131
    %p133 = scmp.eq.s32.totalorder %s18, 0
    %p134 = por %p132, %p133
    %s135 = ssub.s32 %s12, %s19
    %p136 = scmp.eq.s32.totalorder %s135, 0
    %s138 = sadd.s32 %s137, 1
    %s139 = scalar_select %p136, %s137, %s138
    %p142 = pneg %p136
    %p143 = scmp.eq.s32.totalorder %s12, 1
    %p144 = por %p142, %p143
    %p145 = scmp.ne.s32.totalorder %s137, %s140
    %p146 = scmp.eq.s32.totalorder %s12, 0
    %p147 = por %p145, %p146
    %p148 = scmp.ne.s32.totalorder %s137, %s140
    %p149 = scmp.eq.s32.totalorder %s17, 1
    %p150 = por %p148, %p149
    %p151 = scmp.ne.s32.totalorder %s140, %s141
    %p152 = scmp.eq.s32.totalorder %s17, 0
    %p153 = por %p151, %p152
    %p154 = scmp.ne.s32.totalorder %s140, %s141
    %p155 = scmp.eq.s32.totalorder %s18, 1
    %p156 = por %p154, %p155
    %p158 = scmp.ne.s32.totalorder %s141, %s157
    %p159 = scmp.eq.s32.totalorder %s18, 0
    %p160 = por %p158, %p159
    %p161 = scmp.le.s32.totalorder 1, %s12
    %p162 = scmp.lt.s32.totalorder %s12, 3
    %p163 = pnand %p161, %p162
    %p164 = pneg %p163
    // Predicated region
    $region9: #{bottleneck_forward.6} parent=5 // pred_check
      _
    $region10: #{bottleneck_forward.6} parent=5 // pred_check_branch
      %166 = sbr.rel (%p163) target = $region12
    $region11: #{bottleneck_forward.6} parent=5 // pred_region
      %s167 = ssub.s32 %s12, 1
      // Predicated region
      $region13: #{bottleneck_forward.6} parent=11 // pred_check
        %p168 = pneg %p59
      $region14: #{bottleneck_forward.6} parent=11 // pred_check_branch
        %170 = sbr.rel (%p168) target = $region16
      $region15: #{bottleneck_forward.6} parent=11 // pred_region
        _
      $region16: #{bottleneck_forward.6} parent=11 // pred_fallthru
        _
      // Predicated region
      $region17: #{bottleneck_forward.6} parent=11 // pred_check
        %p171 = pneg %p80
      $region18: #{bottleneck_forward.6} parent=11 // pred_check_branch
        %173 = sbr.rel (%p171) target = $region20
      $region19: #{bottleneck_forward.6} parent=11 // pred_region
        _
      $region20: #{bottleneck_forward.6} parent=11 // pred_fallthru
        _
      // Predicated region
      $region21: #{bottleneck_forward.6} parent=11 // pred_check
        %p174 = pneg %p101
      $region22: #{bottleneck_forward.6} parent=11 // pred_check_branch
        %176 = sbr.rel (%p174) target = $region24
      $region23: #{bottleneck_forward.6} parent=11 // pred_region
        _
      $region24: #{bottleneck_forward.6} parent=11 // pred_fallthru
        _
    $region12: #{bottleneck_forward.6} parent=5 // pred_fallthru
      _
    %p177 = scmp.lt.s32.totalorder %s12, 2
    // Predicated region
    $region25: #{bottleneck_forward.6} parent=5 // pred_check
      %p178 = pneg %p177
    $region26: #{bottleneck_forward.6} parent=5 // pred_check_branch
      %180 = sbr.rel (%p178) target = $region28
    $region27: #{bottleneck_forward.6} parent=5 // pred_region
      // Predicated region
      $region29: #{bottleneck_forward.6} parent=27 // pred_check
        %p181 = pneg %p32
      $region30: #{bottleneck_forward.6} parent=27 // pred_check_branch
        %183 = sbr.rel (%p181) target = $region32
      $region31: #{bottleneck_forward.6} parent=27 // pred_region
        %s184 = smul.u32 32, %s12
        %p185 = scmp.lt.s32.totalorder %s184, 63
        %s186 = scalar_select %p185, %s184, 63
        %s187 = smul.addr %s186, 8
        %s188 = scalar_lea.vmem %s0, %s187
        %s189 = smul.u32 32, %s12
      $region32: #{bottleneck_forward.6} parent=27 // pred_fallthru
        _
    $region28: #{bottleneck_forward.6} parent=5 // pred_fallthru
      _
    %p190 = scmp.le.s32.totalorder 1, %s12
    %p191 = scmp.lt.s32.totalorder %s12, 3
    %p192 = pnand %p190, %p191
    %p193 = pneg %p192
    // Predicated region
    $region33: #{bottleneck_forward.6} parent=5 // pred_check
      _
    $region34: #{bottleneck_forward.6} parent=5 // pred_check_branch
      %195 = sbr.rel (%p192) target = $region36
    $region35: #{bottleneck_forward.6} parent=5 // pred_region
      %s196 = ssub.s32 %s12, 1
      %s197 = smul.u32 32, %s17
      %p198 = scmp.lt.s32.totalorder %s197, 63
      %s199 = scalar_select %p198, %s197, 63
      %s200 = smul.addr %s199, 8
      %s201 = scalar_lea.vmem %s0, %s200
      %p202 = pneg %p38
      %p203 = pneg %p35
      %p204 = pneg %p59
      %p205 = pneg %p56
      %p206 = pneg %p80
      %p207 = pneg %p77
      %p208 = pneg %p101
      %p209 = pneg %p98
      %p210 = pneg %p127
      %p211 = pneg %p124
      %s212 = smul.u32 32, %s17
      %p213 = scmp.lt.s32.totalorder %s212, 63
      %s214 = scalar_select %p213, %s212, 63
      %s215 = smul.addr %s214, 8
      %s216 = scalar_lea.vmem %s4, %s215
      %p217 = pneg %p153
      %p218 = pneg %p150
      %p219 = scmp.lt.s32.totalorder %s17, 1
      %s220 = scalar_select %p219, %s17, 1
      %s221 = smul.addr %s220, 2
      %s222 = scalar_lea.vmem %s5, %s221
      %s223 = smul.u32 32, %s17
      %p224 = scmp.lt.s32.totalorder %s223, 63
      %s225 = scalar_select %p224, %s223, 63
      %s226 = smul.addr %s225, 8
      %s227 = scalar_lea.vmem %s0, %s226
      %s228 = smul.u32 32, %s17
      %s229 = smul.u32 32, %s17
      %p230 = scmp.lt.s32.totalorder %s229, 63
      %s231 = scalar_select %p230, %s229, 63
      %s232 = smul.addr %s231, 8
      %s233 = scalar_lea.vmem %s4, %s232
      %s234 = smul.u32 32, %s17
      %p235 = scmp.lt.s32.totalorder %s17, 1
      %s236 = scalar_select %p235, %s17, 1
      %s237 = smul.addr %s236, 2
      %s238 = scalar_lea.vmem %s5, %s237
      %v240 = vld [vmem:[%s227] sm:$0xff]
      %v241 = vld [vmem:[%s227 + $0x8] sm:$0xff]
      %v242 = vld [vmem:[%s227 + $0x10] sm:$0xff]
      %v243 = vld [vmem:[%s227 + $0x18] sm:$0xff]
      %v244 = vld [vmem:[%s227 + $0x20] sm:$0xff]
      %v245 = vld [vmem:[%s227 + $0x28] sm:$0xff]
      %v246 = vld [vmem:[%s227 + $0x30] sm:$0xff]
      %v247 = vld [vmem:[%s227 + $0x38] sm:$0xff]
      %v248 = vld [vmem:[%s227 + $0x40] sm:$0xff]
      %v249 = vld [vmem:[%s227 + $0x48] sm:$0xff]
      %v250 = vld [vmem:[%s227 + $0x50] sm:$0xff]
      %v251 = vld [vmem:[%s227 + $0x58] sm:$0xff]
      %v252 = vld [vmem:[%s227 + $0x60] sm:$0xff]
      %v253 = vld [vmem:[%s227 + $0x68] sm:$0xff]
      %v254 = vld [vmem:[%s227 + $0x70] sm:$0xff]
      %v255 = vld [vmem:[%s227 + $0x78] sm:$0xff]
      %v256 = vld [vmem:[%s227 + $0x80] sm:$0xff]
      %v257 = vld [vmem:[%s227 + $0x88] sm:$0xff]
      %v258 = vld [vmem:[%s227 + $0x90] sm:$0xff]
      %v259 = vld [vmem:[%s227 + $0x98] sm:$0xff]
      %v260 = vld [vmem:[%s227 + $0xa0] sm:$0xff]
      %v261 = vld [vmem:[%s227 + $0xa8] sm:$0xff]
      %v262 = vld [vmem:[%s227 + $0xb0] sm:$0xff]
      %v263 = vld [vmem:[%s227 + $0xb8] sm:$0xff]
      %v264 = vld [vmem:[%s227 + $0xc0] sm:$0xff]
      %v265 = vld [vmem:[%s227 + $0xc8] sm:$0xff]
      %v266 = vld [vmem:[%s227 + $0xd0] sm:$0xff]
      %v267 = vld [vmem:[%s227 + $0xd8] sm:$0xff]
      %v268 = vld [vmem:[%s227 + $0xe0] sm:$0xff]
      %v269 = vld [vmem:[%s227 + $0xe8] sm:$0xff]
      %v270 = vld [vmem:[%s227 + $0xf0] sm:$0xff]
      %v271 = vld [vmem:[%s227 + $0xf8] sm:$0xff]
      %v272 = vld [vmem:[%s1] sm:$0x1]
      %v274 = vperm.slane %v272, 0
      %v276 = vmul.f32 %v240, %v274
      %v277 = vmul.f32 %v241, %v274
      %v278 = vmul.f32 %v242, %v274
      %v279 = vmul.f32 %v243, %v274
      %v280 = vmul.f32 %v244, %v274
      %v281 = vmul.f32 %v245, %v274
      %v282 = vmul.f32 %v246, %v274
      %v283 = vmul.f32 %v247, %v274
      %v284 = vmul.f32 %v248, %v274
      %v285 = vmul.f32 %v249, %v274
      %v286 = vmul.f32 %v250, %v274
      %v287 = vmul.f32 %v251, %v274
      %v288 = vmul.f32 %v252, %v274
      %v289 = vmul.f32 %v253, %v274
      %v290 = vmul.f32 %v254, %v274
      %v291 = vmul.f32 %v255, %v274
      %v292 = vmul.f32 %v256, %v274
      %v293 = vmul.f32 %v257, %v274
      %v294 = vmul.f32 %v258, %v274
      %v295 = vmul.f32 %v259, %v274
      %v296 = vmul.f32 %v260, %v274
      %v297 = vmul.f32 %v261, %v274
      %v298 = vmul.f32 %v262, %v274
      %v299 = vmul.f32 %v263, %v274
      %v300 = vmul.f32 %v264, %v274
      %v301 = vmul.f32 %v265, %v274
      %v302 = vmul.f32 %v266, %v274
      %v303 = vmul.f32 %v267, %v274
      %v304 = vmul.f32 %v268, %v274
      %v305 = vmul.f32 %v269, %v274
      %v306 = vmul.f32 %v270, %v274
      %v307 = vmul.f32 %v271, %v274
      %v308 = vld [vmem:[%s2] sm:$0x1]
      %v310 = vperm.slane %v308, 0
      %v312 = vadd.f32 %v276, %v310
      %v313 = vadd.f32 %v277, %v310
      %v314 = vadd.f32 %v278, %v310
      %v315 = vadd.f32 %v279, %v310
      %v316 = vadd.f32 %v280, %v310
      %v317 = vadd.f32 %v281, %v310
      %v318 = vadd.f32 %v282, %v310
      %v319 = vadd.f32 %v283, %v310
      %v320 = vadd.f32 %v284, %v310
      %v321 = vadd.f32 %v285, %v310
      %v322 = vadd.f32 %v286, %v310
      %v323 = vadd.f32 %v287, %v310
      %v324 = vadd.f32 %v288, %v310
      %v325 = vadd.f32 %v289, %v310
      %v326 = vadd.f32 %v290, %v310
      %v327 = vadd.f32 %v291, %v310
      %v328 = vadd.f32 %v292, %v310
      %v329 = vadd.f32 %v293, %v310
      %v330 = vadd.f32 %v294, %v310
      %v331 = vadd.f32 %v295, %v310
      %v332 = vadd.f32 %v296, %v310
      %v333 = vadd.f32 %v297, %v310
      %v334 = vadd.f32 %v298, %v310
      %v335 = vadd.f32 %v299, %v310
      %v336 = vadd.f32 %v300, %v310
      %v337 = vadd.f32 %v301, %v310
      %v338 = vadd.f32 %v302, %v310
      %v339 = vadd.f32 %v303, %v310
      %v340 = vadd.f32 %v304, %v310
      %v341 = vadd.f32 %v305, %v310
      %v342 = vadd.f32 %v306, %v310
      %v343 = vadd.f32 %v307, %v310
      %v344 = vmax.f32 %v312, 0.0
      %v345 = vmax.f32 %v313, 0.0
      %v346 = vmax.f32 %v314, 0.0
      %v347 = vmax.f32 %v315, 0.0
      %v348 = vmax.f32 %v316, 0.0
      %v349 = vmax.f32 %v317, 0.0
      %v350 = vmax.f32 %v318, 0.0
      %v351 = vmax.f32 %v319, 0.0
      %v352 = vmax.f32 %v320, 0.0
      %v353 = vmax.f32 %v321, 0.0
      %v354 = vmax.f32 %v322, 0.0
      %v355 = vmax.f32 %v323, 0.0
      %v356 = vmax.f32 %v324, 0.0
      %v357 = vmax.f32 %v325, 0.0
      %v358 = vmax.f32 %v326, 0.0
      %v359 = vmax.f32 %v327, 0.0
      %v360 = vmax.f32 %v328, 0.0
      %v361 = vmax.f32 %v329, 0.0
      %v362 = vmax.f32 %v330, 0.0
      %v363 = vmax.f32 %v331, 0.0
      %v364 = vmax.f32 %v332, 0.0
      %v365 = vmax.f32 %v333, 0.0
      %v366 = vmax.f32 %v334, 0.0
      %v367 = vmax.f32 %v335, 0.0
      %v368 = vmax.f32 %v336, 0.0
      %v369 = vmax.f32 %v337, 0.0
      %v370 = vmax.f32 %v338, 0.0
      %v371 = vmax.f32 %v339, 0.0
      %v372 = vmax.f32 %v340, 0.0
      %v373 = vmax.f32 %v341, 0.0
      %v374 = vmax.f32 %v342, 0.0
      %v375 = vmax.f32 %v343, 0.0
      %v376 = vpack.c.bf16 %v345, %v344
      %v377 = vpack.c.bf16 %v347, %v346
      %v378 = vpack.c.bf16 %v349, %v348
      %v379 = vpack.c.bf16 %v351, %v350
      %v380 = vpack.c.bf16 %v353, %v352
      %v381 = vpack.c.bf16 %v355, %v354
      %v382 = vpack.c.bf16 %v357, %v356
      %v383 = vpack.c.bf16 %v359, %v358
      %v384 = vpack.c.bf16 %v361, %v360
      %v385 = vpack.c.bf16 %v363, %v362
      %v386 = vpack.c.bf16 %v365, %v364
      %v387 = vpack.c.bf16 %v367, %v366
      %v388 = vpack.c.bf16 %v369, %v368
      %v389 = vpack.c.bf16 %v371, %v370
      %v390 = vpack.c.bf16 %v373, %v372
      %v391 = vpack.c.bf16 %v375, %v374
      %v392 = vld [vmem:[%s3] sm:$0x3]
      %vm393 = vcmask 31744
      %v395 = vsel %vm393, %v376, 0
      %v398 = vsel %vm393, %v377, 0
      %v401 = vsel %vm393, %v378, 0
      %v404 = vsel %vm393, %v379, 0
      %v407 = vsel %vm393, %v380, 0
      %v410 = vsel %vm393, %v381, 0
      %v413 = vsel %vm393, %v382, 0
      %v416 = vsel %vm393, %v383, 0
      %v419 = vsel %vm393, %v384, 0
      %v422 = vsel %vm393, %v385, 0
      %v425 = vsel %vm393, %v386, 0
      %v428 = vsel %vm393, %v387, 0
      %v431 = vsel %vm393, %v388, 0
      %v434 = vsel %vm393, %v389, 0
      %v437 = vsel %vm393, %v390, 0
      %v440 = vsel %vm393, %v391, 0
      %vm442 = vcmask 1041408
      %v444 = vsel %vm442, %v392, 0
      %446 = vmatpush.bf16.msra.mxu0 0
      %447 = vmatpush.bf16.msra.mxu0 0
      %448 = vmatpush.bf16.msra.mxu0 0
      %449 = vmatpush.bf16.msra.mxu0 0
      %450 = vmatpush.bf16.msra.mxu0 0
      %451 = vmatpush.bf16.msra.mxu0 0
      %452 = vmatpush.bf16.msra.mxu0 0
      %453 = vmatpush.bf16.msra.mxu0 %v444
      %454 = vmatmul.bf16.gmra.mxu0 %v395
      %v455 = vpop.f32.mrf.mxu0
      %v456 = vadd.f32 0.0, %v455
      %v457 = vpop.f32.mrf.mxu0
      %v458 = vadd.f32 0.0, %v457
      %459 = vmatmul.bf16.gmra.mxu0 %v398
      %v460 = vpop.f32.mrf.mxu0
      %v461 = vadd.f32 0.0, %v460
      %v462 = vpop.f32.mrf.mxu0
      %v463 = vadd.f32 0.0, %v462
      %464 = vmatmul.bf16.gmra.mxu0 %v401
      %v465 = vpop.f32.mrf.mxu0
      %v466 = vadd.f32 0.0, %v465
      %v467 = vpop.f32.mrf.mxu0
      %v468 = vadd.f32 0.0, %v467
      %469 = vmatmul.bf16.gmra.mxu0 %v404
      %v470 = vpop.f32.mrf.mxu0
      %v471 = vadd.f32 0.0, %v470
      %v472 = vpop.f32.mrf.mxu0
      %v473 = vadd.f32 0.0, %v472
      %474 = vmatmul.bf16.gmra.mxu0 %v407
      %v475 = vpop.f32.mrf.mxu0
      %v476 = vadd.f32 0.0, %v475
      %v477 = vpop.f32.mrf.mxu0
      %v478 = vadd.f32 0.0, %v477
      %479 = vmatmul.bf16.gmra.mxu0 %v410
      %v480 = vpop.f32.mrf.mxu0
      %v481 = vadd.f32 0.0, %v480
      %v482 = vpop.f32.mrf.mxu0
      %v483 = vadd.f32 0.0, %v482
      %484 = vmatmul.bf16.gmra.mxu0 %v413
      %v485 = vpop.f32.mrf.mxu0
      %v486 = vadd.f32 0.0, %v485
      %v487 = vpop.f32.mrf.mxu0
      %v488 = vadd.f32 0.0, %v487
      %489 = vmatmul.bf16.gmra.mxu0 %v416
      %v490 = vpop.f32.mrf.mxu0
      %v491 = vadd.f32 0.0, %v490
      %v492 = vpop.f32.mrf.mxu0
      %v493 = vadd.f32 0.0, %v492
      %494 = vmatmul.bf16.gmra.mxu0 %v419
      %v495 = vpop.f32.mrf.mxu0
      %v496 = vadd.f32 0.0, %v495
      %v497 = vpop.f32.mrf.mxu0
      %v498 = vadd.f32 0.0, %v497
      %499 = vmatmul.bf16.gmra.mxu0 %v422
      %v500 = vpop.f32.mrf.mxu0
      %v501 = vadd.f32 0.0, %v500
      %v502 = vpop.f32.mrf.mxu0
      %v503 = vadd.f32 0.0, %v502
      %504 = vmatmul.bf16.gmra.mxu0 %v425
      %v505 = vpop.f32.mrf.mxu0
      %v506 = vadd.f32 0.0, %v505
      %v507 = vpop.f32.mrf.mxu0
      %v508 = vadd.f32 0.0, %v507
      %509 = vmatmul.bf16.gmra.mxu0 %v428
      %v510 = vpop.f32.mrf.mxu0
      %v511 = vadd.f32 0.0, %v510
      %v512 = vpop.f32.mrf.mxu0
      %v513 = vadd.f32 0.0, %v512
      %514 = vmatmul.bf16.gmra.mxu0 %v431
      %v515 = vpop.f32.mrf.mxu0
      %v516 = vadd.f32 0.0, %v515
      %v517 = vpop.f32.mrf.mxu0
      %v518 = vadd.f32 0.0, %v517
      %519 = vmatmul.bf16.gmra.mxu0 %v434
      %v520 = vpop.f32.mrf.mxu0
      %v521 = vadd.f32 0.0, %v520
      %v522 = vpop.f32.mrf.mxu0
      %v523 = vadd.f32 0.0, %v522
      %524 = vmatmul.bf16.gmra.mxu0 %v437
      %v525 = vpop.f32.mrf.mxu0
      %v526 = vadd.f32 0.0, %v525
      %v527 = vpop.f32.mrf.mxu0
      %v528 = vadd.f32 0.0, %v527
      %529 = vmatmul.bf16.gmra.mxu0 %v440
      %v530 = vpop.f32.mrf.mxu0
      %v531 = vadd.f32 0.0, %v530
      %v532 = vpop.f32.mrf.mxu0
      %v533 = vadd.f32 0.0, %v532
      %534 = vdwg.mxu0
      %vm535 = vcmask 130048
      %536 = vst.msk [vmem:[%s233] sm:$0xff] %vm535, %v456
      %537 = vst.msk [vmem:[%s233 + $0x8] sm:$0xff] %vm535, %v458
      %538 = vst.msk [vmem:[%s233 + $0x10] sm:$0xff] %vm535, %v461
      %539 = vst.msk [vmem:[%s233 + $0x18] sm:$0xff] %vm535, %v463
      %540 = vst.msk [vmem:[%s233 + $0x20] sm:$0xff] %vm535, %v466
      %541 = vst.msk [vmem:[%s233 + $0x28] sm:$0xff] %vm535, %v468
      %542 = vst.msk [vmem:[%s233 + $0x30] sm:$0xff] %vm535, %v471
      %543 = vst.msk [vmem:[%s233 + $0x38] sm:$0xff] %vm535, %v473
      %544 = vst.msk [vmem:[%s233 + $0x40] sm:$0xff] %vm535, %v476
      %545 = vst.msk [vmem:[%s233 + $0x48] sm:$0xff] %vm535, %v478
      %546 = vst.msk [vmem:[%s233 + $0x50] sm:$0xff] %vm535, %v481
      %547 = vst.msk [vmem:[%s233 + $0x58] sm:$0xff] %vm535, %v483
      %548 = vst.msk [vmem:[%s233 + $0x60] sm:$0xff] %vm535, %v486
      %549 = vst.msk [vmem:[%s233 + $0x68] sm:$0xff] %vm535, %v488
      %550 = vst.msk [vmem:[%s233 + $0x70] sm:$0xff] %vm535, %v491
      %551 = vst.msk [vmem:[%s233 + $0x78] sm:$0xff] %vm535, %v493
      %552 = vst.msk [vmem:[%s233 + $0x80] sm:$0xff] %vm535, %v496
      %553 = vst.msk [vmem:[%s233 + $0x88] sm:$0xff] %vm535, %v498
      %554 = vst.msk [vmem:[%s233 + $0x90] sm:$0xff] %vm535, %v501
      %555 = vst.msk [vmem:[%s233 + $0x98] sm:$0xff] %vm535, %v503
      %556 = vst.msk [vmem:[%s233 + $0xa0] sm:$0xff] %vm535, %v506
      %557 = vst.msk [vmem:[%s233 + $0xa8] sm:$0xff] %vm535, %v508
      %558 = vst.msk [vmem:[%s233 + $0xb0] sm:$0xff] %vm535, %v511
      %559 = vst.msk [vmem:[%s233 + $0xb8] sm:$0xff] %vm535, %v513
      %560 = vst.msk [vmem:[%s233 + $0xc0] sm:$0xff] %vm535, %v516
      %561 = vst.msk [vmem:[%s233 + $0xc8] sm:$0xff] %vm535, %v518
      %562 = vst.msk [vmem:[%s233 + $0xd0] sm:$0xff] %vm535, %v521
      %563 = vst.msk [vmem:[%s233 + $0xd8] sm:$0xff] %vm535, %v523
      %564 = vst.msk [vmem:[%s233 + $0xe0] sm:$0xff] %vm535, %v526
      %565 = vst.msk [vmem:[%s233 + $0xe8] sm:$0xff] %vm535, %v528
      %566 = vst.msk [vmem:[%s233 + $0xf0] sm:$0xff] %vm535, %v531
      %567 = vst.msk [vmem:[%s233 + $0xf8] sm:$0xff] %vm535, %v533
      %v568 = vsel %vm535, %v456, 0.0
      %v569 = vsel %vm535, %v458, 0.0
      %v570 = vadd.f32 %v568, %v569
      %v571 = vsel %vm535, %v461, 0.0
      %v572 = vadd.f32 %v570, %v571
      %v573 = vsel %vm535, %v463, 0.0
      %v574 = vadd.f32 %v572, %v573
      %v575 = vsel %vm535, %v466, 0.0
      %v576 = vadd.f32 %v574, %v575
      %v577 = vsel %vm535, %v468, 0.0
      %v578 = vadd.f32 %v576, %v577
      %v579 = vsel %vm535, %v471, 0.0
      %v580 = vadd.f32 %v578, %v579
      %v581 = vsel %vm535, %v473, 0.0
      %v582 = vadd.f32 %v580, %v581
      %v583 = vsel %vm535, %v476, 0.0
      %v584 = vadd.f32 %v582, %v583
      %v585 = vsel %vm535, %v478, 0.0
      %v586 = vadd.f32 %v584, %v585
      %v587 = vsel %vm535, %v481, 0.0
      %v588 = vadd.f32 %v586, %v587
      %v589 = vsel %vm535, %v483, 0.0
      %v590 = vadd.f32 %v588, %v589
      %v591 = vsel %vm535, %v486, 0.0
      %v592 = vadd.f32 %v590, %v591
      %v593 = vsel %vm535, %v488, 0.0
      %v594 = vadd.f32 %v592, %v593
      %v595 = vsel %vm535, %v491, 0.0
      %v596 = vadd.f32 %v594, %v595
      %v597 = vsel %vm535, %v493, 0.0
      %v598 = vadd.f32 %v596, %v597
      %v599 = vsel %vm535, %v496, 0.0
      %v600 = vadd.f32 %v598, %v599
      %v601 = vsel %vm535, %v498, 0.0
      %v602 = vadd.f32 %v600, %v601
      %v603 = vsel %vm535, %v501, 0.0
      %v604 = vadd.f32 %v602, %v603
      %v605 = vsel %vm535, %v503, 0.0
      %v606 = vadd.f32 %v604, %v605
      %v607 = vsel %vm535, %v506, 0.0
      %v608 = vadd.f32 %v606, %v607
      %v609 = vsel %vm535, %v508, 0.0
      %v610 = vadd.f32 %v608, %v609
      %v611 = vsel %vm535, %v511, 0.0
      %v612 = vadd.f32 %v610, %v611
      %v613 = vsel %vm535, %v513, 0.0
      %v614 = vadd.f32 %v612, %v613
      %v615 = vsel %vm535, %v516, 0.0
      %v616 = vadd.f32 %v614, %v615
      %v617 = vsel %vm535, %v518, 0.0
      %v618 = vadd.f32 %v616, %v617
      %v619 = vsel %vm535, %v521, 0.0
      %v620 = vadd.f32 %v618, %v619
      %v621 = vsel %vm535, %v523, 0.0
      %v622 = vadd.f32 %v620, %v621
      %v623 = vsel %vm535, %v526, 0.0
      %v624 = vadd.f32 %v622, %v623
      %v625 = vsel %vm535, %v528, 0.0
      %v626 = vadd.f32 %v624, %v625
      %v627 = vsel %vm535, %v531, 0.0
      %v628 = vadd.f32 %v626, %v627
      %v629 = vsel %vm535, %v533, 0.0
      %v630 = vadd.f32 %v628, %v629
      %v631 = vrot.slane %v630, 4
      %v632 = vadd.f32 %v630, %v631
      %v633 = vrot.slane %v632, 2
      %v634 = vadd.f32 %v632, %v633
      %v635 = vrot.slane %v634, 1
      %v636 = vadd.f32 %v634, %v635
      %v637 = vmul.f32 %v456, %v456
      %v638 = vmul.f32 %v458, %v458
      %v639 = vmul.f32 %v461, %v461
      %v640 = vmul.f32 %v463, %v463
      %v641 = vmul.f32 %v466, %v466
      %v642 = vmul.f32 %v468, %v468
      %v643 = vmul.f32 %v471, %v471
      %v644 = vmul.f32 %v473, %v473
      %v645 = vmul.f32 %v476, %v476
      %v646 = vmul.f32 %v478, %v478
      %v647 = vmul.f32 %v481, %v481
      %v648 = vmul.f32 %v483, %v483
      %v649 = vmul.f32 %v486, %v486
      %v650 = vmul.f32 %v488, %v488
      %v651 = vmul.f32 %v491, %v491
      %v652 = vmul.f32 %v493, %v493
      %v653 = vmul.f32 %v496, %v496
      %v654 = vmul.f32 %v498, %v498
      %v655 = vmul.f32 %v501, %v501
      %v656 = vmul.f32 %v503, %v503
      %v657 = vmul.f32 %v506, %v506
      %v658 = vmul.f32 %v508, %v508
      %v659 = vmul.f32 %v511, %v511
      %v660 = vmul.f32 %v513, %v513
      %v661 = vmul.f32 %v516, %v516
      %v662 = vmul.f32 %v518, %v518
      %v663 = vmul.f32 %v521, %v521
      %v664 = vmul.f32 %v523, %v523
      %v665 = vmul.f32 %v526, %v526
      %v666 = vmul.f32 %v528, %v528
      %v667 = vmul.f32 %v531, %v531
      %v668 = vmul.f32 %v533, %v533
      %v669 = vsel %vm535, %v637, 0.0
      %v670 = vsel %vm535, %v638, 0.0
      %v671 = vadd.f32 %v669, %v670
      %v672 = vsel %vm535, %v639, 0.0
      %v673 = vadd.f32 %v671, %v672
      %v674 = vsel %vm535, %v640, 0.0
      %v675 = vadd.f32 %v673, %v674
      %v676 = vsel %vm535, %v641, 0.0
      %v677 = vadd.f32 %v675, %v676
      %v678 = vsel %vm535, %v642, 0.0
      %v679 = vadd.f32 %v677, %v678
      %v680 = vsel %vm535, %v643, 0.0
      %v681 = vadd.f32 %v679, %v680
      %v682 = vsel %vm535, %v644, 0.0
      %v683 = vadd.f32 %v681, %v682
      %v684 = vsel %vm535, %v645, 0.0
      %v685 = vadd.f32 %v683, %v684
      %v686 = vsel %vm535, %v646, 0.0
      %v687 = vadd.f32 %v685, %v686
      %v688 = vsel %vm535, %v647, 0.0
      %v689 = vadd.f32 %v687, %v688
      %v690 = vsel %vm535, %v648, 0.0
      %v691 = vadd.f32 %v689, %v690
      %v692 = vsel %vm535, %v649, 0.0
      %v693 = vadd.f32 %v691, %v692
      %v694 = vsel %vm535, %v650, 0.0
      %v695 = vadd.f32 %v693, %v694
      %v696 = vsel %vm535, %v651, 0.0
      %v697 = vadd.f32 %v695, %v696
      %v698 = vsel %vm535, %v652, 0.0
      %v699 = vadd.f32 %v697, %v698
      %v700 = vsel %vm535, %v653, 0.0
      %v701 = vadd.f32 %v699, %v700
      %v702 = vsel %vm535, %v654, 0.0
      %v703 = vadd.f32 %v701, %v702
      %v704 = vsel %vm535, %v655, 0.0
      %v705 = vadd.f32 %v703, %v704
      %v706 = vsel %vm535, %v656, 0.0
      %v707 = vadd.f32 %v705, %v706
      %v708 = vsel %vm535, %v657, 0.0
      %v709 = vadd.f32 %v707, %v708
      %v710 = vsel %vm535, %v658, 0.0
      %v711 = vadd.f32 %v709, %v710
      %v712 = vsel %vm535, %v659, 0.0
      %v713 = vadd.f32 %v711, %v712
      %v714 = vsel %vm535, %v660, 0.0
      %v715 = vadd.f32 %v713, %v714
      %v716 = vsel %vm535, %v661, 0.0
      %v717 = vadd.f32 %v715, %v716
      %v718 = vsel %vm535, %v662, 0.0
      %v719 = vadd.f32 %v717, %v718
      %v720 = vsel %vm535, %v663, 0.0
      %v721 = vadd.f32 %v719, %v720
      %v722 = vsel %vm535, %v664, 0.0
      %v723 = vadd.f32 %v721, %v722
      %v724 = vsel %vm535, %v665, 0.0
      %v725 = vadd.f32 %v723, %v724
      %v726 = vsel %vm535, %v666, 0.0
      %v727 = vadd.f32 %v725, %v726
      %v728 = vsel %vm535, %v667, 0.0
      %v729 = vadd.f32 %v727, %v728
      %v730 = vsel %vm535, %v668, 0.0
      %v731 = vadd.f32 %v729, %v730
      %v732 = vrot.slane %v731, 4
      %v733 = vadd.f32 %v731, %v732
      %v734 = vrot.slane %v733, 2
      %v735 = vadd.f32 %v733, %v734
      %v736 = vrot.slane %v735, 1
      %v737 = vadd.f32 %v735, %v736
      %vm738 = vcmask 1040384
      %v739 = vsel %vm738, %v636, %v737
      %vm740 = vcmask 123904
      %741 = vst.msk [vmem:[%s238] sm:$0x3] %vm740, %v739
      %s742 = smul.u32 32, %s17
      %p743 = scmp.lt.s32.totalorder %s742, 63
      %s744 = scalar_select %p743, %s742, 63
      %s745 = smul.addr %s744, 8
      %s746 = scalar_lea.vmem %s4, %s745
      %p747 = scmp.lt.s32.totalorder %s17, 1
      %s748 = scalar_select %p747, %s17, 1
      %s749 = smul.addr %s748, 2
      %s750 = scalar_lea.vmem %s5, %s749
      // Predicated region
      $region37: #{bottleneck_forward.6} parent=35 // pred_check
        %p751 = pneg %p124
      $region38: #{bottleneck_forward.6} parent=35 // pred_check_branch
        %753 = sbr.rel (%p751) target = $region40
      $region39: #{bottleneck_forward.6} parent=35 // pred_region
        %s754 = smul.u32 32, %s17
      $region40: #{bottleneck_forward.6} parent=35 // pred_fallthru
        _
      // Predicated region
      $region41: #{bottleneck_forward.6} parent=35 // pred_check
        %p755 = pneg %p150
      $region42: #{bottleneck_forward.6} parent=35 // pred_check_branch
        %757 = sbr.rel (%p755) target = $region44
      $region43: #{bottleneck_forward.6} parent=35 // pred_region
        _
      $region44: #{bottleneck_forward.6} parent=35 // pred_fallthru
        _
    $region36: #{bottleneck_forward.6} parent=5 // pred_fallthru
      _
    %p758 = scmp.le.s32.totalorder 2, %s12
    // Predicated region
    $region45: #{bottleneck_forward.6} parent=5 // pred_check
      %p759 = pneg %p758
    $region46: #{bottleneck_forward.6} parent=5 // pred_check_branch
      %761 = sbr.rel (%p759) target = $region48
    $region47: #{bottleneck_forward.6} parent=5 // pred_region
      %s762 = ssub.s32 %s12, 2
      // Predicated region
      $region49: #{bottleneck_forward.6} parent=47 // pred_check
        %p763 = pneg %p130
      $region50: #{bottleneck_forward.6} parent=47 // pred_check_branch
        %765 = sbr.rel (%p763) target = $region52
      $region51: #{bottleneck_forward.6} parent=47 // pred_region
        %s766 = smul.u32 32, %s18
        %p767 = scmp.lt.s32.totalorder %s766, 63
        %s768 = scalar_select %p767, %s766, 63
        %s769 = smul.addr %s768, 8
        %s770 = scalar_lea.vmem %s4, %s769
      $region52: #{bottleneck_forward.6} parent=47 // pred_fallthru
        _
      // Predicated region
      $region53: #{bottleneck_forward.6} parent=47 // pred_check
        %p771 = pneg %p156
      $region54: #{bottleneck_forward.6} parent=47 // pred_check_branch
        %773 = sbr.rel (%p771) target = $region56
      $region55: #{bottleneck_forward.6} parent=47 // pred_region
        %p774 = scmp.lt.s32.totalorder %s18, 1
        %s775 = scalar_select %p774, %s18, 1
        %s776 = smul.addr %s775, 2
        %s777 = scalar_lea.vmem %s5, %s776
      $region56: #{bottleneck_forward.6} parent=47 // pred_fallthru
        _
    $region48: #{bottleneck_forward.6} parent=5 // pred_fallthru
      _
  $region6: #{bottleneck_forward.6} parent=0 // loop_footer
    %s16 = sadd.s32 1, %s12
  $region7: #{bottleneck_forward.6} parent=0 // loop_footer_branch
    %11 = sbr.rel target = $region3
  $region8: #{bottleneck_forward.6} parent=0 // loop_exit
    _

// kernel: bottleneck_forward.5
$region0: #{bottleneck_forward.5}
  #allocation0 [shape = 'u32[]', space=smem, size = 0x4, offset = 0x4, fixed_abs, tag = 'smem constant byte address 0x4 - core index']
  #allocation1 [shape = 'u32[72,128]{1,0:T(1,128)}', space=vmem, size = 0x9000, scoped, tag = 'internal scratch']
  #allocation2 [shape = 'f32[256,36]{1,0:T(8,128)}', space=vmem, size = 0x20000, scoped, tag = 'scratch operand']
  %s0 = inlined_call_operand.vmem [shape: f32[512,4], index: 0, kind: input, shape index: {}]
  %s1 = inlined_call_operand.vmem [shape: f32[1,4], index: 1, kind: input, shape index: {}]
  %s2 = inlined_call_operand.vmem [shape: f32[1,4], index: 2, kind: input, shape index: {}]
  %s3 = inlined_call_operand.vmem [shape: bf16[36,4], index: 3, kind: input, shape index: {}]
  %s4 = inlined_call_operand.vmem [shape: f32[256,9], index: 4, kind: input, shape index: {}]
  %s5 = inlined_call_operand.vmem [shape: f32[512,4], index: 5, kind: output, shape index: {0}]
  %s6 = inlined_call_operand.vmem [shape: f32[2,2,4], index: 6, kind: output, shape index: {1}]
  %7 = xla_tuple %s5, %s6
  %s8 = sld [smem:[#allocation0]]
  $region61: #{bottleneck_forward.5} parent=0
    _
  %s10 = ssub.s32 1, %s8
  %s11 = scalar_select 0, %s10, %s8
  loop: start=0, step=1, limit=4
  $region2: #{bottleneck_forward.5} parent=0 // loop_pre_header
    _
  $region3: #{bottleneck_forward.5} parent=0 // loop_header
    %s13 = sphi 0, %s17
    %p14 = scmp.ge.s32.totalorder %s13, 4
    %s23 = sphi 0, %s25
    %s26 = sphi 0, %s23
    %s27 = sphi 0, %s26
    %s43 = sphi 0, %s27
    %s47 = sphi 0, %s47
    %s49 = sphi 0, %s47
    %s50 = sphi 0, %s49
    %s64 = sphi 0, %s50
    %s68 = sphi 0, %s68
    %s70 = sphi 0, %s68
    %s71 = sphi 0, %s70
    %s85 = sphi 0, %s71
    %s89 = sphi 0, %s89
    %s91 = sphi 0, %s89
    %s92 = sphi 0, %s91
    %s106 = sphi 0, %s92
    %s110 = sphi 0, %s110
    %s112 = sphi 0, %s110
    %s113 = sphi 0, %s112
    %s127 = sphi 0, %s113
    %s133 = sphi 0, %s135
    %s136 = sphi 0, %s133
    %s137 = sphi 0, %s136
    %s153 = sphi 0, %s137
    %s159 = sphi 0, %s161
    %s162 = sphi 0, %s159
    %s163 = sphi 0, %s162
    %s179 = sphi 0, %s163
  $region4: #{bottleneck_forward.5} parent=0 // loop_header_branch
    %16 = sbr.rel (%p14) target = $region8
  $region5: #{bottleneck_forward.5} parent=0 // loop_body
    %s18 = ssub.s32 %s13, 1
    %s19 = ssub.s32 %s13, 2
    %s20 = sadd.s32 %s13, 1
    %s21 = ssub.s32 %s13, %s20
    %p22 = scmp.eq.s32.totalorder %s21, 0
    %s24 = sadd.s32 %s23, 1
    %s25 = scalar_select %p22, %s23, %s24
    %p28 = pneg %p22
    %p29 = scmp.eq.s32.totalorder %s13, 1
    %p30 = por %p28, %p29
    %p31 = scmp.ne.s32.totalorder %s23, %s26
    %p32 = scmp.eq.s32.totalorder %s13, 0
    %p33 = por %p31, %p32
    %p34 = scmp.ne.s32.totalorder %s23, %s26
    %p35 = scmp.eq.s32.totalorder %s18, 1
    %p36 = por %p34, %p35
    %p37 = scmp.ne.s32.totalorder %s26, %s27
    %p38 = scmp.eq.s32.totalorder %s18, 0
    %p39 = por %p37, %p38
    %p40 = scmp.ne.s32.totalorder %s26, %s27
    %p41 = scmp.eq.s32.totalorder %s19, 1
    %p42 = por %p40, %p41
    %p44 = scmp.ne.s32.totalorder %s27, %s43
    %p45 = scmp.eq.s32.totalorder %s19, 0
    %p46 = por %p44, %p45
    %s48 = sadd.s32 %s47, 1
    %p51 = scmp.eq.s32.totalorder %s13, 1
    %p52 = scmp.ne.s32.totalorder %s47, %s49
    %p53 = scmp.eq.s32.totalorder %s13, 0
    %p54 = por %p52, %p53
    %p55 = scmp.ne.s32.totalorder %s47, %s49
    %p56 = scmp.eq.s32.totalorder %s18, 1
    %p57 = por %p55, %p56
    %p58 = scmp.ne.s32.totalorder %s49, %s50
    %p59 = scmp.eq.s32.totalorder %s18, 0
    %p60 = por %p58, %p59
    %p61 = scmp.ne.s32.totalorder %s49, %s50
    %p62 = scmp.eq.s32.totalorder %s19, 1
    %p63 = por %p61, %p62
    %p65 = scmp.ne.s32.totalorder %s50, %s64
    %p66 = scmp.eq.s32.totalorder %s19, 0
    %p67 = por %p65, %p66
    %s69 = sadd.s32 %s68, 1
    %p72 = scmp.eq.s32.totalorder %s13, 1
    %p73 = scmp.ne.s32.totalorder %s68, %s70
    %p74 = scmp.eq.s32.totalorder %s13, 0
    %p75 = por %p73, %p74
    %p76 = scmp.ne.s32.totalorder %s68, %s70
    %p77 = scmp.eq.s32.totalorder %s18, 1
    %p78 = por %p76, %p77
    %p79 = scmp.ne.s32.totalorder %s70, %s71
    %p80 = scmp.eq.s32.totalorder %s18, 0
    %p81 = por %p79, %p80
    %p82 = scmp.ne.s32.totalorder %s70, %s71
    %p83 = scmp.eq.s32.totalorder %s19, 1
    %p84 = por %p82, %p83
    %p86 = scmp.ne.s32.totalorder %s71, %s85
    %p87 = scmp.eq.s32.totalorder %s19, 0
    %p88 = por %p86, %p87
    %s90 = sadd.s32 %s89, 1
    %p93 = scmp.eq.s32.totalorder %s13, 1
    %p94 = scmp.ne.s32.totalorder %s89, %s91
    %p95 = scmp.eq.s32.totalorder %s13, 0
    %p96 = por %p94, %p95
    %p97 = scmp.ne.s32.totalorder %s89, %s91
    %p98 = scmp.eq.s32.totalorder %s18, 1
    %p99 = por %p97, %p98
    %p100 = scmp.ne.s32.totalorder %s91, %s92
    %p101 = scmp.eq.s32.totalorder %s18, 0
    %p102 = por %p100, %p101
    %p103 = scmp.ne.s32.totalorder %s91, %s92
    %p104 = scmp.eq.s32.totalorder %s19, 1
    %p105 = por %p103, %p104
    %p107 = scmp.ne.s32.totalorder %s92, %s106
    %p108 = scmp.eq.s32.totalorder %s19, 0
    %p109 = por %p107, %p108
    %s111 = sadd.s32 %s110, 1
    %p114 = scmp.eq.s32.totalorder %s13, 1
    %p115 = scmp.ne.s32.totalorder %s110, %s112
    %p116 = scmp.eq.s32.totalorder %s13, 0
    %p117 = por %p115, %p116
    %p118 = scmp.ne.s32.totalorder %s110, %s112
    %p119 = scmp.eq.s32.totalorder %s18, 1
    %p120 = por %p118, %p119
    %p121 = scmp.ne.s32.totalorder %s112, %s113
    %p122 = scmp.eq.s32.totalorder %s18, 0
    %p123 = por %p121, %p122
    %p124 = scmp.ne.s32.totalorder %s112, %s113
    %p125 = scmp.eq.s32.totalorder %s19, 1
    %p126 = por %p124, %p125
    %p128 = scmp.ne.s32.totalorder %s113, %s127
    %p129 = scmp.eq.s32.totalorder %s19, 0
    %p130 = por %p128, %p129
    %s131 = ssub.s32 %s13, %s20
    %p132 = scmp.eq.s32.totalorder %s131, 0
    %s134 = sadd.s32 %s133, 1
    %s135 = scalar_select %p132, %s133, %s134
    %p138 = pneg %p132
    %p139 = scmp.eq.s32.totalorder %s13, 1
    %p140 = por %p138, %p139
    %p141 = scmp.ne.s32.totalorder %s133, %s136
    %p142 = scmp.eq.s32.totalorder %s13, 0
    %p143 = por %p141, %p142
    %p144 = scmp.ne.s32.totalorder %s133, %s136
    %p145 = scmp.eq.s32.totalorder %s18, 1
    %p146 = por %p144, %p145
    %p147 = scmp.ne.s32.totalorder %s136, %s137
    %p148 = scmp.eq.s32.totalorder %s18, 0
    %p149 = por %p147, %p148
    %p150 = scmp.ne.s32.totalorder %s136, %s137
    %p151 = scmp.eq.s32.totalorder %s19, 1
    %p152 = por %p150, %p151
    %p154 = scmp.ne.s32.totalorder %s137, %s153
    %p155 = scmp.eq.s32.totalorder %s19, 0
    %p156 = por %p154, %p155
    %s157 = ssub.s32 %s13, %s20
    %p158 = scmp.eq.s32.totalorder %s157, 0
    %s160 = sadd.s32 %s159, 1
    %s161 = scalar_select %p158, %s159, %s160
    %p164 = pneg %p158
    %p165 = scmp.eq.s32.totalorder %s13, 1
    %p166 = por %p164, %p165
    %p167 = scmp.ne.s32.totalorder %s159, %s162
    %p168 = scmp.eq.s32.totalorder %s13, 0
    %p169 = por %p167, %p168
    %p170 = scmp.ne.s32.totalorder %s159, %s162
    %p171 = scmp.eq.s32.totalorder %s18, 1
    %p172 = por %p170, %p171
    %p173 = scmp.ne.s32.totalorder %s162, %s163
    %p174 = scmp.eq.s32.totalorder %s18, 0
    %p175 = por %p173, %p174
    %p176 = scmp.ne.s32.totalorder %s162, %s163
    %p177 = scmp.eq.s32.totalorder %s19, 1
    %p178 = por %p176, %p177
    %p180 = scmp.ne.s32.totalorder %s163, %s179
    %p181 = scmp.eq.s32.totalorder %s19, 0
    %p182 = por %p180, %p181
    %p183 = scmp.le.s32.totalorder 1, %s13
    %p184 = scmp.lt.s32.totalorder %s13, 3
    %p185 = pnand %p183, %p184
    %p186 = pneg %p185
    // Predicated region
    $region9: #{bottleneck_forward.5} parent=5 // pred_check
      _
    $region10: #{bottleneck_forward.5} parent=5 // pred_check_branch
      %188 = sbr.rel (%p185) target = $region12
    $region11: #{bottleneck_forward.5} parent=5 // pred_region
      %s189 = ssub.s32 %s13, 1
      // Predicated region
      $region13: #{bottleneck_forward.5} parent=11 // pred_check
        %p190 = pneg %p60
      $region14: #{bottleneck_forward.5} parent=11 // pred_check_branch
        %192 = sbr.rel (%p190) target = $region16
      $region15: #{bottleneck_forward.5} parent=11 // pred_region
        _
      $region16: #{bottleneck_forward.5} parent=11 // pred_fallthru
        _
      // Predicated region
      $region17: #{bottleneck_forward.5} parent=11 // pred_check
        %p193 = pneg %p81
      $region18: #{bottleneck_forward.5} parent=11 // pred_check_branch
        %195 = sbr.rel (%p193) target = $region20
      $region19: #{bottleneck_forward.5} parent=11 // pred_region
        _
      $region20: #{bottleneck_forward.5} parent=11 // pred_fallthru
        _
      // Predicated region
      $region21: #{bottleneck_forward.5} parent=11 // pred_check
        %p196 = pneg %p102
      $region22: #{bottleneck_forward.5} parent=11 // pred_check_branch
        %198 = sbr.rel (%p196) target = $region24
      $region23: #{bottleneck_forward.5} parent=11 // pred_region
        _
      $region24: #{bottleneck_forward.5} parent=11 // pred_fallthru
        _
      // Predicated region
      $region25: #{bottleneck_forward.5} parent=11 // pred_check
        %p199 = pneg %p123
      $region26: #{bottleneck_forward.5} parent=11 // pred_check_branch
        %201 = sbr.rel (%p199) target = $region28
      $region27: #{bottleneck_forward.5} parent=11 // pred_region
        _
      $region28: #{bottleneck_forward.5} parent=11 // pred_fallthru
        _
    $region12: #{bottleneck_forward.5} parent=5 // pred_fallthru
      _
    %p202 = scmp.lt.s32.totalorder %s13, 2
    // Predicated region
    $region29: #{bottleneck_forward.5} parent=5 // pred_check
      %p203 = pneg %p202
    $region30: #{bottleneck_forward.5} parent=5 // pred_check_branch
      %205 = sbr.rel (%p203) target = $region32
    $region31: #{bottleneck_forward.5} parent=5 // pred_region
      // Predicated region
      $region33: #{bottleneck_forward.5} parent=31 // pred_check
        %p206 = pneg %p33
      $region34: #{bottleneck_forward.5} parent=31 // pred_check_branch
        %208 = sbr.rel (%p206) target = $region36
      $region35: #{bottleneck_forward.5} parent=31 // pred_region
        %s209 = smul.u32 32, %s13
        %p210 = scmp.lt.s32.totalorder %s209, 63
        %s211 = scalar_select %p210, %s209, 63
        %s212 = smul.addr %s211, 8
        %s213 = scalar_lea.vmem %s0, %s212
        %s214 = smul.u32 32, %s13
      $region36: #{bottleneck_forward.5} parent=31 // pred_fallthru
        _
    $region32: #{bottleneck_forward.5} parent=5 // pred_fallthru
      _
    %p215 = scmp.le.s32.totalorder 1, %s13
    %p216 = scmp.lt.s32.totalorder %s13, 3
    %p217 = pnand %p215, %p216
    %p218 = pneg %p217
    // Predicated region
    $region37: #{bottleneck_forward.5} parent=5 // pred_check
      _
    $region38: #{bottleneck_forward.5} parent=5 // pred_check_branch
      %220 = sbr.rel (%p217) target = $region40
    $region39: #{bottleneck_forward.5} parent=5 // pred_region
      %s221 = ssub.s32 %s13, 1
      %s222 = smul.u32 32, %s18
      %p223 = scmp.lt.s32.totalorder %s222, 63
      %s224 = scalar_select %p223, %s222, 63
      %s225 = smul.addr %s224, 8
      %s226 = scalar_lea.vmem %s0, %s225
      %p227 = pneg %p39
      %p228 = pneg %p36
      %p229 = pneg %p60
      %p230 = pneg %p57
      %p231 = pneg %p81
      %p232 = pneg %p78
      %p233 = pneg %p102
      %p234 = pneg %p99
      %p235 = pneg %p123
      %p236 = pneg %p120
      %p237 = pneg %p149
      %p238 = pneg %p146
      %s239 = smul.u32 32, %s18
      %p240 = scmp.lt.s32.totalorder %s239, 63
      %s241 = scalar_select %p240, %s239, 63
      %s242 = smul.addr %s241, 8
      %s243 = scalar_lea.vmem %s5, %s242
      %p244 = pneg %p175
      %p245 = pneg %p172
      %p246 = scmp.lt.s32.totalorder %s18, 1
      %s247 = scalar_select %p246, %s18, 1
      %s248 = smul.addr %s247, 2
      %s249 = scalar_lea.vmem %s6, %s248
      %s250 = smul.u32 32, %s18
      %p251 = scmp.lt.s32.totalorder %s250, 63
      %s252 = scalar_select %p251, %s250, 63
      %s253 = smul.addr %s252, 8
      %s254 = scalar_lea.vmem %s0, %s253
      %s255 = smul.u32 32, %s18
      %s256 = smul.u32 32, %s18
      %p257 = scmp.lt.s32.totalorder %s256, 63
      %s258 = scalar_select %p257, %s256, 63
      %s259 = smul.addr %s258, 8
      %s260 = scalar_lea.vmem %s5, %s259
      %s261 = smul.u32 32, %s18
      %p262 = scmp.lt.s32.totalorder %s18, 1
      %s263 = scalar_select %p262, %s18, 1
      %s264 = smul.addr %s263, 2
      %s265 = scalar_lea.vmem %s6, %s264
      %v267 = vld [vmem:[%s254] sm:$0xff]
      %v268 = vld [vmem:[%s254 + $0x8] sm:$0xff]
      %v269 = vld [vmem:[%s254 + $0x10] sm:$0xff]
      %v270 = vld [vmem:[%s254 + $0x18] sm:$0xff]
      %v271 = vld [vmem:[%s254 + $0x20] sm:$0xff]
      %v272 = vld [vmem:[%s254 + $0x28] sm:$0xff]
      %v273 = vld [vmem:[%s254 + $0x30] sm:$0xff]
      %v274 = vld [vmem:[%s254 + $0x38] sm:$0xff]
      %v275 = vld [vmem:[%s254 + $0x40] sm:$0xff]
      %v276 = vld [vmem:[%s254 + $0x48] sm:$0xff]
      %v277 = vld [vmem:[%s254 + $0x50] sm:$0xff]
      %v278 = vld [vmem:[%s254 + $0x58] sm:$0xff]
      %v279 = vld [vmem:[%s254 + $0x60] sm:$0xff]
      %v280 = vld [vmem:[%s254 + $0x68] sm:$0xff]
      %v281 = vld [vmem:[%s254 + $0x70] sm:$0xff]
      %v282 = vld [vmem:[%s254 + $0x78] sm:$0xff]
      %v283 = vld [vmem:[%s254 + $0x80] sm:$0xff]
      %v284 = vld [vmem:[%s254 + $0x88] sm:$0xff]
      %v285 = vld [vmem:[%s254 + $0x90] sm:$0xff]
      %v286 = vld [vmem:[%s254 + $0x98] sm:$0xff]
      %v287 = vld [vmem:[%s254 + $0xa0] sm:$0xff]
      %v288 = vld [vmem:[%s254 + $0xa8] sm:$0xff]
      %v289 = vld [vmem:[%s254 + $0xb0] sm:$0xff]
      %v290 = vld [vmem:[%s254 + $0xb8] sm:$0xff]
      %v291 = vld [vmem:[%s254 + $0xc0] sm:$0xff]
      %v292 = vld [vmem:[%s254 + $0xc8] sm:$0xff]
      %v293 = vld [vmem:[%s254 + $0xd0] sm:$0xff]
      %v294 = vld [vmem:[%s254 + $0xd8] sm:$0xff]
      %v295 = vld [vmem:[%s254 + $0xe0] sm:$0xff]
      %v296 = vld [vmem:[%s254 + $0xe8] sm:$0xff]
      %v297 = vld [vmem:[%s254 + $0xf0] sm:$0xff]
      %v298 = vld [vmem:[%s254 + $0xf8] sm:$0xff]
      %v299 = vld [vmem:[%s1] sm:$0x1]
      %v301 = vperm.slane %v299, 0
      %v303 = vmul.f32 %v267, %v301
      %v304 = vmul.f32 %v268, %v301
      %v305 = vmul.f32 %v269, %v301
      %v306 = vmul.f32 %v270, %v301
      %v307 = vmul.f32 %v271, %v301
      %v308 = vmul.f32 %v272, %v301
      %v309 = vmul.f32 %v273, %v301
      %v310 = vmul.f32 %v274, %v301
      %v311 = vmul.f32 %v275, %v301
      %v312 = vmul.f32 %v276, %v301
      %v313 = vmul.f32 %v277, %v301
      %v314 = vmul.f32 %v278, %v301
      %v315 = vmul.f32 %v279, %v301
      %v316 = vmul.f32 %v280, %v301
      %v317 = vmul.f32 %v281, %v301
      %v318 = vmul.f32 %v282, %v301
      %v319 = vmul.f32 %v283, %v301
      %v320 = vmul.f32 %v284, %v301
      %v321 = vmul.f32 %v285, %v301
      %v322 = vmul.f32 %v286, %v301
      %v323 = vmul.f32 %v287, %v301
      %v324 = vmul.f32 %v288, %v301
      %v325 = vmul.f32 %v289, %v301
      %v326 = vmul.f32 %v290, %v301
      %v327 = vmul.f32 %v291, %v301
      %v328 = vmul.f32 %v292, %v301
      %v329 = vmul.f32 %v293, %v301
      %v330 = vmul.f32 %v294, %v301
      %v331 = vmul.f32 %v295, %v301
      %v332 = vmul.f32 %v296, %v301
      %v333 = vmul.f32 %v297, %v301
      %v334 = vmul.f32 %v298, %v301
      %v335 = vld [vmem:[%s2] sm:$0x1]
      %v337 = vperm.slane %v335, 0
      %v339 = vadd.f32 %v303, %v337
      %v340 = vadd.f32 %v304, %v337
      %v341 = vadd.f32 %v305, %v337
      %v342 = vadd.f32 %v306, %v337
      %v343 = vadd.f32 %v307, %v337
      %v344 = vadd.f32 %v308, %v337
      %v345 = vadd.f32 %v309, %v337
      %v346 = vadd.f32 %v310, %v337
      %v347 = vadd.f32 %v311, %v337
      %v348 = vadd.f32 %v312, %v337
      %v349 = vadd.f32 %v313, %v337
      %v350 = vadd.f32 %v314, %v337
      %v351 = vadd.f32 %v315, %v337
      %v352 = vadd.f32 %v316, %v337
      %v353 = vadd.f32 %v317, %v337
      %v354 = vadd.f32 %v318, %v337
      %v355 = vadd.f32 %v319, %v337
      %v356 = vadd.f32 %v320, %v337
      %v357 = vadd.f32 %v321, %v337
      %v358 = vadd.f32 %v322, %v337
      %v359 = vadd.f32 %v323, %v337
      %v360 = vadd.f32 %v324, %v337
      %v361 = vadd.f32 %v325, %v337
      %v362 = vadd.f32 %v326, %v337
      %v363 = vadd.f32 %v327, %v337
      %v364 = vadd.f32 %v328, %v337
      %v365 = vadd.f32 %v329, %v337
      %v366 = vadd.f32 %v330, %v337
      %v367 = vadd.f32 %v331, %v337
      %v368 = vadd.f32 %v332, %v337
      %v369 = vadd.f32 %v333, %v337
      %v370 = vadd.f32 %v334, %v337
      %v371 = vmax.f32 %v339, 0.0
      %v372 = vmax.f32 %v340, 0.0
      %v373 = vmax.f32 %v341, 0.0
      %v374 = vmax.f32 %v342, 0.0
      %v375 = vmax.f32 %v343, 0.0
      %v376 = vmax.f32 %v344, 0.0
      %v377 = vmax.f32 %v345, 0.0
      %v378 = vmax.f32 %v346, 0.0
      %v379 = vmax.f32 %v347, 0.0
      %v380 = vmax.f32 %v348, 0.0
      %v381 = vmax.f32 %v349, 0.0
      %v382 = vmax.f32 %v350, 0.0
      %v383 = vmax.f32 %v351, 0.0
      %v384 = vmax.f32 %v352, 0.0
      %v385 = vmax.f32 %v353, 0.0
      %v386 = vmax.f32 %v354, 0.0
      %v387 = vmax.f32 %v355, 0.0
      %v388 = vmax.f32 %v356, 0.0
      %v389 = vmax.f32 %v357, 0.0
      %v390 = vmax.f32 %v358, 0.0
      %v391 = vmax.f32 %v359, 0.0
      %v392 = vmax.f32 %v360, 0.0
      %v393 = vmax.f32 %v361, 0.0
      %v394 = vmax.f32 %v362, 0.0
      %v395 = vmax.f32 %v363, 0.0
      %v396 = vmax.f32 %v364, 0.0
      %v397 = vmax.f32 %v365, 0.0
      %v398 = vmax.f32 %v366, 0.0
      %v399 = vmax.f32 %v367, 0.0
      %v400 = vmax.f32 %v368, 0.0
      %v401 = vmax.f32 %v369, 0.0
      %v402 = vmax.f32 %v370, 0.0
      %vm435 = vcmask 1040384
      %v436 = vrot.slane %v371, 7
      %v437 = vrot.slane %v372, 7
      %v438 = vsel %vm435, %v436, %v437
      %v439 = vrot.slane %v373, 7
      %v440 = vsel %vm435, %v437, %v439
      %v441 = vrot.slane %v374, 7
      %v442 = vsel %vm435, %v439, %v441
      %v443 = vrot.slane %v375, 7
      %v444 = vsel %vm435, %v441, %v443
      %v445 = vrot.slane %v376, 7
      %v446 = vsel %vm435, %v443, %v445
      %v447 = vrot.slane %v377, 7
      %v448 = vsel %vm435, %v445, %v447
      %v449 = vrot.slane %v378, 7
      %v450 = vsel %vm435, %v447, %v449
      %v451 = vrot.slane %v379, 7
      %v452 = vsel %vm435, %v449, %v451
      %v453 = vrot.slane %v380, 7
      %v454 = vsel %vm435, %v451, %v453
      %v455 = vrot.slane %v381, 7
      %v456 = vsel %vm435, %v453, %v455
      %v457 = vrot.slane %v382, 7
      %v458 = vsel %vm435, %v455, %v457
      %v459 = vrot.slane %v383, 7
      %v460 = vsel %vm435, %v457, %v459
      %v461 = vrot.slane %v384, 7
      %v462 = vsel %vm435, %v459, %v461
      %v463 = vrot.slane %v385, 7
      %v464 = vsel %vm435, %v461, %v463
      %v465 = vrot.slane %v386, 7
      %v466 = vsel %vm435, %v463, %v465
      %v467 = vrot.slane %v387, 7
      %v468 = vsel %vm435, %v465, %v467
      %v469 = vrot.slane %v388, 7
      %v470 = vsel %vm435, %v467, %v469
      %v471 = vrot.slane %v389, 7
      %v472 = vsel %vm435, %v469, %v471
      %v473 = vrot.slane %v390, 7
      %v474 = vsel %vm435, %v471, %v473
      %v475 = vrot.slane %v391, 7
      %v476 = vsel %vm435, %v473, %v475
      %v477 = vrot.slane %v392, 7
      %v478 = vsel %vm435, %v475, %v477
      %v479 = vrot.slane %v393, 7
      %v480 = vsel %vm435, %v477, %v479
      %v481 = vrot.slane %v394, 7
      %v482 = vsel %vm435, %v479, %v481
      %v483 = vrot.slane %v395, 7
      %v484 = vsel %vm435, %v481, %v483
      %v485 = vrot.slane %v396, 7
      %v486 = vsel %vm435, %v483, %v485
      %v487 = vrot.slane %v397, 7
      %v488 = vsel %vm435, %v485, %v487
      %v489 = vrot.slane %v398, 7
      %v490 = vsel %vm435, %v487, %v489
      %v491 = vrot.slane %v399, 7
      %v492 = vsel %vm435, %v489, %v491
      %v493 = vrot.slane %v400, 7
      %v494 = vsel %vm435, %v491, %v493
      %v495 = vrot.slane %v401, 7
      %v496 = vsel %vm435, %v493, %v495
      %v497 = vrot.slane %v402, 7
      %v498 = vsel %vm435, %v495, %v497
      %v532 = vsel %vm435, 0.0, %v436
      %v533 = vsel %vm435, %v497, 0.0
      %v534 = vld [vmem:[%s4] sm:$0xff]
      %v535 = vld [vmem:[%s4 + $0x8] sm:$0xff]
      %v536 = vld [vmem:[%s4 + $0x10] sm:$0xff]
      %v537 = vld [vmem:[%s4 + $0x18] sm:$0xff]
      %v538 = vld [vmem:[%s4 + $0x20] sm:$0xff]
      %v539 = vld [vmem:[%s4 + $0x28] sm:$0xff]
      %v540 = vld [vmem:[%s4 + $0x30] sm:$0xff]
      %v541 = vld [vmem:[%s4 + $0x38] sm:$0xff]
      %v542 = vld [vmem:[%s4 + $0x40] sm:$0xff]
      %v543 = vld [vmem:[%s4 + $0x48] sm:$0xff]
      %v544 = vld [vmem:[%s4 + $0x50] sm:$0xff]
      %v545 = vld [vmem:[%s4 + $0x58] sm:$0xff]
      %v546 = vld [vmem:[%s4 + $0x60] sm:$0xff]
      %v547 = vld [vmem:[%s4 + $0x68] sm:$0xff]
      %v548 = vld [vmem:[%s4 + $0x70] sm:$0xff]
      %v549 = vld [vmem:[%s4 + $0x78] sm:$0xff]
      %v550 = vld [vmem:[%s4 + $0x80] sm:$0xff]
      %v551 = vld [vmem:[%s4 + $0x88] sm:$0xff]
      %v552 = vld [vmem:[%s4 + $0x90] sm:$0xff]
      %v553 = vld [vmem:[%s4 + $0x98] sm:$0xff]
      %v554 = vld [vmem:[%s4 + $0xa0] sm:$0xff]
      %v555 = vld [vmem:[%s4 + $0xa8] sm:$0xff]
      %v556 = vld [vmem:[%s4 + $0xb0] sm:$0xff]
      %v557 = vld [vmem:[%s4 + $0xb8] sm:$0xff]
      %v558 = vld [vmem:[%s4 + $0xc0] sm:$0xff]
      %v559 = vld [vmem:[%s4 + $0xc8] sm:$0xff]
      %v560 = vld [vmem:[%s4 + $0xd0] sm:$0xff]
      %v561 = vld [vmem:[%s4 + $0xd8] sm:$0xff]
      %v562 = vld [vmem:[%s4 + $0xe0] sm:$0xff]
      %v563 = vld [vmem:[%s4 + $0xe8] sm:$0xff]
      %v564 = vld [vmem:[%s4 + $0xf0] sm:$0xff]
      %v565 = vld [vmem:[%s4 + $0xf8] sm:$0xff]
      %567 = vset.pattern.permute.xlu0 0
      %568 = vperm.xlu0 %567, %v534
      %v569 = vpop.permute.xlu0 %568
      %572 = vset.pattern.permute.xlu0 0
      %573 = vperm.xlu0 %572, %v535
      %v574 = vpop.permute.xlu0 %573
      %577 = vset.pattern.permute.xlu0 0
      %578 = vperm.xlu0 %577, %v536
      %v579 = vpop.permute.xlu0 %578
      %582 = vset.pattern.permute.xlu0 0
      %583 = vperm.xlu0 %582, %v537
      %v584 = vpop.permute.xlu0 %583
      %587 = vset.pattern.permute.xlu0 0
      %588 = vperm.xlu0 %587, %v538
      %v589 = vpop.permute.xlu0 %588
      %592 = vset.pattern.permute.xlu0 0
      %593 = vperm.xlu0 %592, %v539
      %v594 = vpop.permute.xlu0 %593
      %597 = vset.pattern.permute.xlu0 0
      %598 = vperm.xlu0 %597, %v540
      %v599 = vpop.permute.xlu0 %598
      %602 = vset.pattern.permute.xlu0 0
      %603 = vperm.xlu0 %602, %v541
      %v604 = vpop.permute.xlu0 %603
      %607 = vset.pattern.permute.xlu0 0
      %608 = vperm.xlu0 %607, %v542
      %v609 = vpop.permute.xlu0 %608
      %612 = vset.pattern.permute.xlu0 0
      %613 = vperm.xlu0 %612, %v543
      %v614 = vpop.permute.xlu0 %613
      %617 = vset.pattern.permute.xlu0 0
      %618 = vperm.xlu0 %617, %v544
      %v619 = vpop.permute.xlu0 %618
      %622 = vset.pattern.permute.xlu0 0
      %623 = vperm.xlu0 %622, %v545
      %v624 = vpop.permute.xlu0 %623
      %627 = vset.pattern.permute.xlu0 0
      %628 = vperm.xlu0 %627, %v546
      %v629 = vpop.permute.xlu0 %628
      %632 = vset.pattern.permute.xlu0 0
      %633 = vperm.xlu0 %632, %v547
      %v634 = vpop.permute.xlu0 %633
      %637 = vset.pattern.permute.xlu0 0
      %638 = vperm.xlu0 %637, %v548
      %v639 = vpop.permute.xlu0 %638
      %642 = vset.pattern.permute.xlu0 0
      %643 = vperm.xlu0 %642, %v549
      %v644 = vpop.permute.xlu0 %643
      %647 = vset.pattern.permute.xlu0 0
      %648 = vperm.xlu0 %647, %v550
      %v649 = vpop.permute.xlu0 %648
      %652 = vset.pattern.permute.xlu0 0
      %653 = vperm.xlu0 %652, %v551
      %v654 = vpop.permute.xlu0 %653
      %657 = vset.pattern.permute.xlu0 0
      %658 = vperm.xlu0 %657, %v552
      %v659 = vpop.permute.xlu0 %658
      %662 = vset.pattern.permute.xlu0 0
      %663 = vperm.xlu0 %662, %v553
      %v664 = vpop.permute.xlu0 %663
      %667 = vset.pattern.permute.xlu0 0
      %668 = vperm.xlu0 %667, %v554
      %v669 = vpop.permute.xlu0 %668
      %672 = vset.pattern.permute.xlu0 0
      %673 = vperm.xlu0 %672, %v555
      %v674 = vpop.permute.xlu0 %673
      %677 = vset.pattern.permute.xlu0 0
      %678 = vperm.xlu0 %677, %v556
      %v679 = vpop.permute.xlu0 %678
      %682 = vset.pattern.permute.xlu0 0
      %683 = vperm.xlu0 %682, %v557
      %v684 = vpop.permute.xlu0 %683
      %687 = vset.pattern.permute.xlu0 0
      %688 = vperm.xlu0 %687, %v558
      %v689 = vpop.permute.xlu0 %688
      %692 = vset.pattern.permute.xlu0 0
      %693 = vperm.xlu0 %692, %v559
      %v694 = vpop.permute.xlu0 %693
      %697 = vset.pattern.permute.xlu0 0
      %698 = vperm.xlu0 %697, %v560
      %v699 = vpop.permute.xlu0 %698
      %702 = vset.pattern.permute.xlu0 0
      %703 = vperm.xlu0 %702, %v561
      %v704 = vpop.permute.xlu0 %703
      %707 = vset.pattern.permute.xlu0 0
      %708 = vperm.xlu0 %707, %v562
      %v709 = vpop.permute.xlu0 %708
      %712 = vset.pattern.permute.xlu0 0
      %713 = vperm.xlu0 %712, %v563
      %v714 = vpop.permute.xlu0 %713
      %717 = vset.pattern.permute.xlu0 0
      %718 = vperm.xlu0 %717, %v564
      %v719 = vpop.permute.xlu0 %718
      %722 = vset.pattern.permute.xlu0 0
      %723 = vperm.xlu0 %722, %v565
      %v724 = vpop.permute.xlu0 %723
      %v726 = vmul.f32 %v569, 0.0
      %v727 = vmul.f32 %v574, 0.0
      %v728 = vmul.f32 %v532, %v579
      %v729 = vmul.f32 %v438, %v584
      %v730 = vmul.f32 %v440, %v589
      %v731 = vmul.f32 %v442, %v594
      %v732 = vmul.f32 %v444, %v599
      %v733 = vmul.f32 %v446, %v604
      %v734 = vmul.f32 %v448, %v609
      %v735 = vmul.f32 %v450, %v614
      %v736 = vmul.f32 %v452, %v619
      %v737 = vmul.f32 %v454, %v624
      %v738 = vmul.f32 %v456, %v629
      %v739 = vmul.f32 %v458, %v634
      %v740 = vmul.f32 %v460, %v639
      %v741 = vmul.f32 %v462, %v644
      %v742 = vmul.f32 %v464, %v649
      %v743 = vmul.f32 %v466, %v654
      %v744 = vmul.f32 %v468, %v659
      %v745 = vmul.f32 %v470, %v664
      %v746 = vmul.f32 %v472, %v669
      %v747 = vmul.f32 %v474, %v674
      %v748 = vmul.f32 %v476, %v679
      %v749 = vmul.f32 %v478, %v684
      %v750 = vmul.f32 %v480, %v689
      %v751 = vmul.f32 %v482, %v694
      %v752 = vmul.f32 %v484, %v699
      %v753 = vmul.f32 %v486, %v704
      %v754 = vmul.f32 %v488, %v709
      %v755 = vmul.f32 %v490, %v714
      %v756 = vmul.f32 %v492, %v719
      %v757 = vmul.f32 %v494, %v724
      %vm758 = vcmask 31744
      %759 = vst.msk [vmem:[#allocation2] sm:$0xff] %vm758, %v726
      %760 = vst.msk [vmem:[#allocation2 + $0x8] sm:$0xff] %vm758, %v727
      %761 = vst.msk [vmem:[#allocation2 + $0x10] sm:$0xff] %vm758, %v728
      %762 = vst.msk [vmem:[#allocation2 + $0x18] sm:$0xff] %vm758, %v729
      %763 = vst.msk [vmem:[#allocation2 + $0x20] sm:$0xff] %vm758, %v730
      %764 = vst.msk [vmem:[#allocation2 + $0x28] sm:$0xff] %vm758, %v731
      %765 = vst.msk [vmem:[#allocation2 + $0x30] sm:$0xff] %vm758, %v732
      %766 = vst.msk [vmem:[#allocation2 + $0x38] sm:$0xff] %vm758, %v733
      %767 = vst.msk [vmem:[#allocation2 + $0x40] sm:$0xff] %vm758, %v734
      %768 = vst.msk [vmem:[#allocation2 + $0x48] sm:$0xff] %vm758, %v735
      %769 = vst.msk [vmem:[#allocation2 + $0x50] sm:$0xff] %vm758, %v736
      %770 = vst.msk [vmem:[#allocation2 + $0x58] sm:$0xff] %vm758, %v737
      %771 = vst.msk [vmem:[#allocation2 + $0x60] sm:$0xff] %vm758, %v738
      %772 = vst.msk [vmem:[#allocation2 + $0x68] sm:$0xff] %vm758, %v739
      %773 = vst.msk [vmem:[#allocation2 + $0x70] sm:$0xff] %vm758, %v740
      %774 = vst.msk [vmem:[#allocation2 + $0x78] sm:$0xff] %vm758, %v741
      %775 = vst.msk [vmem:[#allocation2 + $0x80] sm:$0xff] %vm758, %v742
      %776 = vst.msk [vmem:[#allocation2 + $0x88] sm:$0xff] %vm758, %v743
      %777 = vst.msk [vmem:[#allocation2 + $0x90] sm:$0xff] %vm758, %v744
      %778 = vst.msk [vmem:[#allocation2 + $0x98] sm:$0xff] %vm758, %v745
      %779 = vst.msk [vmem:[#allocation2 + $0xa0] sm:$0xff] %vm758, %v746
      %780 = vst.msk [vmem:[#allocation2 + $0xa8] sm:$0xff] %vm758, %v747
      %781 = vst.msk [vmem:[#allocation2 + $0xb0] sm:$0xff] %vm758, %v748
      %782 = vst.msk [vmem:[#allocation2 + $0xb8] sm:$0xff] %vm758, %v749
      %783 = vst.msk [vmem:[#allocation2 + $0xc0] sm:$0xff] %vm758, %v750
      %784 = vst.msk [vmem:[#allocation2 + $0xc8] sm:$0xff] %vm758, %v751
      %785 = vst.msk [vmem:[#allocation2 + $0xd0] sm:$0xff] %vm758, %v752
      %786 = vst.msk [vmem:[#allocation2 + $0xd8] sm:$0xff] %vm758, %v753
      %787 = vst.msk [vmem:[#allocation2 + $0xe0] sm:$0xff] %vm758, %v754
      %788 = vst.msk [vmem:[#allocation2 + $0xe8] sm:$0xff] %vm758, %v755
      %789 = vst.msk [vmem:[#allocation2 + $0xf0] sm:$0xff] %vm758, %v756
      %790 = vst.msk [vmem:[#allocation2 + $0xf8] sm:$0xff] %vm758, %v757
      %v791 = vld [vmem:[%s4] sm:$0xff]
      %v792 = vld [vmem:[%s4 + $0x8] sm:$0xff]
      %v793 = vld [vmem:[%s4 + $0x10] sm:$0xff]
      %v794 = vld [vmem:[%s4 + $0x18] sm:$0xff]
      %v795 = vld [vmem:[%s4 + $0x20] sm:$0xff]
      %v796 = vld [vmem:[%s4 + $0x28] sm:$0xff]
      %v797 = vld [vmem:[%s4 + $0x30] sm:$0xff]
      %v798 = vld [vmem:[%s4 + $0x38] sm:$0xff]
      %v799 = vld [vmem:[%s4 + $0x40] sm:$0xff]
      %v800 = vld [vmem:[%s4 + $0x48] sm:$0xff]
      %v801 = vld [vmem:[%s4 + $0x50] sm:$0xff]
      %v802 = vld [vmem:[%s4 + $0x58] sm:$0xff]
      %v803 = vld [vmem:[%s4 + $0x60] sm:$0xff]
      %v804 = vld [vmem:[%s4 + $0x68] sm:$0xff]
      %v805 = vld [vmem:[%s4 + $0x70] sm:$0xff]
      %v806 = vld [vmem:[%s4 + $0x78] sm:$0xff]
      %v807 = vld [vmem:[%s4 + $0x80] sm:$0xff]
      %v808 = vld [vmem:[%s4 + $0x88] sm:$0xff]
      %v809 = vld [vmem:[%s4 + $0x90] sm:$0xff]
      %v810 = vld [vmem:[%s4 + $0x98] sm:$0xff]
      %v811 = vld [vmem:[%s4 + $0xa0] sm:$0xff]
      %v812 = vld [vmem:[%s4 + $0xa8] sm:$0xff]
      %v813 = vld [vmem:[%s4 + $0xb0] sm:$0xff]
      %v814 = vld [vmem:[%s4 + $0xb8] sm:$0xff]
      %v815 = vld [vmem:[%s4 + $0xc0] sm:$0xff]
      %v816 = vld [vmem:[%s4 + $0xc8] sm:$0xff]
      %v817 = vld [vmem:[%s4 + $0xd0] sm:$0xff]
      %v818 = vld [vmem:[%s4 + $0xd8] sm:$0xff]
      %v819 = vld [vmem:[%s4 + $0xe0] sm:$0xff]
      %v820 = vld [vmem:[%s4 + $0xe8] sm:$0xff]
      %v821 = vld [vmem:[%s4 + $0xf0] sm:$0xff]
      %v822 = vld [vmem:[%s4 + $0xf8] sm:$0xff]
      %824 = vset.pattern.permute.xlu0 1
      %825 = vperm.xlu0 %824, %v791
      %v826 = vpop.permute.xlu0 %825
      %828 = vset.pattern.permute.xlu0 1
      %829 = vperm.xlu0 %828, %v792
      %v830 = vpop.permute.xlu0 %829
      %832 = vset.pattern.permute.xlu0 1
      %833 = vperm.xlu0 %832, %v793
      %v834 = vpop.permute.xlu0 %833
      %836 = vset.pattern.permute.xlu0 1
      %837 = vperm.xlu0 %836, %v794
      %v838 = vpop.permute.xlu0 %837
      %840 = vset.pattern.permute.xlu0 1
      %841 = vperm.xlu0 %840, %v795
      %v842 = vpop.permute.xlu0 %841
      %844 = vset.pattern.permute.xlu0 1
      %845 = vperm.xlu0 %844, %v796
      %v846 = vpop.permute.xlu0 %845
      %848 = vset.pattern.permute.xlu0 1
      %849 = vperm.xlu0 %848, %v797
      %v850 = vpop.permute.xlu0 %849
      %852 = vset.pattern.permute.xlu0 1
      %853 = vperm.xlu0 %852, %v798
      %v854 = vpop.permute.xlu0 %853
      %856 = vset.pattern.permute.xlu0 1
      %857 = vperm.xlu0 %856, %v799
      %v858 = vpop.permute.xlu0 %857
      %860 = vset.pattern.permute.xlu0 1
      %861 = vperm.xlu0 %860, %v800
      %v862 = vpop.permute.xlu0 %861
      %864 = vset.pattern.permute.xlu0 1
      %865 = vperm.xlu0 %864, %v801
      %v866 = vpop.permute.xlu0 %865
      %868 = vset.pattern.permute.xlu0 1
      %869 = vperm.xlu0 %868, %v802
      %v870 = vpop.permute.xlu0 %869
      %872 = vset.pattern.permute.xlu0 1
      %873 = vperm.xlu0 %872, %v803
      %v874 = vpop.permute.xlu0 %873
      %876 = vset.pattern.permute.xlu0 1
      %877 = vperm.xlu0 %876, %v804
      %v878 = vpop.permute.xlu0 %877
      %880 = vset.pattern.permute.xlu0 1
      %881 = vperm.xlu0 %880, %v805
      %v882 = vpop.permute.xlu0 %881
      %884 = vset.pattern.permute.xlu0 1
      %885 = vperm.xlu0 %884, %v806
      %v886 = vpop.permute.xlu0 %885
      %888 = vset.pattern.permute.xlu0 1
      %889 = vperm.xlu0 %888, %v807
      %v890 = vpop.permute.xlu0 %889
      %892 = vset.pattern.permute.xlu0 1
      %893 = vperm.xlu0 %892, %v808
      %v894 = vpop.permute.xlu0 %893
      %896 = vset.pattern.permute.xlu0 1
      %897 = vperm.xlu0 %896, %v809
      %v898 = vpop.permute.xlu0 %897
      %900 = vset.pattern.permute.xlu0 1
      %901 = vperm.xlu0 %900, %v810
      %v902 = vpop.permute.xlu0 %901
      %904 = vset.pattern.permute.xlu0 1
      %905 = vperm.xlu0 %904, %v811
      %v906 = vpop.permute.xlu0 %905
      %908 = vset.pattern.permute.xlu0 1
      %909 = vperm.xlu0 %908, %v812
      %v910 = vpop.permute.xlu0 %909
      %912 = vset.pattern.permute.xlu0 1
      %913 = vperm.xlu0 %912, %v813
      %v914 = vpop.permute.xlu0 %913
      %916 = vset.pattern.permute.xlu0 1
      %917 = vperm.xlu0 %916, %v814
      %v918 = vpop.permute.xlu0 %917
      %920 = vset.pattern.permute.xlu0 1
      %921 = vperm.xlu0 %920, %v815
      %v922 = vpop.permute.xlu0 %921
      %924 = vset.pattern.permute.xlu0 1
      %925 = vperm.xlu0 %924, %v816
      %v926 = vpop.permute.xlu0 %925
      %928 = vset.pattern.permute.xlu0 1
      %929 = vperm.xlu0 %928, %v817
      %v930 = vpop.permute.xlu0 %929
      %932 = vset.pattern.permute.xlu0 1
      %933 = vperm.xlu0 %932, %v818
      %v934 = vpop.permute.xlu0 %933
      %936 = vset.pattern.permute.xlu0 1
      %937 = vperm.xlu0 %936, %v819
      %v938 = vpop.permute.xlu0 %937
      %940 = vset.pattern.permute.xlu0 1
      %941 = vperm.xlu0 %940, %v820
      %v942 = vpop.permute.xlu0 %941
      %944 = vset.pattern.permute.xlu0 1
      %945 = vperm.xlu0 %944, %v821
      %v946 = vpop.permute.xlu0 %945
      %948 = vset.pattern.permute.xlu0 1
      %949 = vperm.xlu0 %948, %v822
      %v950 = vpop.permute.xlu0 %949
      %v951 = vrot.slane %v826, 7
      %v952 = vrot.slane %v830, 7
      %v953 = vsel %vm435, %v951, %v952
      %v954 = vrot.slane %v834, 7
      %v955 = vsel %vm435, %v952, %v954
      %v956 = vrot.slane %v838, 7
      %v957 = vsel %vm435, %v954, %v956
      %v958 = vrot.slane %v842, 7
      %v959 = vsel %vm435, %v956, %v958
      %v960 = vrot.slane %v846, 7
      %v961 = vsel %vm435, %v958, %v960
      %v962 = vrot.slane %v850, 7
      %v963 = vsel %vm435, %v960, %v962
      %v964 = vrot.slane %v854, 7
      %v965 = vsel %vm435, %v962, %v964
      %v966 = vrot.slane %v858, 7
      %v967 = vsel %vm435, %v964, %v966
      %v968 = vrot.slane %v862, 7
      %v969 = vsel %vm435, %v966, %v968
      %v970 = vrot.slane %v866, 7
      %v971 = vsel %vm435, %v968, %v970
      %v972 = vrot.slane %v870, 7
      %v973 = vsel %vm435, %v970, %v972
      %v974 = vrot.slane %v874, 7
      %v975 = vsel %vm435, %v972, %v974
      %v976 = vrot.slane %v878, 7
      %v977 = vsel %vm435, %v974, %v976
      %v978 = vrot.slane %v882, 7
      %v979 = vsel %vm435, %v976, %v978
      %v980 = vrot.slane %v886, 7
      %v981 = vsel %vm435, %v978, %v980
      %v982 = vrot.slane %v890, 7
      %v983 = vsel %vm435, %v980, %v982
      %v984 = vrot.slane %v894, 7
      %v985 = vsel %vm435, %v982, %v984
      %v986 = vrot.slane %v898, 7
      %v987 = vsel %vm435, %v984, %v986
      %v988 = vrot.slane %v902, 7
      %v989 = vsel %vm435, %v986, %v988
      %v990 = vrot.slane %v906, 7
      %v991 = vsel %vm435, %v988, %v990
      %v992 = vrot.slane %v910, 7
      %v993 = vsel %vm435, %v990, %v992
      %v994 = vrot.slane %v914, 7
      %v995 = vsel %vm435, %v992, %v994
      %v996 = vrot.slane %v918, 7
      %v997 = vsel %vm435, %v994, %v996
      %v998 = vrot.slane %v922, 7
      %v999 = vsel %vm435, %v996, %v998
      %v1000 = vrot.slane %v926, 7
      %v1001 = vsel %vm435, %v998, %v1000
      %v1002 = vrot.slane %v930, 7
      %v1003 = vsel %vm435, %v1000, %v1002
      %v1004 = vrot.slane %v934, 7
      %v1005 = vsel %vm435, %v1002, %v1004
      %v1006 = vrot.slane %v938, 7
      %v1007 = vsel %vm435, %v1004, %v1006
      %v1008 = vrot.slane %v942, 7
      %v1009 = vsel %vm435, %v1006, %v1008
      %v1010 = vrot.slane %v946, 7
      %v1011 = vsel %vm435, %v1008, %v1010
      %v1012 = vrot.slane %v950, 7
      %v1013 = vsel %vm435, %v1010, %v1012
      %v1047 = vmul.f32 %v951, 0.0
      %v1048 = vmul.f32 %v953, 0.0
      %v1049 = vmul.f32 %v532, %v955
      %v1050 = vmul.f32 %v438, %v957
      %v1051 = vmul.f32 %v440, %v959
      %v1052 = vmul.f32 %v442, %v961
      %v1053 = vmul.f32 %v444, %v963
      %v1054 = vmul.f32 %v446, %v965
      %v1055 = vmul.f32 %v448, %v967
      %v1056 = vmul.f32 %v450, %v969
      %v1057 = vmul.f32 %v452, %v971
      %v1058 = vmul.f32 %v454, %v973
      %v1059 = vmul.f32 %v456, %v975
      %v1060 = vmul.f32 %v458, %v977
      %v1061 = vmul.f32 %v460, %v979
      %v1062 = vmul.f32 %v462, %v981
      %v1063 = vmul.f32 %v464, %v983
      %v1064 = vmul.f32 %v466, %v985
      %v1065 = vmul.f32 %v468, %v987
      %v1066 = vmul.f32 %v470, %v989
      %v1067 = vmul.f32 %v472, %v991
      %v1068 = vmul.f32 %v474, %v993
      %v1069 = vmul.f32 %v476, %v995
      %v1070 = vmul.f32 %v478, %v997
      %v1071 = vmul.f32 %v480, %v999
      %v1072 = vmul.f32 %v482, %v1001
      %v1073 = vmul.f32 %v484, %v1003
      %v1074 = vmul.f32 %v486, %v1005
      %v1075 = vmul.f32 %v488, %v1007
      %v1076 = vmul.f32 %v490, %v1009
      %v1077 = vmul.f32 %v492, %v1011
      %v1078 = vmul.f32 %v494, %v1013
      %v1079 = vmul.f32 %v496, %v1012
      %1113 = vrot.lane.b32.xlu0 %v1047, 4
      %v1114 = vpop.permute.xlu0 %1113
      %1115 = vrot.lane.b32.xlu0 %v1048, 4
      %v1116 = vpop.permute.xlu0 %1115
      %1117 = vrot.lane.b32.xlu0 %v1049, 4
      %v1118 = vpop.permute.xlu0 %1117
      %1119 = vrot.lane.b32.xlu0 %v1050, 4
      %v1120 = vpop.permute.xlu0 %1119
      %1121 = vrot.lane.b32.xlu0 %v1051, 4
      %v1122 = vpop.permute.xlu0 %1121
      %1123 = vrot.lane.b32.xlu0 %v1052, 4
      %v1124 = vpop.permute.xlu0 %1123
      %1125 = vrot.lane.b32.xlu0 %v1053, 4
      %v1126 = vpop.permute.xlu0 %1125
      %1127 = vrot.lane.b32.xlu0 %v1054, 4
      %v1128 = vpop.permute.xlu0 %1127
      %1129 = vrot.lane.b32.xlu0 %v1055, 4
      %v1130 = vpop.permute.xlu0 %1129
      %1131 = vrot.lane.b32.xlu0 %v1056, 4
      %v1132 = vpop.permute.xlu0 %1131
      %1133 = vrot.lane.b32.xlu0 %v1057, 4
      %v1134 = vpop.permute.xlu0 %1133
      %1135 = vrot.lane.b32.xlu0 %v1058, 4
      %v1136 = vpop.permute.xlu0 %1135
      %1137 = vrot.lane.b32.xlu0 %v1059, 4
      %v1138 = vpop.permute.xlu0 %1137
      %1139 = vrot.lane.b32.xlu0 %v1060, 4
      %v1140 = vpop.permute.xlu0 %1139
      %1141 = vrot.lane.b32.xlu0 %v1061, 4
      %v1142 = vpop.permute.xlu0 %1141
      %1143 = vrot.lane.b32.xlu0 %v1062, 4
      %v1144 = vpop.permute.xlu0 %1143
      %1145 = vrot.lane.b32.xlu0 %v1063, 4
      %v1146 = vpop.permute.xlu0 %1145
      %1147 = vrot.lane.b32.xlu0 %v1064, 4
      %v1148 = vpop.permute.xlu0 %1147
      %1149 = vrot.lane.b32.xlu0 %v1065, 4
      %v1150 = vpop.permute.xlu0 %1149
      %1151 = vrot.lane.b32.xlu0 %v1066, 4
      %v1152 = vpop.permute.xlu0 %1151
      %1153 = vrot.lane.b32.xlu0 %v1067, 4
      %v1154 = vpop.permute.xlu0 %1153
      %1155 = vrot.lane.b32.xlu0 %v1068, 4
      %v1156 = vpop.permute.xlu0 %1155
      %1157 = vrot.lane.b32.xlu0 %v1069, 4
      %v1158 = vpop.permute.xlu0 %1157
      %1159 = vrot.lane.b32.xlu0 %v1070, 4
      %v1160 = vpop.permute.xlu0 %1159
      %1161 = vrot.lane.b32.xlu0 %v1071, 4
      %v1162 = vpop.permute.xlu0 %1161
      %1163 = vrot.lane.b32.xlu0 %v1072, 4
      %v1164 = vpop.permute.xlu0 %1163
      %1165 = vrot.lane.b32.xlu0 %v1073, 4
      %v1166 = vpop.permute.xlu0 %1165
      %1167 = vrot.lane.b32.xlu0 %v1074, 4
      %v1168 = vpop.permute.xlu0 %1167
      %1169 = vrot.lane.b32.xlu0 %v1075, 4
      %v1170 = vpop.permute.xlu0 %1169
      %1171 = vrot.lane.b32.xlu0 %v1076, 4
      %v1172 = vpop.permute.xlu0 %1171
      %1173 = vrot.lane.b32.xlu0 %v1077, 4
      %v1174 = vpop.permute.xlu0 %1173
      %1175 = vrot.lane.b32.xlu0 %v1078, 4
      %v1176 = vpop.permute.xlu0 %1175
      %1177 = vrot.lane.b32.xlu0 %v1079, 4
      %v1178 = vpop.permute.xlu0 %1177
      %vm1212 = vcmask 64545
      %1213 = vst.msk [vmem:[#allocation2 - $0x1] sm:$0xfe] %vm1212, %v1114
      %vm1214 = vcmask 64544
      %1215 = vst.msk [vmem:[#allocation2 + $0x7] sm:$0xff] %vm1214, %v1116
      %1216 = vst.msk [vmem:[#allocation2 + $0xf] sm:$0xff] %vm1214, %v1118
      %1217 = vst.msk [vmem:[#allocation2 + $0x17] sm:$0xff] %vm1214, %v1120
      %1218 = vst.msk [vmem:[#allocation2 + $0x1f] sm:$0xff] %vm1214, %v1122
      %1219 = vst.msk [vmem:[#allocation2 + $0x27] sm:$0xff] %vm1214, %v1124
      %1220 = vst.msk [vmem:[#allocation2 + $0x2f] sm:$0xff] %vm1214, %v1126
      %1221 = vst.msk [vmem:[#allocation2 + $0x37] sm:$0xff] %vm1214, %v1128
      %1222 = vst.msk [vmem:[#allocation2 + $0x3f] sm:$0xff] %vm1214, %v1130
      %1223 = vst.msk [vmem:[#allocation2 + $0x47] sm:$0xff] %vm1214, %v1132
      %1224 = vst.msk [vmem:[#allocation2 + $0x4f] sm:$0xff] %vm1214, %v1134
      %1225 = vst.msk [vmem:[#allocation2 + $0x57] sm:$0xff] %vm1214, %v1136
      %1226 = vst.msk [vmem:[#allocation2 + $0x5f] sm:$0xff] %vm1214, %v1138
      %1227 = vst.msk [vmem:[#allocation2 + $0x67] sm:$0xff] %vm1214, %v1140
      %1228 = vst.msk [vmem:[#allocation2 + $0x6f] sm:$0xff] %vm1214, %v1142
      %1229 = vst.msk [vmem:[#allocation2 + $0x77] sm:$0xff] %vm1214, %v1144
      %1230 = vst.msk [vmem:[#allocation2 + $0x7f] sm:$0xff] %vm1214, %v1146
      %1231 = vst.msk [vmem:[#allocation2 + $0x87] sm:$0xff] %vm1214, %v1148
      %1232 = vst.msk [vmem:[#allocation2 + $0x8f] sm:$0xff] %vm1214, %v1150
      %1233 = vst.msk [vmem:[#allocation2 + $0x97] sm:$0xff] %vm1214, %v1152
      %1234 = vst.msk [vmem:[#allocation2 + $0x9f] sm:$0xff] %vm1214, %v1154
      %1235 = vst.msk [vmem:[#allocation2 + $0xa7] sm:$0xff] %vm1214, %v1156
      %1236 = vst.msk [vmem:[#allocation2 + $0xaf] sm:$0xff] %vm1214, %v1158
      %1237 = vst.msk [vmem:[#allocation2 + $0xb7] sm:$0xff] %vm1214, %v1160
      %1238 = vst.msk [vmem:[#allocation2 + $0xbf] sm:$0xff] %vm1214, %v1162
      %1239 = vst.msk [vmem:[#allocation2 + $0xc7] sm:$0xff] %vm1214, %v1164
      %1240 = vst.msk [vmem:[#allocation2 + $0xcf] sm:$0xff] %vm1214, %v1166
      %1241 = vst.msk [vmem:[#allocation2 + $0xd7] sm:$0xff] %vm1214, %v1168
      %1242 = vst.msk [vmem:[#allocation2 + $0xdf] sm:$0xff] %vm1214, %v1170
      %1243 = vst.msk [vmem:[#allocation2 + $0xe7] sm:$0xff] %vm1214, %v1172
      %1244 = vst.msk [vmem:[#allocation2 + $0xef] sm:$0xff] %vm1214, %v1174
      %1245 = vst.msk [vmem:[#allocation2 + $0xf7] sm:$0xff] %vm1214, %v1176
      %vm1246 = vcmask 57376
      %1247 = vst.msk [vmem:[#allocation2 + $0xff] sm:$0x1] %vm1246, %v1178
      %v1248 = vld [vmem:[%s4] sm:$0xff]
      %v1249 = vld [vmem:[%s4 + $0x8] sm:$0xff]
      %v1250 = vld [vmem:[%s4 + $0x10] sm:$0xff]
      %v1251 = vld [vmem:[%s4 + $0x18] sm:$0xff]
      %v1252 = vld [vmem:[%s4 + $0x20] sm:$0xff]
      %v1253 = vld [vmem:[%s4 + $0x28] sm:$0xff]
      %v1254 = vld [vmem:[%s4 + $0x30] sm:$0xff]
      %v1255 = vld [vmem:[%s4 + $0x38] sm:$0xff]
      %v1256 = vld [vmem:[%s4 + $0x40] sm:$0xff]
      %v1257 = vld [vmem:[%s4 + $0x48] sm:$0xff]
      %v1258 = vld [vmem:[%s4 + $0x50] sm:$0xff]
      %v1259 = vld [vmem:[%s4 + $0x58] sm:$0xff]
      %v1260 = vld [vmem:[%s4 + $0x60] sm:$0xff]
      %v1261 = vld [vmem:[%s4 + $0x68] sm:$0xff]
      %v1262 = vld [vmem:[%s4 + $0x70] sm:$0xff]
      %v1263 = vld [vmem:[%s4 + $0x78] sm:$0xff]
      %v1264 = vld [vmem:[%s4 + $0x80] sm:$0xff]
      %v1265 = vld [vmem:[%s4 + $0x88] sm:$0xff]
      %v1266 = vld [vmem:[%s4 + $0x90] sm:$0xff]
      %v1267 = vld [vmem:[%s4 + $0x98] sm:$0xff]
      %v1268 = vld [vmem:[%s4 + $0xa0] sm:$0xff]
      %v1269 = vld [vmem:[%s4 + $0xa8] sm:$0xff]
      %v1270 = vld [vmem:[%s4 + $0xb0] sm:$0xff]
      %v1271 = vld [vmem:[%s4 + $0xb8] sm:$0xff]
      %v1272 = vld [vmem:[%s4 + $0xc0] sm:$0xff]
      %v1273 = vld [vmem:[%s4 + $0xc8] sm:$0xff]
      %v1274 = vld [vmem:[%s4 + $0xd0] sm:$0xff]
      %v1275 = vld [vmem:[%s4 + $0xd8] sm:$0xff]
      %v1276 = vld [vmem:[%s4 + $0xe0] sm:$0xff]
      %v1277 = vld [vmem:[%s4 + $0xe8] sm:$0xff]
      %v1278 = vld [vmem:[%s4 + $0xf0] sm:$0xff]
      %v1279 = vld [vmem:[%s4 + $0xf8] sm:$0xff]
      %1281 = vset.pattern.permute.xlu0 2
      %1282 = vperm.xlu0 %1281, %v1248
      %v1283 = vpop.permute.xlu0 %1282
      %1285 = vset.pattern.permute.xlu0 2
      %1286 = vperm.xlu0 %1285, %v1249
      %v1287 = vpop.permute.xlu0 %1286
      %1289 = vset.pattern.permute.xlu0 2
      %1290 = vperm.xlu0 %1289, %v1250
      %v1291 = vpop.permute.xlu0 %1290
      %1293 = vset.pattern.permute.xlu0 2
      %1294 = vperm.xlu0 %1293, %v1251
      %v1295 = vpop.permute.xlu0 %1294
      %1297 = vset.pattern.permute.xlu0 2
      %1298 = vperm.xlu0 %1297, %v1252
      %v1299 = vpop.permute.xlu0 %1298
      %1301 = vset.pattern.permute.xlu0 2
      %1302 = vperm.xlu0 %1301, %v1253
      %v1303 = vpop.permute.xlu0 %1302
      %1305 = vset.pattern.permute.xlu0 2
      %1306 = vperm.xlu0 %1305, %v1254
      %v1307 = vpop.permute.xlu0 %1306
      %1309 = vset.pattern.permute.xlu0 2
      %1310 = vperm.xlu0 %1309, %v1255
      %v1311 = vpop.permute.xlu0 %1310
      %1313 = vset.pattern.permute.xlu0 2
      %1314 = vperm.xlu0 %1313, %v1256
      %v1315 = vpop.permute.xlu0 %1314
      %1317 = vset.pattern.permute.xlu0 2
      %1318 = vperm.xlu0 %1317, %v1257
      %v1319 = vpop.permute.xlu0 %1318
      %1321 = vset.pattern.permute.xlu0 2
      %1322 = vperm.xlu0 %1321, %v1258
      %v1323 = vpop.permute.xlu0 %1322
      %1325 = vset.pattern.permute.xlu0 2
      %1326 = vperm.xlu0 %1325, %v1259
      %v1327 = vpop.permute.xlu0 %1326
      %1329 = vset.pattern.permute.xlu0 2
      %1330 = vperm.xlu0 %1329, %v1260
      %v1331 = vpop.permute.xlu0 %1330
      %1333 = vset.pattern.permute.xlu0 2
      %1334 = vperm.xlu0 %1333, %v1261
      %v1335 = vpop.permute.xlu0 %1334
      %1337 = vset.pattern.permute.xlu0 2
      %1338 = vperm.xlu0 %1337, %v1262
      %v1339 = vpop.permute.xlu0 %1338
      %1341 = vset.pattern.permute.xlu0 2
      %1342 = vperm.xlu0 %1341, %v1263
      %v1343 = vpop.permute.xlu0 %1342
      %1345 = vset.pattern.permute.xlu0 2
      %1346 = vperm.xlu0 %1345, %v1264
      %v1347 = vpop.permute.xlu0 %1346
      %1349 = vset.pattern.permute.xlu0 2
      %1350 = vperm.xlu0 %1349, %v1265
      %v1351 = vpop.permute.xlu0 %1350
      %1353 = vset.pattern.permute.xlu0 2
      %1354 = vperm.xlu0 %1353, %v1266
      %v1355 = vpop.permute.xlu0 %1354
      %1357 = vset.pattern.permute.xlu0 2
      %1358 = vperm.xlu0 %1357, %v1267
      %v1359 = vpop.permute.xlu0 %1358
      %1361 = vset.pattern.permute.xlu0 2
      %1362 = vperm.xlu0 %1361, %v1268
      %v1363 = vpop.permute.xlu0 %1362
      %1365 = vset.pattern.permute.xlu0 2
      %1366 = vperm.xlu0 %1365, %v1269
      %v1367 = vpop.permute.xlu0 %1366
      %1369 = vset.pattern.permute.xlu0 2
      %1370 = vperm.xlu0 %1369, %v1270
      %v1371 = vpop.permute.xlu0 %1370
      %1373 = vset.pattern.permute.xlu0 2
      %1374 = vperm.xlu0 %1373, %v1271
      %v1375 = vpop.permute.xlu0 %1374
      %1377 = vset.pattern.permute.xlu0 2
      %1378 = vperm.xlu0 %1377, %v1272
      %v1379 = vpop.permute.xlu0 %1378
      %1381 = vset.pattern.permute.xlu0 2
      %1382 = vperm.xlu0 %1381, %v1273
      %v1383 = vpop.permute.xlu0 %1382
      %1385 = vset.pattern.permute.xlu0 2
      %1386 = vperm.xlu0 %1385, %v1274
      %v1387 = vpop.permute.xlu0 %1386
      %1389 = vset.pattern.permute.xlu0 2
      %1390 = vperm.xlu0 %1389, %v1275
      %v1391 = vpop.permute.xlu0 %1390
      %1393 = vset.pattern.permute.xlu0 2
      %1394 = vperm.xlu0 %1393, %v1276
      %v1395 = vpop.permute.xlu0 %1394
      %1397 = vset.pattern.permute.xlu0 2
      %1398 = vperm.xlu0 %1397, %v1277
      %v1399 = vpop.permute.xlu0 %1398
      %1401 = vset.pattern.permute.xlu0 2
      %1402 = vperm.xlu0 %1401, %v1278
      %v1403 = vpop.permute.xlu0 %1402
      %1405 = vset.pattern.permute.xlu0 2
      %1406 = vperm.xlu0 %1405, %v1279
      %v1407 = vpop.permute.xlu0 %1406
      %vm1408 = vcmask 1041408
      %v1409 = vrot.slane %v1283, 6
      %v1410 = vrot.slane %v1287, 6
      %v1411 = vsel %vm1408, %v1409, %v1410
      %v1412 = vrot.slane %v1291, 6
      %v1413 = vsel %vm1408, %v1410, %v1412
      %v1414 = vrot.slane %v1295, 6
      %v1415 = vsel %vm1408, %v1412, %v1414
      %v1416 = vrot.slane %v1299, 6
      %v1417 = vsel %vm1408, %v1414, %v1416
      %v1418 = vrot.slane %v1303, 6
      %v1419 = vsel %vm1408, %v1416, %v1418
      %v1420 = vrot.slane %v1307, 6
      %v1421 = vsel %vm1408, %v1418, %v1420
      %v1422 = vrot.slane %v1311, 6
      %v1423 = vsel %vm1408, %v1420, %v1422
      %v1424 = vrot.slane %v1315, 6
      %v1425 = vsel %vm1408, %v1422, %v1424
      %v1426 = vrot.slane %v1319, 6
      %v1427 = vsel %vm1408, %v1424, %v1426
      %v1428 = vrot.slane %v1323, 6
      %v1429 = vsel %vm1408, %v1426, %v1428
      %v1430 = vrot.slane %v1327, 6
      %v1431 = vsel %vm1408, %v1428, %v1430
      %v1432 = vrot.slane %v1331, 6
      %v1433 = vsel %vm1408, %v1430, %v1432
      %v1434 = vrot.slane %v1335, 6
      %v1435 = vsel %vm1408, %v1432, %v1434
      %v1436 = vrot.slane %v1339, 6
      %v1437 = vsel %vm1408, %v1434, %v1436
      %v1438 = vrot.slane %v1343, 6
      %v1439 = vsel %vm1408, %v1436, %v1438
      %v1440 = vrot.slane %v1347, 6
      %v1441 = vsel %vm1408, %v1438, %v1440
      %v1442 = vrot.slane %v1351, 6
      %v1443 = vsel %vm1408, %v1440, %v1442
      %v1444 = vrot.slane %v1355, 6
      %v1445 = vsel %vm1408, %v1442, %v1444
      %v1446 = vrot.slane %v1359, 6
      %v1447 = vsel %vm1408, %v1444, %v1446
      %v1448 = vrot.slane %v1363, 6
      %v1449 = vsel %vm1408, %v1446, %v1448
      %v1450 = vrot.slane %v1367, 6
      %v1451 = vsel %vm1408, %v1448, %v1450
      %v1452 = vrot.slane %v1371, 6
      %v1453 = vsel %vm1408, %v1450, %v1452
      %v1454 = vrot.slane %v1375, 6
      %v1455 = vsel %vm1408, %v1452, %v1454
      %v1456 = vrot.slane %v1379, 6
      %v1457 = vsel %vm1408, %v1454, %v1456
      %v1458 = vrot.slane %v1383, 6
      %v1459 = vsel %vm1408, %v1456, %v1458
      %v1460 = vrot.slane %v1387, 6
      %v1461 = vsel %vm1408, %v1458, %v1460
      %v1462 = vrot.slane %v1391, 6
      %v1463 = vsel %vm1408, %v1460, %v1462
      %v1464 = vrot.slane %v1395, 6
      %v1465 = vsel %vm1408, %v1462, %v1464
      %v1466 = vrot.slane %v1399, 6
      %v1467 = vsel %vm1408, %v1464, %v1466
      %v1468 = vrot.slane %v1403, 6
      %v1469 = vsel %vm1408, %v1466, %v1468
      %v1470 = vrot.slane %v1407, 6
      %v1471 = vsel %vm1408, %v1468, %v1470
      %v1505 = vmul.f32 %v1409, 0.0
      %v1506 = vmul.f32 %v1411, 0.0
      %v1507 = vmul.f32 %v532, %v1413
      %v1508 = vmul.f32 %v438, %v1415
      %v1509 = vmul.f32 %v440, %v1417
      %v1510 = vmul.f32 %v442, %v1419
      %v1511 = vmul.f32 %v444, %v1421
      %v1512 = vmul.f32 %v446, %v1423
      %v1513 = vmul.f32 %v448, %v1425
      %v1514 = vmul.f32 %v450, %v1427
      %v1515 = vmul.f32 %v452, %v1429
      %v1516 = vmul.f32 %v454, %v1431
      %v1517 = vmul.f32 %v456, %v1433
      %v1518 = vmul.f32 %v458, %v1435
      %v1519 = vmul.f32 %v460, %v1437
      %v1520 = vmul.f32 %v462, %v1439
      %v1521 = vmul.f32 %v464, %v1441
      %v1522 = vmul.f32 %v466, %v1443
      %v1523 = vmul.f32 %v468, %v1445
      %v1524 = vmul.f32 %v470, %v1447
      %v1525 = vmul.f32 %v472, %v1449
      %v1526 = vmul.f32 %v474, %v1451
      %v1527 = vmul.f32 %v476, %v1453
      %v1528 = vmul.f32 %v478, %v1455
      %v1529 = vmul.f32 %v480, %v1457
      %v1530 = vmul.f32 %v482, %v1459
      %v1531 = vmul.f32 %v484, %v1461
      %v1532 = vmul.f32 %v486, %v1463
      %v1533 = vmul.f32 %v488, %v1465
      %v1534 = vmul.f32 %v490, %v1467
      %v1535 = vmul.f32 %v492, %v1469
      %v1536 = vmul.f32 %v494, %v1471
      %v1537 = vmul.f32 %v496, %v1470
      %1571 = vrot.lane.b32.xlu0 %v1505, 8
      %v1572 = vpop.permute.xlu0 %1571
      %1573 = vrot.lane.b32.xlu0 %v1506, 8
      %v1574 = vpop.permute.xlu0 %1573
      %1575 = vrot.lane.b32.xlu0 %v1507, 8
      %v1576 = vpop.permute.xlu0 %1575
      %1577 = vrot.lane.b32.xlu0 %v1508, 8
      %v1578 = vpop.permute.xlu0 %1577
      %1579 = vrot.lane.b32.xlu0 %v1509, 8
      %v1580 = vpop.permute.xlu0 %1579
      %1581 = vrot.lane.b32.xlu0 %v1510, 8
      %v1582 = vpop.permute.xlu0 %1581
      %1583 = vrot.lane.b32.xlu0 %v1511, 8
      %v1584 = vpop.permute.xlu0 %1583
      %1585 = vrot.lane.b32.xlu0 %v1512, 8
      %v1586 = vpop.permute.xlu0 %1585
      %1587 = vrot.lane.b32.xlu0 %v1513, 8
      %v1588 = vpop.permute.xlu0 %1587
      %1589 = vrot.lane.b32.xlu0 %v1514, 8
      %v1590 = vpop.permute.xlu0 %1589
      %1591 = vrot.lane.b32.xlu0 %v1515, 8
      %v1592 = vpop.permute.xlu0 %1591
      %1593 = vrot.lane.b32.xlu0 %v1516, 8
      %v1594 = vpop.permute.xlu0 %1593
      %1595 = vrot.lane.b32.xlu0 %v1517, 8
      %v1596 = vpop.permute.xlu0 %1595
      %1597 = vrot.lane.b32.xlu0 %v1518, 8
      %v1598 = vpop.permute.xlu0 %1597
      %1599 = vrot.lane.b32.xlu0 %v1519, 8
      %v1600 = vpop.permute.xlu0 %1599
      %1601 = vrot.lane.b32.xlu0 %v1520, 8
      %v1602 = vpop.permute.xlu0 %1601
      %1603 = vrot.lane.b32.xlu0 %v1521, 8
      %v1604 = vpop.permute.xlu0 %1603
      %1605 = vrot.lane.b32.xlu0 %v1522, 8
      %v1606 = vpop.permute.xlu0 %1605
      %1607 = vrot.lane.b32.xlu0 %v1523, 8
      %v1608 = vpop.permute.xlu0 %1607
      %1609 = vrot.lane.b32.xlu0 %v1524, 8
      %v1610 = vpop.permute.xlu0 %1609
      %1611 = vrot.lane.b32.xlu0 %v1525, 8
      %v1612 = vpop.permute.xlu0 %1611
      %1613 = vrot.lane.b32.xlu0 %v1526, 8
      %v1614 = vpop.permute.xlu0 %1613
      %1615 = vrot.lane.b32.xlu0 %v1527, 8
      %v1616 = vpop.permute.xlu0 %1615
      %1617 = vrot.lane.b32.xlu0 %v1528, 8
      %v1618 = vpop.permute.xlu0 %1617
      %1619 = vrot.lane.b32.xlu0 %v1529, 8
      %v1620 = vpop.permute.xlu0 %1619
      %1621 = vrot.lane.b32.xlu0 %v1530, 8
      %v1622 = vpop.permute.xlu0 %1621
      %1623 = vrot.lane.b32.xlu0 %v1531, 8
      %v1624 = vpop.permute.xlu0 %1623
      %1625 = vrot.lane.b32.xlu0 %v1532, 8
      %v1626 = vpop.permute.xlu0 %1625
      %1627 = vrot.lane.b32.xlu0 %v1533, 8
      %v1628 = vpop.permute.xlu0 %1627
      %1629 = vrot.lane.b32.xlu0 %v1534, 8
      %v1630 = vpop.permute.xlu0 %1629
      %1631 = vrot.lane.b32.xlu0 %v1535, 8
      %v1632 = vpop.permute.xlu0 %1631
      %1633 = vrot.lane.b32.xlu0 %v1536, 8
      %v1634 = vpop.permute.xlu0 %1633
      %1635 = vrot.lane.b32.xlu0 %v1537, 8
      %v1636 = vpop.permute.xlu0 %1635
      %vm1670 = vcmask 97346
      %1671 = vst.msk [vmem:[#allocation2 - $0x2] sm:$0xfc] %vm1670, %v1572
      %vm1672 = vcmask 97344
      %1673 = vst.msk [vmem:[#allocation2 + $0x6] sm:$0xff] %vm1672, %v1574
      %1674 = vst.msk [vmem:[#allocation2 + $0xe] sm:$0xff] %vm1672, %v1576
      %1675 = vst.msk [vmem:[#allocation2 + $0x16] sm:$0xff] %vm1672, %v1578
      %1676 = vst.msk [vmem:[#allocation2 + $0x1e] sm:$0xff] %vm1672, %v1580
      %1677 = vst.msk [vmem:[#allocation2 + $0x26] sm:$0xff] %vm1672, %v1582
      %1678 = vst.msk [vmem:[#allocation2 + $0x2e] sm:$0xff] %vm1672, %v1584
      %1679 = vst.msk [vmem:[#allocation2 + $0x36] sm:$0xff] %vm1672, %v1586
      %1680 = vst.msk [vmem:[#allocation2 + $0x3e] sm:$0xff] %vm1672, %v1588
      %1681 = vst.msk [vmem:[#allocation2 + $0x46] sm:$0xff] %vm1672, %v1590
      %1682 = vst.msk [vmem:[#allocation2 + $0x4e] sm:$0xff] %vm1672, %v1592
      %1683 = vst.msk [vmem:[#allocation2 + $0x56] sm:$0xff] %vm1672, %v1594
      %1684 = vst.msk [vmem:[#allocation2 + $0x5e] sm:$0xff] %vm1672, %v1596
      %1685 = vst.msk [vmem:[#allocation2 + $0x66] sm:$0xff] %vm1672, %v1598
      %1686 = vst.msk [vmem:[#allocation2 + $0x6e] sm:$0xff] %vm1672, %v1600
      %1687 = vst.msk [vmem:[#allocation2 + $0x76] sm:$0xff] %vm1672, %v1602
      %1688 = vst.msk [vmem:[#allocation2 + $0x7e] sm:$0xff] %vm1672, %v1604
      %1689 = vst.msk [vmem:[#allocation2 + $0x86] sm:$0xff] %vm1672, %v1606
      %1690 = vst.msk [vmem:[#allocation2 + $0x8e] sm:$0xff] %vm1672, %v1608
      %1691 = vst.msk [vmem:[#allocation2 + $0x96] sm:$0xff] %vm1672, %v1610
      %1692 = vst.msk [vmem:[#allocation2 + $0x9e] sm:$0xff] %vm1672, %v1612
      %1693 = vst.msk [vmem:[#allocation2 + $0xa6] sm:$0xff] %vm1672, %v1614
      %1694 = vst.msk [vmem:[#allocation2 + $0xae] sm:$0xff] %vm1672, %v1616
      %1695 = vst.msk [vmem:[#allocation2 + $0xb6] sm:$0xff] %vm1672, %v1618
      %1696 = vst.msk [vmem:[#allocation2 + $0xbe] sm:$0xff] %vm1672, %v1620
      %1697 = vst.msk [vmem:[#allocation2 + $0xc6] sm:$0xff] %vm1672, %v1622
      %1698 = vst.msk [vmem:[#allocation2 + $0xce] sm:$0xff] %vm1672, %v1624
      %1699 = vst.msk [vmem:[#allocation2 + $0xd6] sm:$0xff] %vm1672, %v1626
      %1700 = vst.msk [vmem:[#allocation2 + $0xde] sm:$0xff] %vm1672, %v1628
      %1701 = vst.msk [vmem:[#allocation2 + $0xe6] sm:$0xff] %vm1672, %v1630
      %1702 = vst.msk [vmem:[#allocation2 + $0xee] sm:$0xff] %vm1672, %v1632
      %1703 = vst.msk [vmem:[#allocation2 + $0xf6] sm:$0xff] %vm1672, %v1634
      %vm1704 = vcmask 91200
      %1705 = vst.msk [vmem:[#allocation2 + $0xfe] sm:$0x3] %vm1704, %v1636
      %v1706 = vld [vmem:[%s4] sm:$0xff]
      %v1707 = vld [vmem:[%s4 + $0x8] sm:$0xff]
      %v1708 = vld [vmem:[%s4 + $0x10] sm:$0xff]
      %v1709 = vld [vmem:[%s4 + $0x18] sm:$0xff]
      %v1710 = vld [vmem:[%s4 + $0x20] sm:$0xff]
      %v1711 = vld [vmem:[%s4 + $0x28] sm:$0xff]
      %v1712 = vld [vmem:[%s4 + $0x30] sm:$0xff]
      %v1713 = vld [vmem:[%s4 + $0x38] sm:$0xff]
      %v1714 = vld [vmem:[%s4 + $0x40] sm:$0xff]
      %v1715 = vld [vmem:[%s4 + $0x48] sm:$0xff]
      %v1716 = vld [vmem:[%s4 + $0x50] sm:$0xff]
      %v1717 = vld [vmem:[%s4 + $0x58] sm:$0xff]
      %v1718 = vld [vmem:[%s4 + $0x60] sm:$0xff]
      %v1719 = vld [vmem:[%s4 + $0x68] sm:$0xff]
      %v1720 = vld [vmem:[%s4 + $0x70] sm:$0xff]
      %v1721 = vld [vmem:[%s4 + $0x78] sm:$0xff]
      %v1722 = vld [vmem:[%s4 + $0x80] sm:$0xff]
      %v1723 = vld [vmem:[%s4 + $0x88] sm:$0xff]
      %v1724 = vld [vmem:[%s4 + $0x90] sm:$0xff]
      %v1725 = vld [vmem:[%s4 + $0x98] sm:$0xff]
      %v1726 = vld [vmem:[%s4 + $0xa0] sm:$0xff]
      %v1727 = vld [vmem:[%s4 + $0xa8] sm:$0xff]
      %v1728 = vld [vmem:[%s4 + $0xb0] sm:$0xff]
      %v1729 = vld [vmem:[%s4 + $0xb8] sm:$0xff]
      %v1730 = vld [vmem:[%s4 + $0xc0] sm:$0xff]
      %v1731 = vld [vmem:[%s4 + $0xc8] sm:$0xff]
      %v1732 = vld [vmem:[%s4 + $0xd0] sm:$0xff]
      %v1733 = vld [vmem:[%s4 + $0xd8] sm:$0xff]
      %v1734 = vld [vmem:[%s4 + $0xe0] sm:$0xff]
      %v1735 = vld [vmem:[%s4 + $0xe8] sm:$0xff]
      %v1736 = vld [vmem:[%s4 + $0xf0] sm:$0xff]
      %v1737 = vld [vmem:[%s4 + $0xf8] sm:$0xff]
      %1739 = vset.pattern.permute.xlu0 3
      %1740 = vperm.xlu0 %1739, %v1706
      %v1741 = vpop.permute.xlu0 %1740
      %1744 = vset.pattern.permute.xlu0 3
      %1745 = vperm.xlu0 %1744, %v1707
      %v1746 = vpop.permute.xlu0 %1745
      %1749 = vset.pattern.permute.xlu0 3
      %1750 = vperm.xlu0 %1749, %v1708
      %v1751 = vpop.permute.xlu0 %1750
      %1754 = vset.pattern.permute.xlu0 3
      %1755 = vperm.xlu0 %1754, %v1709
      %v1756 = vpop.permute.xlu0 %1755
      %1759 = vset.pattern.permute.xlu0 3
      %1760 = vperm.xlu0 %1759, %v1710
      %v1761 = vpop.permute.xlu0 %1760
      %1764 = vset.pattern.permute.xlu0 3
      %1765 = vperm.xlu0 %1764, %v1711
      %v1766 = vpop.permute.xlu0 %1765
      %1769 = vset.pattern.permute.xlu0 3
      %1770 = vperm.xlu0 %1769, %v1712
      %v1771 = vpop.permute.xlu0 %1770
      %1774 = vset.pattern.permute.xlu0 3
      %1775 = vperm.xlu0 %1774, %v1713
      %v1776 = vpop.permute.xlu0 %1775
      %1779 = vset.pattern.permute.xlu0 3
      %1780 = vperm.xlu0 %1779, %v1714
      %v1781 = vpop.permute.xlu0 %1780
      %1784 = vset.pattern.permute.xlu0 3
      %1785 = vperm.xlu0 %1784, %v1715
      %v1786 = vpop.permute.xlu0 %1785
      %1789 = vset.pattern.permute.xlu0 3
      %1790 = vperm.xlu0 %1789, %v1716
      %v1791 = vpop.permute.xlu0 %1790
      %1794 = vset.pattern.permute.xlu0 3
      %1795 = vperm.xlu0 %1794, %v1717
      %v1796 = vpop.permute.xlu0 %1795
      %1799 = vset.pattern.permute.xlu0 3
      %1800 = vperm.xlu0 %1799, %v1718
      %v1801 = vpop.permute.xlu0 %1800
      %1804 = vset.pattern.permute.xlu0 3
      %1805 = vperm.xlu0 %1804, %v1719
      %v1806 = vpop.permute.xlu0 %1805
      %1809 = vset.pattern.permute.xlu0 3
      %1810 = vperm.xlu0 %1809, %v1720
      %v1811 = vpop.permute.xlu0 %1810
      %1814 = vset.pattern.permute.xlu0 3
      %1815 = vperm.xlu0 %1814, %v1721
      %v1816 = vpop.permute.xlu0 %1815
      %1819 = vset.pattern.permute.xlu0 3
      %1820 = vperm.xlu0 %1819, %v1722
      %v1821 = vpop.permute.xlu0 %1820
      %1824 = vset.pattern.permute.xlu0 3
      %1825 = vperm.xlu0 %1824, %v1723
      %v1826 = vpop.permute.xlu0 %1825
      %1829 = vset.pattern.permute.xlu0 3
      %1830 = vperm.xlu0 %1829, %v1724
      %v1831 = vpop.permute.xlu0 %1830
      %1834 = vset.pattern.permute.xlu0 3
      %1835 = vperm.xlu0 %1834, %v1725
      %v1836 = vpop.permute.xlu0 %1835
      %1839 = vset.pattern.permute.xlu0 3
      %1840 = vperm.xlu0 %1839, %v1726
      %v1841 = vpop.permute.xlu0 %1840
      %1844 = vset.pattern.permute.xlu0 3
      %1845 = vperm.xlu0 %1844, %v1727
      %v1846 = vpop.permute.xlu0 %1845
      %1849 = vset.pattern.permute.xlu0 3
      %1850 = vperm.xlu0 %1849, %v1728
      %v1851 = vpop.permute.xlu0 %1850
      %1854 = vset.pattern.permute.xlu0 3
      %1855 = vperm.xlu0 %1854, %v1729
      %v1856 = vpop.permute.xlu0 %1855
      %1859 = vset.pattern.permute.xlu0 3
      %1860 = vperm.xlu0 %1859, %v1730
      %v1861 = vpop.permute.xlu0 %1860
      %1864 = vset.pattern.permute.xlu0 3
      %1865 = vperm.xlu0 %1864, %v1731
      %v1866 = vpop.permute.xlu0 %1865
      %1869 = vset.pattern.permute.xlu0 3
      %1870 = vperm.xlu0 %1869, %v1732
      %v1871 = vpop.permute.xlu0 %1870
      %1874 = vset.pattern.permute.xlu0 3
      %1875 = vperm.xlu0 %1874, %v1733
      %v1876 = vpop.permute.xlu0 %1875
      %1879 = vset.pattern.permute.xlu0 3
      %1880 = vperm.xlu0 %1879, %v1734
      %v1881 = vpop.permute.xlu0 %1880
      %1884 = vset.pattern.permute.xlu0 3
      %1885 = vperm.xlu0 %1884, %v1735
      %v1886 = vpop.permute.xlu0 %1885
      %1889 = vset.pattern.permute.xlu0 3
      %1890 = vperm.xlu0 %1889, %v1736
      %v1891 = vpop.permute.xlu0 %1890
      %1894 = vset.pattern.permute.xlu0 3
      %1895 = vperm.xlu0 %1894, %v1737
      %v1896 = vpop.permute.xlu0 %1895
      %v1898 = vmul.f32 %v532, %v1741
      %v1899 = vmul.f32 %v438, %v1746
      %v1900 = vmul.f32 %v440, %v1751
      %v1901 = vmul.f32 %v442, %v1756
      %v1902 = vmul.f32 %v444, %v1761
      %v1903 = vmul.f32 %v446, %v1766
      %v1904 = vmul.f32 %v448, %v1771
      %v1905 = vmul.f32 %v450, %v1776
      %v1906 = vmul.f32 %v452, %v1781
      %v1907 = vmul.f32 %v454, %v1786
      %v1908 = vmul.f32 %v456, %v1791
      %v1909 = vmul.f32 %v458, %v1796
      %v1910 = vmul.f32 %v460, %v1801
      %v1911 = vmul.f32 %v462, %v1806
      %v1912 = vmul.f32 %v464, %v1811
      %v1913 = vmul.f32 %v466, %v1816
      %v1914 = vmul.f32 %v468, %v1821
      %v1915 = vmul.f32 %v470, %v1826
      %v1916 = vmul.f32 %v472, %v1831
      %v1917 = vmul.f32 %v474, %v1836
      %v1918 = vmul.f32 %v476, %v1841
      %v1919 = vmul.f32 %v478, %v1846
      %v1920 = vmul.f32 %v480, %v1851
      %v1921 = vmul.f32 %v482, %v1856
      %v1922 = vmul.f32 %v484, %v1861
      %v1923 = vmul.f32 %v486, %v1866
      %v1924 = vmul.f32 %v488, %v1871
      %v1925 = vmul.f32 %v490, %v1876
      %v1926 = vmul.f32 %v492, %v1881
      %v1927 = vmul.f32 %v494, %v1886
      %v1928 = vmul.f32 %v496, %v1891
      %v1929 = vmul.f32 %v498, %v1896
      %1962 = vrot.lane.b32.xlu0 %v1898, 12
      %v1963 = vpop.permute.xlu0 %1962
      %1964 = vrot.lane.b32.xlu0 %v1899, 12
      %v1965 = vpop.permute.xlu0 %1964
      %1966 = vrot.lane.b32.xlu0 %v1900, 12
      %v1967 = vpop.permute.xlu0 %1966
      %1968 = vrot.lane.b32.xlu0 %v1901, 12
      %v1969 = vpop.permute.xlu0 %1968
      %1970 = vrot.lane.b32.xlu0 %v1902, 12
      %v1971 = vpop.permute.xlu0 %1970
      %1972 = vrot.lane.b32.xlu0 %v1903, 12
      %v1973 = vpop.permute.xlu0 %1972
      %1974 = vrot.lane.b32.xlu0 %v1904, 12
      %v1975 = vpop.permute.xlu0 %1974
      %1976 = vrot.lane.b32.xlu0 %v1905, 12
      %v1977 = vpop.permute.xlu0 %1976
      %1978 = vrot.lane.b32.xlu0 %v1906, 12
      %v1979 = vpop.permute.xlu0 %1978
      %1980 = vrot.lane.b32.xlu0 %v1907, 12
      %v1981 = vpop.permute.xlu0 %1980
      %1982 = vrot.lane.b32.xlu0 %v1908, 12
      %v1983 = vpop.permute.xlu0 %1982
      %1984 = vrot.lane.b32.xlu0 %v1909, 12
      %v1985 = vpop.permute.xlu0 %1984
      %1986 = vrot.lane.b32.xlu0 %v1910, 12
      %v1987 = vpop.permute.xlu0 %1986
      %1988 = vrot.lane.b32.xlu0 %v1911, 12
      %v1989 = vpop.permute.xlu0 %1988
      %1990 = vrot.lane.b32.xlu0 %v1912, 12
      %v1991 = vpop.permute.xlu0 %1990
      %1992 = vrot.lane.b32.xlu0 %v1913, 12
      %v1993 = vpop.permute.xlu0 %1992
      %1994 = vrot.lane.b32.xlu0 %v1914, 12
      %v1995 = vpop.permute.xlu0 %1994
      %1996 = vrot.lane.b32.xlu0 %v1915, 12
      %v1997 = vpop.permute.xlu0 %1996
      %1998 = vrot.lane.b32.xlu0 %v1916, 12
      %v1999 = vpop.permute.xlu0 %1998
      %2000 = vrot.lane.b32.xlu0 %v1917, 12
      %v2001 = vpop.permute.xlu0 %2000
      %2002 = vrot.lane.b32.xlu0 %v1918, 12
      %v2003 = vpop.permute.xlu0 %2002
      %2004 = vrot.lane.b32.xlu0 %v1919, 12
      %v2005 = vpop.permute.xlu0 %2004
      %2006 = vrot.lane.b32.xlu0 %v1920, 12
      %v2007 = vpop.permute.xlu0 %2006
      %2008 = vrot.lane.b32.xlu0 %v1921, 12
      %v2009 = vpop.permute.xlu0 %2008
      %2010 = vrot.lane.b32.xlu0 %v1922, 12
      %v2011 = vpop.permute.xlu0 %2010
      %2012 = vrot.lane.b32.xlu0 %v1923, 12
      %v2013 = vpop.permute.xlu0 %2012
      %2014 = vrot.lane.b32.xlu0 %v1924, 12
      %v2015 = vpop.permute.xlu0 %2014
      %2016 = vrot.lane.b32.xlu0 %v1925, 12
      %v2017 = vpop.permute.xlu0 %2016
      %2018 = vrot.lane.b32.xlu0 %v1926, 12
      %v2019 = vpop.permute.xlu0 %2018
      %2020 = vrot.lane.b32.xlu0 %v1927, 12
      %v2021 = vpop.permute.xlu0 %2020
      %2022 = vrot.lane.b32.xlu0 %v1928, 12
      %v2023 = vpop.permute.xlu0 %2022
      %2024 = vrot.lane.b32.xlu0 %v1929, 12
      %v2025 = vpop.permute.xlu0 %2024
      %vm2058 = vcmask 130144
      %2059 = vst.msk [vmem:[#allocation2] sm:$0xff] %vm2058, %v1963
      %2060 = vst.msk [vmem:[#allocation2 + $0x8] sm:$0xff] %vm2058, %v1965
      %2061 = vst.msk [vmem:[#allocation2 + $0x10] sm:$0xff] %vm2058, %v1967
      %2062 = vst.msk [vmem:[#allocation2 + $0x18] sm:$0xff] %vm2058, %v1969
      %2063 = vst.msk [vmem:[#allocation2 + $0x20] sm:$0xff] %vm2058, %v1971
      %2064 = vst.msk [vmem:[#allocation2 + $0x28] sm:$0xff] %vm2058, %v1973
      %2065 = vst.msk [vmem:[#allocation2 + $0x30] sm:$0xff] %vm2058, %v1975
      %2066 = vst.msk [vmem:[#allocation2 + $0x38] sm:$0xff] %vm2058, %v1977
      %2067 = vst.msk [vmem:[#allocation2 + $0x40] sm:$0xff] %vm2058, %v1979
      %2068 = vst.msk [vmem:[#allocation2 + $0x48] sm:$0xff] %vm2058, %v1981
      %2069 = vst.msk [vmem:[#allocation2 + $0x50] sm:$0xff] %vm2058, %v1983
      %2070 = vst.msk [vmem:[#allocation2 + $0x58] sm:$0xff] %vm2058, %v1985
      %2071 = vst.msk [vmem:[#allocation2 + $0x60] sm:$0xff] %vm2058, %v1987
      %2072 = vst.msk [vmem:[#allocation2 + $0x68] sm:$0xff] %vm2058, %v1989
      %2073 = vst.msk [vmem:[#allocation2 + $0x70] sm:$0xff] %vm2058, %v1991
      %2074 = vst.msk [vmem:[#allocation2 + $0x78] sm:$0xff] %vm2058, %v1993
      %2075 = vst.msk [vmem:[#allocation2 + $0x80] sm:$0xff] %vm2058, %v1995
      %2076 = vst.msk [vmem:[#allocation2 + $0x88] sm:$0xff] %vm2058, %v1997
      %2077 = vst.msk [vmem:[#allocation2 + $0x90] sm:$0xff] %vm2058, %v1999
      %2078 = vst.msk [vmem:[#allocation2 + $0x98] sm:$0xff] %vm2058, %v2001
      %2079 = vst.msk [vmem:[#allocation2 + $0xa0] sm:$0xff] %vm2058, %v2003
      %2080 = vst.msk [vmem:[#allocation2 + $0xa8] sm:$0xff] %vm2058, %v2005
      %2081 = vst.msk [vmem:[#allocation2 + $0xb0] sm:$0xff] %vm2058, %v2007
      %2082 = vst.msk [vmem:[#allocation2 + $0xb8] sm:$0xff] %vm2058, %v2009
      %2083 = vst.msk [vmem:[#allocation2 + $0xc0] sm:$0xff] %vm2058, %v2011
      %2084 = vst.msk [vmem:[#allocation2 + $0xc8] sm:$0xff] %vm2058, %v2013
      %2085 = vst.msk [vmem:[#allocation2 + $0xd0] sm:$0xff] %vm2058, %v2015
      %2086 = vst.msk [vmem:[#allocation2 + $0xd8] sm:$0xff] %vm2058, %v2017
      %2087 = vst.msk [vmem:[#allocation2 + $0xe0] sm:$0xff] %vm2058, %v2019
      %2088 = vst.msk [vmem:[#allocation2 + $0xe8] sm:$0xff] %vm2058, %v2021
      %2089 = vst.msk [vmem:[#allocation2 + $0xf0] sm:$0xff] %vm2058, %v2023
      %2090 = vst.msk [vmem:[#allocation2 + $0xf8] sm:$0xff] %vm2058, %v2025
      %2093 = vrot.lane.b32.xlu0 %v532, 16
      %v2094 = vpop.permute.xlu0 %2093
      %2095 = vrot.lane.b32.xlu0 %v438, 16
      %v2096 = vpop.permute.xlu0 %2095
      %2097 = vrot.lane.b32.xlu0 %v440, 16
      %v2098 = vpop.permute.xlu0 %2097
      %2099 = vrot.lane.b32.xlu0 %v442, 16
      %v2100 = vpop.permute.xlu0 %2099
      %2101 = vrot.lane.b32.xlu0 %v444, 16
      %v2102 = vpop.permute.xlu0 %2101
      %2103 = vrot.lane.b32.xlu0 %v446, 16
      %v2104 = vpop.permute.xlu0 %2103
      %2105 = vrot.lane.b32.xlu0 %v448, 16
      %v2106 = vpop.permute.xlu0 %2105
      %2107 = vrot.lane.b32.xlu0 %v450, 16
      %v2108 = vpop.permute.xlu0 %2107
      %2109 = vrot.lane.b32.xlu0 %v452, 16
      %v2110 = vpop.permute.xlu0 %2109
      %2111 = vrot.lane.b32.xlu0 %v454, 16
      %v2112 = vpop.permute.xlu0 %2111
      %2113 = vrot.lane.b32.xlu0 %v456, 16
      %v2114 = vpop.permute.xlu0 %2113
      %2115 = vrot.lane.b32.xlu0 %v458, 16
      %v2116 = vpop.permute.xlu0 %2115
      %2117 = vrot.lane.b32.xlu0 %v460, 16
      %v2118 = vpop.permute.xlu0 %2117
      %2119 = vrot.lane.b32.xlu0 %v462, 16
      %v2120 = vpop.permute.xlu0 %2119
      %2121 = vrot.lane.b32.xlu0 %v464, 16
      %v2122 = vpop.permute.xlu0 %2121
      %2123 = vrot.lane.b32.xlu0 %v466, 16
      %v2124 = vpop.permute.xlu0 %2123
      %2125 = vrot.lane.b32.xlu0 %v468, 16
      %v2126 = vpop.permute.xlu0 %2125
      %2127 = vrot.lane.b32.xlu0 %v470, 16
      %v2128 = vpop.permute.xlu0 %2127
      %2129 = vrot.lane.b32.xlu0 %v472, 16
      %v2130 = vpop.permute.xlu0 %2129
      %2131 = vrot.lane.b32.xlu0 %v474, 16
      %v2132 = vpop.permute.xlu0 %2131
      %2133 = vrot.lane.b32.xlu0 %v476, 16
      %v2134 = vpop.permute.xlu0 %2133
      %2135 = vrot.lane.b32.xlu0 %v478, 16
      %v2136 = vpop.permute.xlu0 %2135
      %2137 = vrot.lane.b32.xlu0 %v480, 16
      %v2138 = vpop.permute.xlu0 %2137
      %2139 = vrot.lane.b32.xlu0 %v482, 16
      %v2140 = vpop.permute.xlu0 %2139
      %2141 = vrot.lane.b32.xlu0 %v484, 16
      %v2142 = vpop.permute.xlu0 %2141
      %2143 = vrot.lane.b32.xlu0 %v486, 16
      %v2144 = vpop.permute.xlu0 %2143
      %2145 = vrot.lane.b32.xlu0 %v488, 16
      %v2146 = vpop.permute.xlu0 %2145
      %2147 = vrot.lane.b32.xlu0 %v490, 16
      %v2148 = vpop.permute.xlu0 %2147
      %2149 = vrot.lane.b32.xlu0 %v492, 16
      %v2150 = vpop.permute.xlu0 %2149
      %2151 = vrot.lane.b32.xlu0 %v494, 16
      %v2152 = vpop.permute.xlu0 %2151
      %2153 = vrot.lane.b32.xlu0 %v496, 16
      %v2154 = vpop.permute.xlu0 %2153
      %2155 = vrot.lane.b32.xlu0 %v498, 16
      %v2156 = vpop.permute.xlu0 %2155
      %2157 = vrot.lane.b32.xlu0 %v533, 16
      %v2158 = vpop.permute.xlu0 %2157
      %vm2192 = vcmask 162945
      %2193 = vst.msk [vmem:[#allocation2 - $0x1] sm:$0xfe] %vm2192, %v2094
      %vm2194 = vcmask 162944
      %2195 = vst.msk [vmem:[#allocation2 + $0x7] sm:$0xff] %vm2194, %v2096
      %2196 = vst.msk [vmem:[#allocation2 + $0xf] sm:$0xff] %vm2194, %v2098
      %2197 = vst.msk [vmem:[#allocation2 + $0x17] sm:$0xff] %vm2194, %v2100
      %2198 = vst.msk [vmem:[#allocation2 + $0x1f] sm:$0xff] %vm2194, %v2102
      %2199 = vst.msk [vmem:[#allocation2 + $0x27] sm:$0xff] %vm2194, %v2104
      %2200 = vst.msk [vmem:[#allocation2 + $0x2f] sm:$0xff] %vm2194, %v2106
      %2201 = vst.msk [vmem:[#allocation2 + $0x37] sm:$0xff] %vm2194, %v2108
      %2202 = vst.msk [vmem:[#allocation2 + $0x3f] sm:$0xff] %vm2194, %v2110
      %2203 = vst.msk [vmem:[#allocation2 + $0x47] sm:$0xff] %vm2194, %v2112
      %2204 = vst.msk [vmem:[#allocation2 + $0x4f] sm:$0xff] %vm2194, %v2114
      %2205 = vst.msk [vmem:[#allocation2 + $0x57] sm:$0xff] %vm2194, %v2116
      %2206 = vst.msk [vmem:[#allocation2 + $0x5f] sm:$0xff] %vm2194, %v2118
      %2207 = vst.msk [vmem:[#allocation2 + $0x67] sm:$0xff] %vm2194, %v2120
      %2208 = vst.msk [vmem:[#allocation2 + $0x6f] sm:$0xff] %vm2194, %v2122
      %2209 = vst.msk [vmem:[#allocation2 + $0x77] sm:$0xff] %vm2194, %v2124
      %2210 = vst.msk [vmem:[#allocation2 + $0x7f] sm:$0xff] %vm2194, %v2126
      %2211 = vst.msk [vmem:[#allocation2 + $0x87] sm:$0xff] %vm2194, %v2128
      %2212 = vst.msk [vmem:[#allocation2 + $0x8f] sm:$0xff] %vm2194, %v2130
      %2213 = vst.msk [vmem:[#allocation2 + $0x97] sm:$0xff] %vm2194, %v2132
      %2214 = vst.msk [vmem:[#allocation2 + $0x9f] sm:$0xff] %vm2194, %v2134
      %2215 = vst.msk [vmem:[#allocation2 + $0xa7] sm:$0xff] %vm2194, %v2136
      %2216 = vst.msk [vmem:[#allocation2 + $0xaf] sm:$0xff] %vm2194, %v2138
      %2217 = vst.msk [vmem:[#allocation2 + $0xb7] sm:$0xff] %vm2194, %v2140
      %2218 = vst.msk [vmem:[#allocation2 + $0xbf] sm:$0xff] %vm2194, %v2142
      %2219 = vst.msk [vmem:[#allocation2 + $0xc7] sm:$0xff] %vm2194, %v2144
      %2220 = vst.msk [vmem:[#allocation2 + $0xcf] sm:$0xff] %vm2194, %v2146
      %2221 = vst.msk [vmem:[#allocation2 + $0xd7] sm:$0xff] %vm2194, %v2148
      %2222 = vst.msk [vmem:[#allocation2 + $0xdf] sm:$0xff] %vm2194, %v2150
      %2223 = vst.msk [vmem:[#allocation2 + $0xe7] sm:$0xff] %vm2194, %v2152
      %2224 = vst.msk [vmem:[#allocation2 + $0xef] sm:$0xff] %vm2194, %v2154
      %2225 = vst.msk [vmem:[#allocation2 + $0xf7] sm:$0xff] %vm2194, %v2156
      %vm2226 = vcmask 155776
      %2227 = vst.msk [vmem:[#allocation2 + $0xff] sm:$0x1] %vm2226, %v2158
      %v2228 = vld [vmem:[%s4] sm:$0xff]
      %v2229 = vld [vmem:[%s4 + $0x8] sm:$0xff]
      %v2230 = vld [vmem:[%s4 + $0x10] sm:$0xff]
      %v2231 = vld [vmem:[%s4 + $0x18] sm:$0xff]
      %v2232 = vld [vmem:[%s4 + $0x20] sm:$0xff]
      %v2233 = vld [vmem:[%s4 + $0x28] sm:$0xff]
      %v2234 = vld [vmem:[%s4 + $0x30] sm:$0xff]
      %v2235 = vld [vmem:[%s4 + $0x38] sm:$0xff]
      %v2236 = vld [vmem:[%s4 + $0x40] sm:$0xff]
      %v2237 = vld [vmem:[%s4 + $0x48] sm:$0xff]
      %v2238 = vld [vmem:[%s4 + $0x50] sm:$0xff]
      %v2239 = vld [vmem:[%s4 + $0x58] sm:$0xff]
      %v2240 = vld [vmem:[%s4 + $0x60] sm:$0xff]
      %v2241 = vld [vmem:[%s4 + $0x68] sm:$0xff]
      %v2242 = vld [vmem:[%s4 + $0x70] sm:$0xff]
      %v2243 = vld [vmem:[%s4 + $0x78] sm:$0xff]
      %v2244 = vld [vmem:[%s4 + $0x80] sm:$0xff]
      %v2245 = vld [vmem:[%s4 + $0x88] sm:$0xff]
      %v2246 = vld [vmem:[%s4 + $0x90] sm:$0xff]
      %v2247 = vld [vmem:[%s4 + $0x98] sm:$0xff]
      %v2248 = vld [vmem:[%s4 + $0xa0] sm:$0xff]
      %v2249 = vld [vmem:[%s4 + $0xa8] sm:$0xff]
      %v2250 = vld [vmem:[%s4 + $0xb0] sm:$0xff]
      %v2251 = vld [vmem:[%s4 + $0xb8] sm:$0xff]
      %v2252 = vld [vmem:[%s4 + $0xc0] sm:$0xff]
      %v2253 = vld [vmem:[%s4 + $0xc8] sm:$0xff]
      %v2254 = vld [vmem:[%s4 + $0xd0] sm:$0xff]
      %v2255 = vld [vmem:[%s4 + $0xd8] sm:$0xff]
      %v2256 = vld [vmem:[%s4 + $0xe0] sm:$0xff]
      %v2257 = vld [vmem:[%s4 + $0xe8] sm:$0xff]
      %v2258 = vld [vmem:[%s4 + $0xf0] sm:$0xff]
      %v2259 = vld [vmem:[%s4 + $0xf8] sm:$0xff]
      %2261 = vset.pattern.permute.xlu0 5
      %2262 = vperm.xlu0 %2261, %v2228
      %v2263 = vpop.permute.xlu0 %2262
      %2265 = vset.pattern.permute.xlu0 5
      %2266 = vperm.xlu0 %2265, %v2229
      %v2267 = vpop.permute.xlu0 %2266
      %2269 = vset.pattern.permute.xlu0 5
      %2270 = vperm.xlu0 %2269, %v2230
      %v2271 = vpop.permute.xlu0 %2270
      %2273 = vset.pattern.permute.xlu0 5
      %2274 = vperm.xlu0 %2273, %v2231
      %v2275 = vpop.permute.xlu0 %2274
      %2277 = vset.pattern.permute.xlu0 5
      %2278 = vperm.xlu0 %2277, %v2232
      %v2279 = vpop.permute.xlu0 %2278
      %2281 = vset.pattern.permute.xlu0 5
      %2282 = vperm.xlu0 %2281, %v2233
      %v2283 = vpop.permute.xlu0 %2282
      %2285 = vset.pattern.permute.xlu0 5
      %2286 = vperm.xlu0 %2285, %v2234
      %v2287 = vpop.permute.xlu0 %2286
      %2289 = vset.pattern.permute.xlu0 5
      %2290 = vperm.xlu0 %2289, %v2235
      %v2291 = vpop.permute.xlu0 %2290
      %2293 = vset.pattern.permute.xlu0 5
      %2294 = vperm.xlu0 %2293, %v2236
      %v2295 = vpop.permute.xlu0 %2294
      %2297 = vset.pattern.permute.xlu0 5
      %2298 = vperm.xlu0 %2297, %v2237
      %v2299 = vpop.permute.xlu0 %2298
      %2301 = vset.pattern.permute.xlu0 5
      %2302 = vperm.xlu0 %2301, %v2238
      %v2303 = vpop.permute.xlu0 %2302
      %2305 = vset.pattern.permute.xlu0 5
      %2306 = vperm.xlu0 %2305, %v2239
      %v2307 = vpop.permute.xlu0 %2306
      %2309 = vset.pattern.permute.xlu0 5
      %2310 = vperm.xlu0 %2309, %v2240
      %v2311 = vpop.permute.xlu0 %2310
      %2313 = vset.pattern.permute.xlu0 5
      %2314 = vperm.xlu0 %2313, %v2241
      %v2315 = vpop.permute.xlu0 %2314
      %2317 = vset.pattern.permute.xlu0 5
      %2318 = vperm.xlu0 %2317, %v2242
      %v2319 = vpop.permute.xlu0 %2318
      %2321 = vset.pattern.permute.xlu0 5
      %2322 = vperm.xlu0 %2321, %v2243
      %v2323 = vpop.permute.xlu0 %2322
      %2325 = vset.pattern.permute.xlu0 5
      %2326 = vperm.xlu0 %2325, %v2244
      %v2327 = vpop.permute.xlu0 %2326
      %2329 = vset.pattern.permute.xlu0 5
      %2330 = vperm.xlu0 %2329, %v2245
      %v2331 = vpop.permute.xlu0 %2330
      %2333 = vset.pattern.permute.xlu0 5
      %2334 = vperm.xlu0 %2333, %v2246
      %v2335 = vpop.permute.xlu0 %2334
      %2337 = vset.pattern.permute.xlu0 5
      %2338 = vperm.xlu0 %2337, %v2247
      %v2339 = vpop.permute.xlu0 %2338
      %2341 = vset.pattern.permute.xlu0 5
      %2342 = vperm.xlu0 %2341, %v2248
      %v2343 = vpop.permute.xlu0 %2342
      %2345 = vset.pattern.permute.xlu0 5
      %2346 = vperm.xlu0 %2345, %v2249
      %v2347 = vpop.permute.xlu0 %2346
      %2349 = vset.pattern.permute.xlu0 5
      %2350 = vperm.xlu0 %2349, %v2250
      %v2351 = vpop.permute.xlu0 %2350
      %2353 = vset.pattern.permute.xlu0 5
      %2354 = vperm.xlu0 %2353, %v2251
      %v2355 = vpop.permute.xlu0 %2354
      %2357 = vset.pattern.permute.xlu0 5
      %2358 = vperm.xlu0 %2357, %v2252
      %v2359 = vpop.permute.xlu0 %2358
      %2361 = vset.pattern.permute.xlu0 5
      %2362 = vperm.xlu0 %2361, %v2253
      %v2363 = vpop.permute.xlu0 %2362
      %2365 = vset.pattern.permute.xlu0 5
      %2366 = vperm.xlu0 %2365, %v2254
      %v2367 = vpop.permute.xlu0 %2366
      %2369 = vset.pattern.permute.xlu0 5
      %2370 = vperm.xlu0 %2369, %v2255
      %v2371 = vpop.permute.xlu0 %2370
      %2373 = vset.pattern.permute.xlu0 5
      %2374 = vperm.xlu0 %2373, %v2256
      %v2375 = vpop.permute.xlu0 %2374
      %2377 = vset.pattern.permute.xlu0 5
      %2378 = vperm.xlu0 %2377, %v2257
      %v2379 = vpop.permute.xlu0 %2378
      %2381 = vset.pattern.permute.xlu0 5
      %2382 = vperm.xlu0 %2381, %v2258
      %v2383 = vpop.permute.xlu0 %2382
      %2385 = vset.pattern.permute.xlu0 5
      %2386 = vperm.xlu0 %2385, %v2259
      %v2387 = vpop.permute.xlu0 %2386
      %v2388 = vrot.slane %v2263, 6
      %v2389 = vrot.slane %v2267, 6
      %v2390 = vsel %vm1408, %v2388, %v2389
      %v2391 = vrot.slane %v2271, 6
      %v2392 = vsel %vm1408, %v2389, %v2391
      %v2393 = vrot.slane %v2275, 6
      %v2394 = vsel %vm1408, %v2391, %v2393
      %v2395 = vrot.slane %v2279, 6
      %v2396 = vsel %vm1408, %v2393, %v2395
      %v2397 = vrot.slane %v2283, 6
      %v2398 = vsel %vm1408, %v2395, %v2397
      %v2399 = vrot.slane %v2287, 6
      %v2400 = vsel %vm1408, %v2397, %v2399
      %v2401 = vrot.slane %v2291, 6
      %v2402 = vsel %vm1408, %v2399, %v2401
      %v2403 = vrot.slane %v2295, 6
      %v2404 = vsel %vm1408, %v2401, %v2403
      %v2405 = vrot.slane %v2299, 6
      %v2406 = vsel %vm1408, %v2403, %v2405
      %v2407 = vrot.slane %v2303, 6
      %v2408 = vsel %vm1408, %v2405, %v2407
      %v2409 = vrot.slane %v2307, 6
      %v2410 = vsel %vm1408, %v2407, %v2409
      %v2411 = vrot.slane %v2311, 6
      %v2412 = vsel %vm1408, %v2409, %v2411
      %v2413 = vrot.slane %v2315, 6
      %v2414 = vsel %vm1408, %v2411, %v2413
      %v2415 = vrot.slane %v2319, 6
      %v2416 = vsel %vm1408, %v2413, %v2415
      %v2417 = vrot.slane %v2323, 6
      %v2418 = vsel %vm1408, %v2415, %v2417
      %v2419 = vrot.slane %v2327, 6
      %v2420 = vsel %vm1408, %v2417, %v2419
      %v2421 = vrot.slane %v2331, 6
      %v2422 = vsel %vm1408, %v2419, %v2421
      %v2423 = vrot.slane %v2335, 6
      %v2424 = vsel %vm1408, %v2421, %v2423
      %v2425 = vrot.slane %v2339, 6
      %v2426 = vsel %vm1408, %v2423, %v2425
      %v2427 = vrot.slane %v2343, 6
      %v2428 = vsel %vm1408, %v2425, %v2427
      %v2429 = vrot.slane %v2347, 6
      %v2430 = vsel %vm1408, %v2427, %v2429
      %v2431 = vrot.slane %v2351, 6
      %v2432 = vsel %vm1408, %v2429, %v2431
      %v2433 = vrot.slane %v2355, 6
      %v2434 = vsel %vm1408, %v2431, %v2433
      %v2435 = vrot.slane %v2359, 6
      %v2436 = vsel %vm1408, %v2433, %v2435
      %v2437 = vrot.slane %v2363, 6
      %v2438 = vsel %vm1408, %v2435, %v2437
      %v2439 = vrot.slane %v2367, 6
      %v2440 = vsel %vm1408, %v2437, %v2439
      %v2441 = vrot.slane %v2371, 6
      %v2442 = vsel %vm1408, %v2439, %v2441
      %v2443 = vrot.slane %v2375, 6
      %v2444 = vsel %vm1408, %v2441, %v2443
      %v2445 = vrot.slane %v2379, 6
      %v2446 = vsel %vm1408, %v2443, %v2445
      %v2447 = vrot.slane %v2383, 6
      %v2448 = vsel %vm1408, %v2445, %v2447
      %v2449 = vrot.slane %v2387, 6
      %v2450 = vsel %vm1408, %v2447, %v2449
      %v2484 = vmul.f32 %v532, %v2388
      %v2485 = vmul.f32 %v438, %v2390
      %v2486 = vmul.f32 %v440, %v2392
      %v2487 = vmul.f32 %v442, %v2394
      %v2488 = vmul.f32 %v444, %v2396
      %v2489 = vmul.f32 %v446, %v2398
      %v2490 = vmul.f32 %v448, %v2400
      %v2491 = vmul.f32 %v450, %v2402
      %v2492 = vmul.f32 %v452, %v2404
      %v2493 = vmul.f32 %v454, %v2406
      %v2494 = vmul.f32 %v456, %v2408
      %v2495 = vmul.f32 %v458, %v2410
      %v2496 = vmul.f32 %v460, %v2412
      %v2497 = vmul.f32 %v462, %v2414
      %v2498 = vmul.f32 %v464, %v2416
      %v2499 = vmul.f32 %v466, %v2418
      %v2500 = vmul.f32 %v468, %v2420
      %v2501 = vmul.f32 %v470, %v2422
      %v2502 = vmul.f32 %v472, %v2424
      %v2503 = vmul.f32 %v474, %v2426
      %v2504 = vmul.f32 %v476, %v2428
      %v2505 = vmul.f32 %v478, %v2430
      %v2506 = vmul.f32 %v480, %v2432
      %v2507 = vmul.f32 %v482, %v2434
      %v2508 = vmul.f32 %v484, %v2436
      %v2509 = vmul.f32 %v486, %v2438
      %v2510 = vmul.f32 %v488, %v2440
      %v2511 = vmul.f32 %v490, %v2442
      %v2512 = vmul.f32 %v492, %v2444
      %v2513 = vmul.f32 %v494, %v2446
      %v2514 = vmul.f32 %v496, %v2448
      %v2515 = vmul.f32 %v498, %v2450
      %v2516 = vmul.f32 %v533, %v2449
      %2550 = vrot.lane.b32.xlu0 %v2484, 20
      %v2551 = vpop.permute.xlu0 %2550
      %2552 = vrot.lane.b32.xlu0 %v2485, 20
      %v2553 = vpop.permute.xlu0 %2552
      %2554 = vrot.lane.b32.xlu0 %v2486, 20
      %v2555 = vpop.permute.xlu0 %2554
      %2556 = vrot.lane.b32.xlu0 %v2487, 20
      %v2557 = vpop.permute.xlu0 %2556
      %2558 = vrot.lane.b32.xlu0 %v2488, 20
      %v2559 = vpop.permute.xlu0 %2558
      %2560 = vrot.lane.b32.xlu0 %v2489, 20
      %v2561 = vpop.permute.xlu0 %2560
      %2562 = vrot.lane.b32.xlu0 %v2490, 20
      %v2563 = vpop.permute.xlu0 %2562
      %2564 = vrot.lane.b32.xlu0 %v2491, 20
      %v2565 = vpop.permute.xlu0 %2564
      %2566 = vrot.lane.b32.xlu0 %v2492, 20
      %v2567 = vpop.permute.xlu0 %2566
      %2568 = vrot.lane.b32.xlu0 %v2493, 20
      %v2569 = vpop.permute.xlu0 %2568
      %2570 = vrot.lane.b32.xlu0 %v2494, 20
      %v2571 = vpop.permute.xlu0 %2570
      %2572 = vrot.lane.b32.xlu0 %v2495, 20
      %v2573 = vpop.permute.xlu0 %2572
      %2574 = vrot.lane.b32.xlu0 %v2496, 20
      %v2575 = vpop.permute.xlu0 %2574
      %2576 = vrot.lane.b32.xlu0 %v2497, 20
      %v2577 = vpop.permute.xlu0 %2576
      %2578 = vrot.lane.b32.xlu0 %v2498, 20
      %v2579 = vpop.permute.xlu0 %2578
      %2580 = vrot.lane.b32.xlu0 %v2499, 20
      %v2581 = vpop.permute.xlu0 %2580
      %2582 = vrot.lane.b32.xlu0 %v2500, 20
      %v2583 = vpop.permute.xlu0 %2582
      %2584 = vrot.lane.b32.xlu0 %v2501, 20
      %v2585 = vpop.permute.xlu0 %2584
      %2586 = vrot.lane.b32.xlu0 %v2502, 20
      %v2587 = vpop.permute.xlu0 %2586
      %2588 = vrot.lane.b32.xlu0 %v2503, 20
      %v2589 = vpop.permute.xlu0 %2588
      %2590 = vrot.lane.b32.xlu0 %v2504, 20
      %v2591 = vpop.permute.xlu0 %2590
      %2592 = vrot.lane.b32.xlu0 %v2505, 20
      %v2593 = vpop.permute.xlu0 %2592
      %2594 = vrot.lane.b32.xlu0 %v2506, 20
      %v2595 = vpop.permute.xlu0 %2594
      %2596 = vrot.lane.b32.xlu0 %v2507, 20
      %v2597 = vpop.permute.xlu0 %2596
      %2598 = vrot.lane.b32.xlu0 %v2508, 20
      %v2599 = vpop.permute.xlu0 %2598
      %2600 = vrot.lane.b32.xlu0 %v2509, 20
      %v2601 = vpop.permute.xlu0 %2600
      %2602 = vrot.lane.b32.xlu0 %v2510, 20
      %v2603 = vpop.permute.xlu0 %2602
      %2604 = vrot.lane.b32.xlu0 %v2511, 20
      %v2605 = vpop.permute.xlu0 %2604
      %2606 = vrot.lane.b32.xlu0 %v2512, 20
      %v2607 = vpop.permute.xlu0 %2606
      %2608 = vrot.lane.b32.xlu0 %v2513, 20
      %v2609 = vpop.permute.xlu0 %2608
      %2610 = vrot.lane.b32.xlu0 %v2514, 20
      %v2611 = vpop.permute.xlu0 %2610
      %2612 = vrot.lane.b32.xlu0 %v2515, 20
      %v2613 = vpop.permute.xlu0 %2612
      %2614 = vrot.lane.b32.xlu0 %v2516, 20
      %v2615 = vpop.permute.xlu0 %2614
      %vm2649 = vcmask 195746
      %2650 = vst.msk [vmem:[#allocation2 - $0x2] sm:$0xfc] %vm2649, %v2551
      %vm2651 = vcmask 195744
      %2652 = vst.msk [vmem:[#allocation2 + $0x6] sm:$0xff] %vm2651, %v2553
      %2653 = vst.msk [vmem:[#allocation2 + $0xe] sm:$0xff] %vm2651, %v2555
      %2654 = vst.msk [vmem:[#allocation2 + $0x16] sm:$0xff] %vm2651, %v2557
      %2655 = vst.msk [vmem:[#allocation2 + $0x1e] sm:$0xff] %vm2651, %v2559
      %2656 = vst.msk [vmem:[#allocation2 + $0x26] sm:$0xff] %vm2651, %v2561
      %2657 = vst.msk [vmem:[#allocation2 + $0x2e] sm:$0xff] %vm2651, %v2563
      %2658 = vst.msk [vmem:[#allocation2 + $0x36] sm:$0xff] %vm2651, %v2565
      %2659 = vst.msk [vmem:[#allocation2 + $0x3e] sm:$0xff] %vm2651, %v2567
      %2660 = vst.msk [vmem:[#allocation2 + $0x46] sm:$0xff] %vm2651, %v2569
      %2661 = vst.msk [vmem:[#allocation2 + $0x4e] sm:$0xff] %vm2651, %v2571
      %2662 = vst.msk [vmem:[#allocation2 + $0x56] sm:$0xff] %vm2651, %v2573
      %2663 = vst.msk [vmem:[#allocation2 + $0x5e] sm:$0xff] %vm2651, %v2575
      %2664 = vst.msk [vmem:[#allocation2 + $0x66] sm:$0xff] %vm2651, %v2577
      %2665 = vst.msk [vmem:[#allocation2 + $0x6e] sm:$0xff] %vm2651, %v2579
      %2666 = vst.msk [vmem:[#allocation2 + $0x76] sm:$0xff] %vm2651, %v2581
      %2667 = vst.msk [vmem:[#allocation2 + $0x7e] sm:$0xff] %vm2651, %v2583
      %2668 = vst.msk [vmem:[#allocation2 + $0x86] sm:$0xff] %vm2651, %v2585
      %2669 = vst.msk [vmem:[#allocation2 + $0x8e] sm:$0xff] %vm2651, %v2587
      %2670 = vst.msk [vmem:[#allocation2 + $0x96] sm:$0xff] %vm2651, %v2589
      %2671 = vst.msk [vmem:[#allocation2 + $0x9e] sm:$0xff] %vm2651, %v2591
      %2672 = vst.msk [vmem:[#allocation2 + $0xa6] sm:$0xff] %vm2651, %v2593
      %2673 = vst.msk [vmem:[#allocation2 + $0xae] sm:$0xff] %vm2651, %v2595
      %2674 = vst.msk [vmem:[#allocation2 + $0xb6] sm:$0xff] %vm2651, %v2597
      %2675 = vst.msk [vmem:[#allocation2 + $0xbe] sm:$0xff] %vm2651, %v2599
      %2676 = vst.msk [vmem:[#allocation2 + $0xc6] sm:$0xff] %vm2651, %v2601
      %2677 = vst.msk [vmem:[#allocation2 + $0xce] sm:$0xff] %vm2651, %v2603
      %2678 = vst.msk [vmem:[#allocation2 + $0xd6] sm:$0xff] %vm2651, %v2605
      %2679 = vst.msk [vmem:[#allocation2 + $0xde] sm:$0xff] %vm2651, %v2607
      %2680 = vst.msk [vmem:[#allocation2 + $0xe6] sm:$0xff] %vm2651, %v2609
      %2681 = vst.msk [vmem:[#allocation2 + $0xee] sm:$0xff] %vm2651, %v2611
      %2682 = vst.msk [vmem:[#allocation2 + $0xf6] sm:$0xff] %vm2651, %v2613
      %vm2683 = vcmask 189600
      %2684 = vst.msk [vmem:[#allocation2 + $0xfe] sm:$0x3] %vm2683, %v2615
      %v2685 = vld [vmem:[%s4] sm:$0xff]
      %v2686 = vld [vmem:[%s4 + $0x8] sm:$0xff]
      %v2687 = vld [vmem:[%s4 + $0x10] sm:$0xff]
      %v2688 = vld [vmem:[%s4 + $0x18] sm:$0xff]
      %v2689 = vld [vmem:[%s4 + $0x20] sm:$0xff]
      %v2690 = vld [vmem:[%s4 + $0x28] sm:$0xff]
      %v2691 = vld [vmem:[%s4 + $0x30] sm:$0xff]
      %v2692 = vld [vmem:[%s4 + $0x38] sm:$0xff]
      %v2693 = vld [vmem:[%s4 + $0x40] sm:$0xff]
      %v2694 = vld [vmem:[%s4 + $0x48] sm:$0xff]
      %v2695 = vld [vmem:[%s4 + $0x50] sm:$0xff]
      %v2696 = vld [vmem:[%s4 + $0x58] sm:$0xff]
      %v2697 = vld [vmem:[%s4 + $0x60] sm:$0xff]
      %v2698 = vld [vmem:[%s4 + $0x68] sm:$0xff]
      %v2699 = vld [vmem:[%s4 + $0x70] sm:$0xff]
      %v2700 = vld [vmem:[%s4 + $0x78] sm:$0xff]
      %v2701 = vld [vmem:[%s4 + $0x80] sm:$0xff]
      %v2702 = vld [vmem:[%s4 + $0x88] sm:$0xff]
      %v2703 = vld [vmem:[%s4 + $0x90] sm:$0xff]
      %v2704 = vld [vmem:[%s4 + $0x98] sm:$0xff]
      %v2705 = vld [vmem:[%s4 + $0xa0] sm:$0xff]
      %v2706 = vld [vmem:[%s4 + $0xa8] sm:$0xff]
      %v2707 = vld [vmem:[%s4 + $0xb0] sm:$0xff]
      %v2708 = vld [vmem:[%s4 + $0xb8] sm:$0xff]
      %v2709 = vld [vmem:[%s4 + $0xc0] sm:$0xff]
      %v2710 = vld [vmem:[%s4 + $0xc8] sm:$0xff]
      %v2711 = vld [vmem:[%s4 + $0xd0] sm:$0xff]
      %v2712 = vld [vmem:[%s4 + $0xd8] sm:$0xff]
      %v2713 = vld [vmem:[%s4 + $0xe0] sm:$0xff]
      %v2714 = vld [vmem:[%s4 + $0xe8] sm:$0xff]
      %v2715 = vld [vmem:[%s4 + $0xf0] sm:$0xff]
      %v2716 = vld [vmem:[%s4 + $0xf8] sm:$0xff]
      %2718 = vset.pattern.permute.xlu0 6
      %2719 = vperm.xlu0 %2718, %v2685
      %v2720 = vpop.permute.xlu0 %2719
      %2723 = vset.pattern.permute.xlu0 6
      %2724 = vperm.xlu0 %2723, %v2686
      %v2725 = vpop.permute.xlu0 %2724
      %2728 = vset.pattern.permute.xlu0 6
      %2729 = vperm.xlu0 %2728, %v2687
      %v2730 = vpop.permute.xlu0 %2729
      %2733 = vset.pattern.permute.xlu0 6
      %2734 = vperm.xlu0 %2733, %v2688
      %v2735 = vpop.permute.xlu0 %2734
      %2738 = vset.pattern.permute.xlu0 6
      %2739 = vperm.xlu0 %2738, %v2689
      %v2740 = vpop.permute.xlu0 %2739
      %2743 = vset.pattern.permute.xlu0 6
      %2744 = vperm.xlu0 %2743, %v2690
      %v2745 = vpop.permute.xlu0 %2744
      %2748 = vset.pattern.permute.xlu0 6
      %2749 = vperm.xlu0 %2748, %v2691
      %v2750 = vpop.permute.xlu0 %2749
      %2753 = vset.pattern.permute.xlu0 6
      %2754 = vperm.xlu0 %2753, %v2692
      %v2755 = vpop.permute.xlu0 %2754
      %2758 = vset.pattern.permute.xlu0 6
      %2759 = vperm.xlu0 %2758, %v2693
      %v2760 = vpop.permute.xlu0 %2759
      %2763 = vset.pattern.permute.xlu0 6
      %2764 = vperm.xlu0 %2763, %v2694
      %v2765 = vpop.permute.xlu0 %2764
      %2768 = vset.pattern.permute.xlu0 6
      %2769 = vperm.xlu0 %2768, %v2695
      %v2770 = vpop.permute.xlu0 %2769
      %2773 = vset.pattern.permute.xlu0 6
      %2774 = vperm.xlu0 %2773, %v2696
      %v2775 = vpop.permute.xlu0 %2774
      %2778 = vset.pattern.permute.xlu0 6
      %2779 = vperm.xlu0 %2778, %v2697
      %v2780 = vpop.permute.xlu0 %2779
      %2783 = vset.pattern.permute.xlu0 6
      %2784 = vperm.xlu0 %2783, %v2698
      %v2785 = vpop.permute.xlu0 %2784
      %2788 = vset.pattern.permute.xlu0 6
      %2789 = vperm.xlu0 %2788, %v2699
      %v2790 = vpop.permute.xlu0 %2789
      %2793 = vset.pattern.permute.xlu0 6
      %2794 = vperm.xlu0 %2793, %v2700
      %v2795 = vpop.permute.xlu0 %2794
      %2798 = vset.pattern.permute.xlu0 6
      %2799 = vperm.xlu0 %2798, %v2701
      %v2800 = vpop.permute.xlu0 %2799
      %2803 = vset.pattern.permute.xlu0 6
      %2804 = vperm.xlu0 %2803, %v2702
      %v2805 = vpop.permute.xlu0 %2804
      %2808 = vset.pattern.permute.xlu0 6
      %2809 = vperm.xlu0 %2808, %v2703
      %v2810 = vpop.permute.xlu0 %2809
      %2813 = vset.pattern.permute.xlu0 6
      %2814 = vperm.xlu0 %2813, %v2704
      %v2815 = vpop.permute.xlu0 %2814
      %2818 = vset.pattern.permute.xlu0 6
      %2819 = vperm.xlu0 %2818, %v2705
      %v2820 = vpop.permute.xlu0 %2819
      %2823 = vset.pattern.permute.xlu0 6
      %2824 = vperm.xlu0 %2823, %v2706
      %v2825 = vpop.permute.xlu0 %2824
      %2828 = vset.pattern.permute.xlu0 6
      %2829 = vperm.xlu0 %2828, %v2707
      %v2830 = vpop.permute.xlu0 %2829
      %2833 = vset.pattern.permute.xlu0 6
      %2834 = vperm.xlu0 %2833, %v2708
      %v2835 = vpop.permute.xlu0 %2834
      %2838 = vset.pattern.permute.xlu0 6
      %2839 = vperm.xlu0 %2838, %v2709
      %v2840 = vpop.permute.xlu0 %2839
      %2843 = vset.pattern.permute.xlu0 6
      %2844 = vperm.xlu0 %2843, %v2710
      %v2845 = vpop.permute.xlu0 %2844
      %2848 = vset.pattern.permute.xlu0 6
      %2849 = vperm.xlu0 %2848, %v2711
      %v2850 = vpop.permute.xlu0 %2849
      %2853 = vset.pattern.permute.xlu0 6
      %2854 = vperm.xlu0 %2853, %v2712
      %v2855 = vpop.permute.xlu0 %2854
      %2858 = vset.pattern.permute.xlu0 6
      %2859 = vperm.xlu0 %2858, %v2713
      %v2860 = vpop.permute.xlu0 %2859
      %2863 = vset.pattern.permute.xlu0 6
      %2864 = vperm.xlu0 %2863, %v2714
      %v2865 = vpop.permute.xlu0 %2864
      %2868 = vset.pattern.permute.xlu0 6
      %2869 = vperm.xlu0 %2868, %v2715
      %v2870 = vpop.permute.xlu0 %2869
      %2873 = vset.pattern.permute.xlu0 6
      %2874 = vperm.xlu0 %2873, %v2716
      %v2875 = vpop.permute.xlu0 %2874
      %v2877 = vmul.f32 %v440, %v2720
      %v2878 = vmul.f32 %v442, %v2725
      %v2879 = vmul.f32 %v444, %v2730
      %v2880 = vmul.f32 %v446, %v2735
      %v2881 = vmul.f32 %v448, %v2740
      %v2882 = vmul.f32 %v450, %v2745
      %v2883 = vmul.f32 %v452, %v2750
      %v2884 = vmul.f32 %v454, %v2755
      %v2885 = vmul.f32 %v456, %v2760
      %v2886 = vmul.f32 %v458, %v2765
      %v2887 = vmul.f32 %v460, %v2770
      %v2888 = vmul.f32 %v462, %v2775
      %v2889 = vmul.f32 %v464, %v2780
      %v2890 = vmul.f32 %v466, %v2785
      %v2891 = vmul.f32 %v468, %v2790
      %v2892 = vmul.f32 %v470, %v2795
      %v2893 = vmul.f32 %v472, %v2800
      %v2894 = vmul.f32 %v474, %v2805
      %v2895 = vmul.f32 %v476, %v2810
      %v2896 = vmul.f32 %v478, %v2815
      %v2897 = vmul.f32 %v480, %v2820
      %v2898 = vmul.f32 %v482, %v2825
      %v2899 = vmul.f32 %v484, %v2830
      %v2900 = vmul.f32 %v486, %v2835
      %v2901 = vmul.f32 %v488, %v2840
      %v2902 = vmul.f32 %v490, %v2845
      %v2903 = vmul.f32 %v492, %v2850
      %v2904 = vmul.f32 %v494, %v2855
      %v2905 = vmul.f32 %v496, %v2860
      %v2906 = vmul.f32 %v498, %v2865
      %v2907 = vmul.f32 %v533, %v2870
      %v2908 = vmul.f32 %v2875, 0.0
      %2941 = vrot.lane.b32.xlu0 %v2877, 24
      %v2942 = vpop.permute.xlu0 %2941
      %2943 = vrot.lane.b32.xlu0 %v2878, 24
      %v2944 = vpop.permute.xlu0 %2943
      %2945 = vrot.lane.b32.xlu0 %v2879, 24
      %v2946 = vpop.permute.xlu0 %2945
      %2947 = vrot.lane.b32.xlu0 %v2880, 24
      %v2948 = vpop.permute.xlu0 %2947
      %2949 = vrot.lane.b32.xlu0 %v2881, 24
      %v2950 = vpop.permute.xlu0 %2949
      %2951 = vrot.lane.b32.xlu0 %v2882, 24
      %v2952 = vpop.permute.xlu0 %2951
      %2953 = vrot.lane.b32.xlu0 %v2883, 24
      %v2954 = vpop.permute.xlu0 %2953
      %2955 = vrot.lane.b32.xlu0 %v2884, 24
      %v2956 = vpop.permute.xlu0 %2955
      %2957 = vrot.lane.b32.xlu0 %v2885, 24
      %v2958 = vpop.permute.xlu0 %2957
      %2959 = vrot.lane.b32.xlu0 %v2886, 24
      %v2960 = vpop.permute.xlu0 %2959
      %2961 = vrot.lane.b32.xlu0 %v2887, 24
      %v2962 = vpop.permute.xlu0 %2961
      %2963 = vrot.lane.b32.xlu0 %v2888, 24
      %v2964 = vpop.permute.xlu0 %2963
      %2965 = vrot.lane.b32.xlu0 %v2889, 24
      %v2966 = vpop.permute.xlu0 %2965
      %2967 = vrot.lane.b32.xlu0 %v2890, 24
      %v2968 = vpop.permute.xlu0 %2967
      %2969 = vrot.lane.b32.xlu0 %v2891, 24
      %v2970 = vpop.permute.xlu0 %2969
      %2971 = vrot.lane.b32.xlu0 %v2892, 24
      %v2972 = vpop.permute.xlu0 %2971
      %2973 = vrot.lane.b32.xlu0 %v2893, 24
      %v2974 = vpop.permute.xlu0 %2973
      %2975 = vrot.lane.b32.xlu0 %v2894, 24
      %v2976 = vpop.permute.xlu0 %2975
      %2977 = vrot.lane.b32.xlu0 %v2895, 24
      %v2978 = vpop.permute.xlu0 %2977
      %2979 = vrot.lane.b32.xlu0 %v2896, 24
      %v2980 = vpop.permute.xlu0 %2979
      %2981 = vrot.lane.b32.xlu0 %v2897, 24
      %v2982 = vpop.permute.xlu0 %2981
      %2983 = vrot.lane.b32.xlu0 %v2898, 24
      %v2984 = vpop.permute.xlu0 %2983
      %2985 = vrot.lane.b32.xlu0 %v2899, 24
      %v2986 = vpop.permute.xlu0 %2985
      %2987 = vrot.lane.b32.xlu0 %v2900, 24
      %v2988 = vpop.permute.xlu0 %2987
      %2989 = vrot.lane.b32.xlu0 %v2901, 24
      %v2990 = vpop.permute.xlu0 %2989
      %2991 = vrot.lane.b32.xlu0 %v2902, 24
      %v2992 = vpop.permute.xlu0 %2991
      %2993 = vrot.lane.b32.xlu0 %v2903, 24
      %v2994 = vpop.permute.xlu0 %2993
      %2995 = vrot.lane.b32.xlu0 %v2904, 24
      %v2996 = vpop.permute.xlu0 %2995
      %2997 = vrot.lane.b32.xlu0 %v2905, 24
      %v2998 = vpop.permute.xlu0 %2997
      %2999 = vrot.lane.b32.xlu0 %v2906, 24
      %v3000 = vpop.permute.xlu0 %2999
      %3001 = vrot.lane.b32.xlu0 %v2907, 24
      %v3002 = vpop.permute.xlu0 %3001
      %3003 = vrot.lane.b32.xlu0 %v2908, 24
      %v3004 = vpop.permute.xlu0 %3003
      %vm3037 = vcmask 228544
      %3038 = vst.msk [vmem:[#allocation2] sm:$0xff] %vm3037, %v2942
      %3039 = vst.msk [vmem:[#allocation2 + $0x8] sm:$0xff] %vm3037, %v2944
      %3040 = vst.msk [vmem:[#allocation2 + $0x10] sm:$0xff] %vm3037, %v2946
      %3041 = vst.msk [vmem:[#allocation2 + $0x18] sm:$0xff] %vm3037, %v2948
      %3042 = vst.msk [vmem:[#allocation2 + $0x20] sm:$0xff] %vm3037, %v2950
      %3043 = vst.msk [vmem:[#allocation2 + $0x28] sm:$0xff] %vm3037, %v2952
      %3044 = vst.msk [vmem:[#allocation2 + $0x30] sm:$0xff] %vm3037, %v2954
      %3045 = vst.msk [vmem:[#allocation2 + $0x38] sm:$0xff] %vm3037, %v2956
      %3046 = vst.msk [vmem:[#allocation2 + $0x40] sm:$0xff] %vm3037, %v2958
      %3047 = vst.msk [vmem:[#allocation2 + $0x48] sm:$0xff] %vm3037, %v2960
      %3048 = vst.msk [vmem:[#allocation2 + $0x50] sm:$0xff] %vm3037, %v2962
      %3049 = vst.msk [vmem:[#allocation2 + $0x58] sm:$0xff] %vm3037, %v2964
      %3050 = vst.msk [vmem:[#allocation2 + $0x60] sm:$0xff] %vm3037, %v2966
      %3051 = vst.msk [vmem:[#allocation2 + $0x68] sm:$0xff] %vm3037, %v2968
      %3052 = vst.msk [vmem:[#allocation2 + $0x70] sm:$0xff] %vm3037, %v2970
      %3053 = vst.msk [vmem:[#allocation2 + $0x78] sm:$0xff] %vm3037, %v2972
      %3054 = vst.msk [vmem:[#allocation2 + $0x80] sm:$0xff] %vm3037, %v2974
      %3055 = vst.msk [vmem:[#allocation2 + $0x88] sm:$0xff] %vm3037, %v2976
      %3056 = vst.msk [vmem:[#allocation2 + $0x90] sm:$0xff] %vm3037, %v2978
      %3057 = vst.msk [vmem:[#allocation2 + $0x98] sm:$0xff] %vm3037, %v2980
      %3058 = vst.msk [vmem:[#allocation2 + $0xa0] sm:$0xff] %vm3037, %v2982
      %3059 = vst.msk [vmem:[#allocation2 + $0xa8] sm:$0xff] %vm3037, %v2984
      %3060 = vst.msk [vmem:[#allocation2 + $0xb0] sm:$0xff] %vm3037, %v2986
      %3061 = vst.msk [vmem:[#allocation2 + $0xb8] sm:$0xff] %vm3037, %v2988
      %3062 = vst.msk [vmem:[#allocation2 + $0xc0] sm:$0xff] %vm3037, %v2990
      %3063 = vst.msk [vmem:[#allocation2 + $0xc8] sm:$0xff] %vm3037, %v2992
      %3064 = vst.msk [vmem:[#allocation2 + $0xd0] sm:$0xff] %vm3037, %v2994
      %3065 = vst.msk [vmem:[#allocation2 + $0xd8] sm:$0xff] %vm3037, %v2996
      %3066 = vst.msk [vmem:[#allocation2 + $0xe0] sm:$0xff] %vm3037, %v2998
      %3067 = vst.msk [vmem:[#allocation2 + $0xe8] sm:$0xff] %vm3037, %v3000
      %3068 = vst.msk [vmem:[#allocation2 + $0xf0] sm:$0xff] %vm3037, %v3002
      %3069 = vst.msk [vmem:[#allocation2 + $0xf8] sm:$0xff] %vm3037, %v3004
      %v3070 = vld [vmem:[%s4] sm:$0xff]
      %v3071 = vld [vmem:[%s4 + $0x8] sm:$0xff]
      %v3072 = vld [vmem:[%s4 + $0x10] sm:$0xff]
      %v3073 = vld [vmem:[%s4 + $0x18] sm:$0xff]
      %v3074 = vld [vmem:[%s4 + $0x20] sm:$0xff]
      %v3075 = vld [vmem:[%s4 + $0x28] sm:$0xff]
      %v3076 = vld [vmem:[%s4 + $0x30] sm:$0xff]
      %v3077 = vld [vmem:[%s4 + $0x38] sm:$0xff]
      %v3078 = vld [vmem:[%s4 + $0x40] sm:$0xff]
      %v3079 = vld [vmem:[%s4 + $0x48] sm:$0xff]
      %v3080 = vld [vmem:[%s4 + $0x50] sm:$0xff]
      %v3081 = vld [vmem:[%s4 + $0x58] sm:$0xff]
      %v3082 = vld [vmem:[%s4 + $0x60] sm:$0xff]
      %v3083 = vld [vmem:[%s4 + $0x68] sm:$0xff]
      %v3084 = vld [vmem:[%s4 + $0x70] sm:$0xff]
      %v3085 = vld [vmem:[%s4 + $0x78] sm:$0xff]
      %v3086 = vld [vmem:[%s4 + $0x80] sm:$0xff]
      %v3087 = vld [vmem:[%s4 + $0x88] sm:$0xff]
      %v3088 = vld [vmem:[%s4 + $0x90] sm:$0xff]
      %v3089 = vld [vmem:[%s4 + $0x98] sm:$0xff]
      %v3090 = vld [vmem:[%s4 + $0xa0] sm:$0xff]
      %v3091 = vld [vmem:[%s4 + $0xa8] sm:$0xff]
      %v3092 = vld [vmem:[%s4 + $0xb0] sm:$0xff]
      %v3093 = vld [vmem:[%s4 + $0xb8] sm:$0xff]
      %v3094 = vld [vmem:[%s4 + $0xc0] sm:$0xff]
      %v3095 = vld [vmem:[%s4 + $0xc8] sm:$0xff]
      %v3096 = vld [vmem:[%s4 + $0xd0] sm:$0xff]
      %v3097 = vld [vmem:[%s4 + $0xd8] sm:$0xff]
      %v3098 = vld [vmem:[%s4 + $0xe0] sm:$0xff]
      %v3099 = vld [vmem:[%s4 + $0xe8] sm:$0xff]
      %v3100 = vld [vmem:[%s4 + $0xf0] sm:$0xff]
      %v3101 = vld [vmem:[%s4 + $0xf8] sm:$0xff]
      %3103 = vset.pattern.permute.xlu0 7
      %3104 = vperm.xlu0 %3103, %v3070
      %v3105 = vpop.permute.xlu0 %3104
      %3107 = vset.pattern.permute.xlu0 7
      %3108 = vperm.xlu0 %3107, %v3071
      %v3109 = vpop.permute.xlu0 %3108
      %3111 = vset.pattern.permute.xlu0 7
      %3112 = vperm.xlu0 %3111, %v3072
      %v3113 = vpop.permute.xlu0 %3112
      %3115 = vset.pattern.permute.xlu0 7
      %3116 = vperm.xlu0 %3115, %v3073
      %v3117 = vpop.permute.xlu0 %3116
      %3119 = vset.pattern.permute.xlu0 7
      %3120 = vperm.xlu0 %3119, %v3074
      %v3121 = vpop.permute.xlu0 %3120
      %3123 = vset.pattern.permute.xlu0 7
      %3124 = vperm.xlu0 %3123, %v3075
      %v3125 = vpop.permute.xlu0 %3124
      %3127 = vset.pattern.permute.xlu0 7
      %3128 = vperm.xlu0 %3127, %v3076
      %v3129 = vpop.permute.xlu0 %3128
      %3131 = vset.pattern.permute.xlu0 7
      %3132 = vperm.xlu0 %3131, %v3077
      %v3133 = vpop.permute.xlu0 %3132
      %3135 = vset.pattern.permute.xlu0 7
      %3136 = vperm.xlu0 %3135, %v3078
      %v3137 = vpop.permute.xlu0 %3136
      %3139 = vset.pattern.permute.xlu0 7
      %3140 = vperm.xlu0 %3139, %v3079
      %v3141 = vpop.permute.xlu0 %3140
      %3143 = vset.pattern.permute.xlu0 7
      %3144 = vperm.xlu0 %3143, %v3080
      %v3145 = vpop.permute.xlu0 %3144
      %3147 = vset.pattern.permute.xlu0 7
      %3148 = vperm.xlu0 %3147, %v3081
      %v3149 = vpop.permute.xlu0 %3148
      %3151 = vset.pattern.permute.xlu0 7
      %3152 = vperm.xlu0 %3151, %v3082
      %v3153 = vpop.permute.xlu0 %3152
      %3155 = vset.pattern.permute.xlu0 7
      %3156 = vperm.xlu0 %3155, %v3083
      %v3157 = vpop.permute.xlu0 %3156
      %3159 = vset.pattern.permute.xlu0 7
      %3160 = vperm.xlu0 %3159, %v3084
      %v3161 = vpop.permute.xlu0 %3160
      %3163 = vset.pattern.permute.xlu0 7
      %3164 = vperm.xlu0 %3163, %v3085
      %v3165 = vpop.permute.xlu0 %3164
      %3167 = vset.pattern.permute.xlu0 7
      %3168 = vperm.xlu0 %3167, %v3086
      %v3169 = vpop.permute.xlu0 %3168
      %3171 = vset.pattern.permute.xlu0 7
      %3172 = vperm.xlu0 %3171, %v3087
      %v3173 = vpop.permute.xlu0 %3172
      %3175 = vset.pattern.permute.xlu0 7
      %3176 = vperm.xlu0 %3175, %v3088
      %v3177 = vpop.permute.xlu0 %3176
      %3179 = vset.pattern.permute.xlu0 7
      %3180 = vperm.xlu0 %3179, %v3089
      %v3181 = vpop.permute.xlu0 %3180
      %3183 = vset.pattern.permute.xlu0 7
      %3184 = vperm.xlu0 %3183, %v3090
      %v3185 = vpop.permute.xlu0 %3184
      %3187 = vset.pattern.permute.xlu0 7
      %3188 = vperm.xlu0 %3187, %v3091
      %v3189 = vpop.permute.xlu0 %3188
      %3191 = vset.pattern.permute.xlu0 7
      %3192 = vperm.xlu0 %3191, %v3092
      %v3193 = vpop.permute.xlu0 %3192
      %3195 = vset.pattern.permute.xlu0 7
      %3196 = vperm.xlu0 %3195, %v3093
      %v3197 = vpop.permute.xlu0 %3196
      %3199 = vset.pattern.permute.xlu0 7
      %3200 = vperm.xlu0 %3199, %v3094
      %v3201 = vpop.permute.xlu0 %3200
      %3203 = vset.pattern.permute.xlu0 7
      %3204 = vperm.xlu0 %3203, %v3095
      %v3205 = vpop.permute.xlu0 %3204
      %3207 = vset.pattern.permute.xlu0 7
      %3208 = vperm.xlu0 %3207, %v3096
      %v3209 = vpop.permute.xlu0 %3208
      %3211 = vset.pattern.permute.xlu0 7
      %3212 = vperm.xlu0 %3211, %v3097
      %v3213 = vpop.permute.xlu0 %3212
      %3215 = vset.pattern.permute.xlu0 7
      %3216 = vperm.xlu0 %3215, %v3098
      %v3217 = vpop.permute.xlu0 %3216
      %3219 = vset.pattern.permute.xlu0 7
      %3220 = vperm.xlu0 %3219, %v3099
      %v3221 = vpop.permute.xlu0 %3220
      %3223 = vset.pattern.permute.xlu0 7
      %3224 = vperm.xlu0 %3223, %v3100
      %v3225 = vpop.permute.xlu0 %3224
      %3227 = vset.pattern.permute.xlu0 7
      %3228 = vperm.xlu0 %3227, %v3101
      %v3229 = vpop.permute.xlu0 %3228
      %v3230 = vrot.slane %v3105, 7
      %v3231 = vrot.slane %v3109, 7
      %v3232 = vsel %vm435, %v3230, %v3231
      %v3233 = vrot.slane %v3113, 7
      %v3234 = vsel %vm435, %v3231, %v3233
      %v3235 = vrot.slane %v3117, 7
      %v3236 = vsel %vm435, %v3233, %v3235
      %v3237 = vrot.slane %v3121, 7
      %v3238 = vsel %vm435, %v3235, %v3237
      %v3239 = vrot.slane %v3125, 7
      %v3240 = vsel %vm435, %v3237, %v3239
      %v3241 = vrot.slane %v3129, 7
      %v3242 = vsel %vm435, %v3239, %v3241
      %v3243 = vrot.slane %v3133, 7
      %v3244 = vsel %vm435, %v3241, %v3243
      %v3245 = vrot.slane %v3137, 7
      %v3246 = vsel %vm435, %v3243, %v3245
      %v3247 = vrot.slane %v3141, 7
      %v3248 = vsel %vm435, %v3245, %v3247
      %v3249 = vrot.slane %v3145, 7
      %v3250 = vsel %vm435, %v3247, %v3249
      %v3251 = vrot.slane %v3149, 7
      %v3252 = vsel %vm435, %v3249, %v3251
      %v3253 = vrot.slane %v3153, 7
      %v3254 = vsel %vm435, %v3251, %v3253
      %v3255 = vrot.slane %v3157, 7
      %v3256 = vsel %vm435, %v3253, %v3255
      %v3257 = vrot.slane %v3161, 7
      %v3258 = vsel %vm435, %v3255, %v3257
      %v3259 = vrot.slane %v3165, 7
      %v3260 = vsel %vm435, %v3257, %v3259
      %v3261 = vrot.slane %v3169, 7
      %v3262 = vsel %vm435, %v3259, %v3261
      %v3263 = vrot.slane %v3173, 7
      %v3264 = vsel %vm435, %v3261, %v3263
      %v3265 = vrot.slane %v3177, 7
      %v3266 = vsel %vm435, %v3263, %v3265
      %v3267 = vrot.slane %v3181, 7
      %v3268 = vsel %vm435, %v3265, %v3267
      %v3269 = vrot.slane %v3185, 7
      %v3270 = vsel %vm435, %v3267, %v3269
      %v3271 = vrot.slane %v3189, 7
      %v3272 = vsel %vm435, %v3269, %v3271
      %v3273 = vrot.slane %v3193, 7
      %v3274 = vsel %vm435, %v3271, %v3273
      %v3275 = vrot.slane %v3197, 7
      %v3276 = vsel %vm435, %v3273, %v3275
      %v3277 = vrot.slane %v3201, 7
      %v3278 = vsel %vm435, %v3275, %v3277
      %v3279 = vrot.slane %v3205, 7
      %v3280 = vsel %vm435, %v3277, %v3279
      %v3281 = vrot.slane %v3209, 7
      %v3282 = vsel %vm435, %v3279, %v3281
      %v3283 = vrot.slane %v3213, 7
      %v3284 = vsel %vm435, %v3281, %v3283
      %v3285 = vrot.slane %v3217, 7
      %v3286 = vsel %vm435, %v3283, %v3285
      %v3287 = vrot.slane %v3221, 7
      %v3288 = vsel %vm435, %v3285, %v3287
      %v3289 = vrot.slane %v3225, 7
      %v3290 = vsel %vm435, %v3287, %v3289
      %v3291 = vrot.slane %v3229, 7
      %v3292 = vsel %vm435, %v3289, %v3291
      %v3326 = vmul.f32 %v440, %v3230
      %v3327 = vmul.f32 %v442, %v3232
      %v3328 = vmul.f32 %v444, %v3234
      %v3329 = vmul.f32 %v446, %v3236
      %v3330 = vmul.f32 %v448, %v3238
      %v3331 = vmul.f32 %v450, %v3240
      %v3332 = vmul.f32 %v452, %v3242
      %v3333 = vmul.f32 %v454, %v3244
      %v3334 = vmul.f32 %v456, %v3246
      %v3335 = vmul.f32 %v458, %v3248
      %v3336 = vmul.f32 %v460, %v3250
      %v3337 = vmul.f32 %v462, %v3252
      %v3338 = vmul.f32 %v464, %v3254
      %v3339 = vmul.f32 %v466, %v3256
      %v3340 = vmul.f32 %v468, %v3258
      %v3341 = vmul.f32 %v470, %v3260
      %v3342 = vmul.f32 %v472, %v3262
      %v3343 = vmul.f32 %v474, %v3264
      %v3344 = vmul.f32 %v476, %v3266
      %v3345 = vmul.f32 %v478, %v3268
      %v3346 = vmul.f32 %v480, %v3270
      %v3347 = vmul.f32 %v482, %v3272
      %v3348 = vmul.f32 %v484, %v3274
      %v3349 = vmul.f32 %v486, %v3276
      %v3350 = vmul.f32 %v488, %v3278
      %v3351 = vmul.f32 %v490, %v3280
      %v3352 = vmul.f32 %v492, %v3282
      %v3353 = vmul.f32 %v494, %v3284
      %v3354 = vmul.f32 %v496, %v3286
      %v3355 = vmul.f32 %v498, %v3288
      %v3356 = vmul.f32 %v533, %v3290
      %v3357 = vmul.f32 %v3292, 0.0
      %v3358 = vmul.f32 %v3291, 0.0
      %3392 = vrot.lane.b32.xlu0 %v3326, 28
      %v3393 = vpop.permute.xlu0 %3392
      %3394 = vrot.lane.b32.xlu0 %v3327, 28
      %v3395 = vpop.permute.xlu0 %3394
      %3396 = vrot.lane.b32.xlu0 %v3328, 28
      %v3397 = vpop.permute.xlu0 %3396
      %3398 = vrot.lane.b32.xlu0 %v3329, 28
      %v3399 = vpop.permute.xlu0 %3398
      %3400 = vrot.lane.b32.xlu0 %v3330, 28
      %v3401 = vpop.permute.xlu0 %3400
      %3402 = vrot.lane.b32.xlu0 %v3331, 28
      %v3403 = vpop.permute.xlu0 %3402
      %3404 = vrot.lane.b32.xlu0 %v3332, 28
      %v3405 = vpop.permute.xlu0 %3404
      %3406 = vrot.lane.b32.xlu0 %v3333, 28
      %v3407 = vpop.permute.xlu0 %3406
      %3408 = vrot.lane.b32.xlu0 %v3334, 28
      %v3409 = vpop.permute.xlu0 %3408
      %3410 = vrot.lane.b32.xlu0 %v3335, 28
      %v3411 = vpop.permute.xlu0 %3410
      %3412 = vrot.lane.b32.xlu0 %v3336, 28
      %v3413 = vpop.permute.xlu0 %3412
      %3414 = vrot.lane.b32.xlu0 %v3337, 28
      %v3415 = vpop.permute.xlu0 %3414
      %3416 = vrot.lane.b32.xlu0 %v3338, 28
      %v3417 = vpop.permute.xlu0 %3416
      %3418 = vrot.lane.b32.xlu0 %v3339, 28
      %v3419 = vpop.permute.xlu0 %3418
      %3420 = vrot.lane.b32.xlu0 %v3340, 28
      %v3421 = vpop.permute.xlu0 %3420
      %3422 = vrot.lane.b32.xlu0 %v3341, 28
      %v3423 = vpop.permute.xlu0 %3422
      %3424 = vrot.lane.b32.xlu0 %v3342, 28
      %v3425 = vpop.permute.xlu0 %3424
      %3426 = vrot.lane.b32.xlu0 %v3343, 28
      %v3427 = vpop.permute.xlu0 %3426
      %3428 = vrot.lane.b32.xlu0 %v3344, 28
      %v3429 = vpop.permute.xlu0 %3428
      %3430 = vrot.lane.b32.xlu0 %v3345, 28
      %v3431 = vpop.permute.xlu0 %3430
      %3432 = vrot.lane.b32.xlu0 %v3346, 28
      %v3433 = vpop.permute.xlu0 %3432
      %3434 = vrot.lane.b32.xlu0 %v3347, 28
      %v3435 = vpop.permute.xlu0 %3434
      %3436 = vrot.lane.b32.xlu0 %v3348, 28
      %v3437 = vpop.permute.xlu0 %3436
      %3438 = vrot.lane.b32.xlu0 %v3349, 28
      %v3439 = vpop.permute.xlu0 %3438
      %3440 = vrot.lane.b32.xlu0 %v3350, 28
      %v3441 = vpop.permute.xlu0 %3440
      %3442 = vrot.lane.b32.xlu0 %v3351, 28
      %v3443 = vpop.permute.xlu0 %3442
      %3444 = vrot.lane.b32.xlu0 %v3352, 28
      %v3445 = vpop.permute.xlu0 %3444
      %3446 = vrot.lane.b32.xlu0 %v3353, 28
      %v3447 = vpop.permute.xlu0 %3446
      %3448 = vrot.lane.b32.xlu0 %v3354, 28
      %v3449 = vpop.permute.xlu0 %3448
      %3450 = vrot.lane.b32.xlu0 %v3355, 28
      %v3451 = vpop.permute.xlu0 %3450
      %3452 = vrot.lane.b32.xlu0 %v3356, 28
      %v3453 = vpop.permute.xlu0 %3452
      %3454 = vrot.lane.b32.xlu0 %v3357, 28
      %v3455 = vpop.permute.xlu0 %3454
      %3456 = vrot.lane.b32.xlu0 %v3358, 28
      %v3457 = vpop.permute.xlu0 %3456
      %vm3491 = vcmask 261345
      %3492 = vst.msk [vmem:[#allocation2 - $0x1] sm:$0xfe] %vm3491, %v3393
      %vm3493 = vcmask 261344
      %3494 = vst.msk [vmem:[#allocation2 + $0x7] sm:$0xff] %vm3493, %v3395
      %3495 = vst.msk [vmem:[#allocation2 + $0xf] sm:$0xff] %vm3493, %v3397
      %3496 = vst.msk [vmem:[#allocation2 + $0x17] sm:$0xff] %vm3493, %v3399
      %3497 = vst.msk [vmem:[#allocation2 + $0x1f] sm:$0xff] %vm3493, %v3401
      %3498 = vst.msk [vmem:[#allocation2 + $0x27] sm:$0xff] %vm3493, %v3403
      %3499 = vst.msk [vmem:[#allocation2 + $0x2f] sm:$0xff] %vm3493, %v3405
      %3500 = vst.msk [vmem:[#allocation2 + $0x37] sm:$0xff] %vm3493, %v3407
      %3501 = vst.msk [vmem:[#allocation2 + $0x3f] sm:$0xff] %vm3493, %v3409
      %3502 = vst.msk [vmem:[#allocation2 + $0x47] sm:$0xff] %vm3493, %v3411
      %3503 = vst.msk [vmem:[#allocation2 + $0x4f] sm:$0xff] %vm3493, %v3413
      %3504 = vst.msk [vmem:[#allocation2 + $0x57] sm:$0xff] %vm3493, %v3415
      %3505 = vst.msk [vmem:[#allocation2 + $0x5f] sm:$0xff] %vm3493, %v3417
      %3506 = vst.msk [vmem:[#allocation2 + $0x67] sm:$0xff] %vm3493, %v3419
      %3507 = vst.msk [vmem:[#allocation2 + $0x6f] sm:$0xff] %vm3493, %v3421
      %3508 = vst.msk [vmem:[#allocation2 + $0x77] sm:$0xff] %vm3493, %v3423
      %3509 = vst.msk [vmem:[#allocation2 + $0x7f] sm:$0xff] %vm3493, %v3425
      %3510 = vst.msk [vmem:[#allocation2 + $0x87] sm:$0xff] %vm3493, %v3427
      %3511 = vst.msk [vmem:[#allocation2 + $0x8f] sm:$0xff] %vm3493, %v3429
      %3512 = vst.msk [vmem:[#allocation2 + $0x97] sm:$0xff] %vm3493, %v3431
      %3513 = vst.msk [vmem:[#allocation2 + $0x9f] sm:$0xff] %vm3493, %v3433
      %3514 = vst.msk [vmem:[#allocation2 + $0xa7] sm:$0xff] %vm3493, %v3435
      %3515 = vst.msk [vmem:[#allocation2 + $0xaf] sm:$0xff] %vm3493, %v3437
      %3516 = vst.msk [vmem:[#allocation2 + $0xb7] sm:$0xff] %vm3493, %v3439
      %3517 = vst.msk [vmem:[#allocation2 + $0xbf] sm:$0xff] %vm3493, %v3441
      %3518 = vst.msk [vmem:[#allocation2 + $0xc7] sm:$0xff] %vm3493, %v3443
      %3519 = vst.msk [vmem:[#allocation2 + $0xcf] sm:$0xff] %vm3493, %v3445
      %3520 = vst.msk [vmem:[#allocation2 + $0xd7] sm:$0xff] %vm3493, %v3447
      %3521 = vst.msk [vmem:[#allocation2 + $0xdf] sm:$0xff] %vm3493, %v3449
      %3522 = vst.msk [vmem:[#allocation2 + $0xe7] sm:$0xff] %vm3493, %v3451
      %3523 = vst.msk [vmem:[#allocation2 + $0xef] sm:$0xff] %vm3493, %v3453
      %3524 = vst.msk [vmem:[#allocation2 + $0xf7] sm:$0xff] %vm3493, %v3455
      %vm3525 = vcmask 254176
      %3526 = vst.msk [vmem:[#allocation2 + $0xff] sm:$0x1] %vm3525, %v3457
      %v3527 = vld [vmem:[%s4] sm:$0xff]
      %v3528 = vld [vmem:[%s4 + $0x8] sm:$0xff]
      %v3529 = vld [vmem:[%s4 + $0x10] sm:$0xff]
      %v3530 = vld [vmem:[%s4 + $0x18] sm:$0xff]
      %v3531 = vld [vmem:[%s4 + $0x20] sm:$0xff]
      %v3532 = vld [vmem:[%s4 + $0x28] sm:$0xff]
      %v3533 = vld [vmem:[%s4 + $0x30] sm:$0xff]
      %v3534 = vld [vmem:[%s4 + $0x38] sm:$0xff]
      %v3535 = vld [vmem:[%s4 + $0x40] sm:$0xff]
      %v3536 = vld [vmem:[%s4 + $0x48] sm:$0xff]
      %v3537 = vld [vmem:[%s4 + $0x50] sm:$0xff]
      %v3538 = vld [vmem:[%s4 + $0x58] sm:$0xff]
      %v3539 = vld [vmem:[%s4 + $0x60] sm:$0xff]
      %v3540 = vld [vmem:[%s4 + $0x68] sm:$0xff]
      %v3541 = vld [vmem:[%s4 + $0x70] sm:$0xff]
      %v3542 = vld [vmem:[%s4 + $0x78] sm:$0xff]
      %v3543 = vld [vmem:[%s4 + $0x80] sm:$0xff]
      %v3544 = vld [vmem:[%s4 + $0x88] sm:$0xff]
      %v3545 = vld [vmem:[%s4 + $0x90] sm:$0xff]
      %v3546 = vld [vmem:[%s4 + $0x98] sm:$0xff]
      %v3547 = vld [vmem:[%s4 + $0xa0] sm:$0xff]
      %v3548 = vld [vmem:[%s4 + $0xa8] sm:$0xff]
      %v3549 = vld [vmem:[%s4 + $0xb0] sm:$0xff]
      %v3550 = vld [vmem:[%s4 + $0xb8] sm:$0xff]
      %v3551 = vld [vmem:[%s4 + $0xc0] sm:$0xff]
      %v3552 = vld [vmem:[%s4 + $0xc8] sm:$0xff]
      %v3553 = vld [vmem:[%s4 + $0xd0] sm:$0xff]
      %v3554 = vld [vmem:[%s4 + $0xd8] sm:$0xff]
      %v3555 = vld [vmem:[%s4 + $0xe0] sm:$0xff]
      %v3556 = vld [vmem:[%s4 + $0xe8] sm:$0xff]
      %v3557 = vld [vmem:[%s4 + $0xf0] sm:$0xff]
      %v3558 = vld [vmem:[%s4 + $0xf8] sm:$0xff]
      %3560 = vset.pattern.permute.xlu0 8
      %3561 = vperm.xlu0 %3560, %v3527
      %v3562 = vpop.permute.xlu0 %3561
      %3564 = vset.pattern.permute.xlu0 8
      %3565 = vperm.xlu0 %3564, %v3528
      %v3566 = vpop.permute.xlu0 %3565
      %3568 = vset.pattern.permute.xlu0 8
      %3569 = vperm.xlu0 %3568, %v3529
      %v3570 = vpop.permute.xlu0 %3569
      %3572 = vset.pattern.permute.xlu0 8
      %3573 = vperm.xlu0 %3572, %v3530
      %v3574 = vpop.permute.xlu0 %3573
      %3576 = vset.pattern.permute.xlu0 8
      %3577 = vperm.xlu0 %3576, %v3531
      %v3578 = vpop.permute.xlu0 %3577
      %3580 = vset.pattern.permute.xlu0 8
      %3581 = vperm.xlu0 %3580, %v3532
      %v3582 = vpop.permute.xlu0 %3581
      %3584 = vset.pattern.permute.xlu0 8
      %3585 = vperm.xlu0 %3584, %v3533
      %v3586 = vpop.permute.xlu0 %3585
      %3588 = vset.pattern.permute.xlu0 8
      %3589 = vperm.xlu0 %3588, %v3534
      %v3590 = vpop.permute.xlu0 %3589
      %3592 = vset.pattern.permute.xlu0 8
      %3593 = vperm.xlu0 %3592, %v3535
      %v3594 = vpop.permute.xlu0 %3593
      %3596 = vset.pattern.permute.xlu0 8
      %3597 = vperm.xlu0 %3596, %v3536
      %v3598 = vpop.permute.xlu0 %3597
      %3600 = vset.pattern.permute.xlu0 8
      %3601 = vperm.xlu0 %3600, %v3537
      %v3602 = vpop.permute.xlu0 %3601
      %3604 = vset.pattern.permute.xlu0 8
      %3605 = vperm.xlu0 %3604, %v3538
      %v3606 = vpop.permute.xlu0 %3605
      %3608 = vset.pattern.permute.xlu0 8
      %3609 = vperm.xlu0 %3608, %v3539
      %v3610 = vpop.permute.xlu0 %3609
      %3612 = vset.pattern.permute.xlu0 8
      %3613 = vperm.xlu0 %3612, %v3540
      %v3614 = vpop.permute.xlu0 %3613
      %3616 = vset.pattern.permute.xlu0 8
      %3617 = vperm.xlu0 %3616, %v3541
      %v3618 = vpop.permute.xlu0 %3617
      %3620 = vset.pattern.permute.xlu0 8
      %3621 = vperm.xlu0 %3620, %v3542
      %v3622 = vpop.permute.xlu0 %3621
      %3624 = vset.pattern.permute.xlu0 8
      %3625 = vperm.xlu0 %3624, %v3543
      %v3626 = vpop.permute.xlu0 %3625
      %3628 = vset.pattern.permute.xlu0 8
      %3629 = vperm.xlu0 %3628, %v3544
      %v3630 = vpop.permute.xlu0 %3629
      %3632 = vset.pattern.permute.xlu0 8
      %3633 = vperm.xlu0 %3632, %v3545
      %v3634 = vpop.permute.xlu0 %3633
      %3636 = vset.pattern.permute.xlu0 8
      %3637 = vperm.xlu0 %3636, %v3546
      %v3638 = vpop.permute.xlu0 %3637
      %3640 = vset.pattern.permute.xlu0 8
      %3641 = vperm.xlu0 %3640, %v3547
      %v3642 = vpop.permute.xlu0 %3641
      %3644 = vset.pattern.permute.xlu0 8
      %3645 = vperm.xlu0 %3644, %v3548
      %v3646 = vpop.permute.xlu0 %3645
      %3648 = vset.pattern.permute.xlu0 8
      %3649 = vperm.xlu0 %3648, %v3549
      %v3650 = vpop.permute.xlu0 %3649
      %3652 = vset.pattern.permute.xlu0 8
      %3653 = vperm.xlu0 %3652, %v3550
      %v3654 = vpop.permute.xlu0 %3653
      %3656 = vset.pattern.permute.xlu0 8
      %3657 = vperm.xlu0 %3656, %v3551
      %v3658 = vpop.permute.xlu0 %3657
      %3660 = vset.pattern.permute.xlu0 8
      %3661 = vperm.xlu0 %3660, %v3552
      %v3662 = vpop.permute.xlu0 %3661
      %3664 = vset.pattern.permute.xlu0 8
      %3665 = vperm.xlu0 %3664, %v3553
      %v3666 = vpop.permute.xlu0 %3665
      %3668 = vset.pattern.permute.xlu0 8
      %3669 = vperm.xlu0 %3668, %v3554
      %v3670 = vpop.permute.xlu0 %3669
      %3672 = vset.pattern.permute.xlu0 8
      %3673 = vperm.xlu0 %3672, %v3555
      %v3674 = vpop.permute.xlu0 %3673
      %3676 = vset.pattern.permute.xlu0 8
      %3677 = vperm.xlu0 %3676, %v3556
      %v3678 = vpop.permute.xlu0 %3677
      %3680 = vset.pattern.permute.xlu0 8
      %3681 = vperm.xlu0 %3680, %v3557
      %v3682 = vpop.permute.xlu0 %3681
      %3684 = vset.pattern.permute.xlu0 8
      %3685 = vperm.xlu0 %3684, %v3558
      %v3686 = vpop.permute.xlu0 %3685
      %v3687 = vrot.slane %v3562, 6
      %v3688 = vrot.slane %v3566, 6
      %v3689 = vsel %vm1408, %v3687, %v3688
      %v3690 = vrot.slane %v3570, 6
      %v3691 = vsel %vm1408, %v3688, %v3690
      %v3692 = vrot.slane %v3574, 6
      %v3693 = vsel %vm1408, %v3690, %v3692
      %v3694 = vrot.slane %v3578, 6
      %v3695 = vsel %vm1408, %v3692, %v3694
      %v3696 = vrot.slane %v3582, 6
      %v3697 = vsel %vm1408, %v3694, %v3696
      %v3698 = vrot.slane %v3586, 6
      %v3699 = vsel %vm1408, %v3696, %v3698
      %v3700 = vrot.slane %v3590, 6
      %v3701 = vsel %vm1408, %v3698, %v3700
      %v3702 = vrot.slane %v3594, 6
      %v3703 = vsel %vm1408, %v3700, %v3702
      %v3704 = vrot.slane %v3598, 6
      %v3705 = vsel %vm1408, %v3702, %v3704
      %v3706 = vrot.slane %v3602, 6
      %v3707 = vsel %vm1408, %v3704, %v3706
      %v3708 = vrot.slane %v3606, 6
      %v3709 = vsel %vm1408, %v3706, %v3708
      %v3710 = vrot.slane %v3610, 6
      %v3711 = vsel %vm1408, %v3708, %v3710
      %v3712 = vrot.slane %v3614, 6
      %v3713 = vsel %vm1408, %v3710, %v3712
      %v3714 = vrot.slane %v3618, 6
      %v3715 = vsel %vm1408, %v3712, %v3714
      %v3716 = vrot.slane %v3622, 6
      %v3717 = vsel %vm1408, %v3714, %v3716
      %v3718 = vrot.slane %v3626, 6
      %v3719 = vsel %vm1408, %v3716, %v3718
      %v3720 = vrot.slane %v3630, 6
      %v3721 = vsel %vm1408, %v3718, %v3720
      %v3722 = vrot.slane %v3634, 6
      %v3723 = vsel %vm1408, %v3720, %v3722
      %v3724 = vrot.slane %v3638, 6
      %v3725 = vsel %vm1408, %v3722, %v3724
      %v3726 = vrot.slane %v3642, 6
      %v3727 = vsel %vm1408, %v3724, %v3726
      %v3728 = vrot.slane %v3646, 6
      %v3729 = vsel %vm1408, %v3726, %v3728
      %v3730 = vrot.slane %v3650, 6
      %v3731 = vsel %vm1408, %v3728, %v3730
      %v3732 = vrot.slane %v3654, 6
      %v3733 = vsel %vm1408, %v3730, %v3732
      %v3734 = vrot.slane %v3658, 6
      %v3735 = vsel %vm1408, %v3732, %v3734
      %v3736 = vrot.slane %v3662, 6
      %v3737 = vsel %vm1408, %v3734, %v3736
      %v3738 = vrot.slane %v3666, 6
      %v3739 = vsel %vm1408, %v3736, %v3738
      %v3740 = vrot.slane %v3670, 6
      %v3741 = vsel %vm1408, %v3738, %v3740
      %v3742 = vrot.slane %v3674, 6
      %v3743 = vsel %vm1408, %v3740, %v3742
      %v3744 = vrot.slane %v3678, 6
      %v3745 = vsel %vm1408, %v3742, %v3744
      %v3746 = vrot.slane %v3682, 6
      %v3747 = vsel %vm1408, %v3744, %v3746
      %v3748 = vrot.slane %v3686, 6
      %v3749 = vsel %vm1408, %v3746, %v3748
      %v3783 = vmul.f32 %v440, %v3687
      %v3784 = vmul.f32 %v442, %v3689
      %v3785 = vmul.f32 %v444, %v3691
      %v3786 = vmul.f32 %v446, %v3693
      %v3787 = vmul.f32 %v448, %v3695
      %v3788 = vmul.f32 %v450, %v3697
      %v3789 = vmul.f32 %v452, %v3699
      %v3790 = vmul.f32 %v454, %v3701
      %v3791 = vmul.f32 %v456, %v3703
      %v3792 = vmul.f32 %v458, %v3705
      %v3793 = vmul.f32 %v460, %v3707
      %v3794 = vmul.f32 %v462, %v3709
      %v3795 = vmul.f32 %v464, %v3711
      %v3796 = vmul.f32 %v466, %v3713
      %v3797 = vmul.f32 %v468, %v3715
      %v3798 = vmul.f32 %v470, %v3717
      %v3799 = vmul.f32 %v472, %v3719
      %v3800 = vmul.f32 %v474, %v3721
      %v3801 = vmul.f32 %v476, %v3723
      %v3802 = vmul.f32 %v478, %v3725
      %v3803 = vmul.f32 %v480, %v3727
      %v3804 = vmul.f32 %v482, %v3729
      %v3805 = vmul.f32 %v484, %v3731
      %v3806 = vmul.f32 %v486, %v3733
      %v3807 = vmul.f32 %v488, %v3735
      %v3808 = vmul.f32 %v490, %v3737
      %v3809 = vmul.f32 %v492, %v3739
      %v3810 = vmul.f32 %v494, %v3741
      %v3811 = vmul.f32 %v496, %v3743
      %v3812 = vmul.f32 %v498, %v3745
      %v3813 = vmul.f32 %v533, %v3747
      %v3814 = vmul.f32 %v3749, 0.0
      %v3815 = vmul.f32 %v3748, 0.0
      %3849 = vrot.lane.b32.xlu0 %v3783, 32
      %v3850 = vpop.permute.xlu0 %3849
      %3851 = vrot.lane.b32.xlu0 %v3784, 32
      %v3852 = vpop.permute.xlu0 %3851
      %3853 = vrot.lane.b32.xlu0 %v3785, 32
      %v3854 = vpop.permute.xlu0 %3853
      %3855 = vrot.lane.b32.xlu0 %v3786, 32
      %v3856 = vpop.permute.xlu0 %3855
      %3857 = vrot.lane.b32.xlu0 %v3787, 32
      %v3858 = vpop.permute.xlu0 %3857
      %3859 = vrot.lane.b32.xlu0 %v3788, 32
      %v3860 = vpop.permute.xlu0 %3859
      %3861 = vrot.lane.b32.xlu0 %v3789, 32
      %v3862 = vpop.permute.xlu0 %3861
      %3863 = vrot.lane.b32.xlu0 %v3790, 32
      %v3864 = vpop.permute.xlu0 %3863
      %3865 = vrot.lane.b32.xlu0 %v3791, 32
      %v3866 = vpop.permute.xlu0 %3865
      %3867 = vrot.lane.b32.xlu0 %v3792, 32
      %v3868 = vpop.permute.xlu0 %3867
      %3869 = vrot.lane.b32.xlu0 %v3793, 32
      %v3870 = vpop.permute.xlu0 %3869
      %3871 = vrot.lane.b32.xlu0 %v3794, 32
      %v3872 = vpop.permute.xlu0 %3871
      %3873 = vrot.lane.b32.xlu0 %v3795, 32
      %v3874 = vpop.permute.xlu0 %3873
      %3875 = vrot.lane.b32.xlu0 %v3796, 32
      %v3876 = vpop.permute.xlu0 %3875
      %3877 = vrot.lane.b32.xlu0 %v3797, 32
      %v3878 = vpop.permute.xlu0 %3877
      %3879 = vrot.lane.b32.xlu0 %v3798, 32
      %v3880 = vpop.permute.xlu0 %3879
      %3881 = vrot.lane.b32.xlu0 %v3799, 32
      %v3882 = vpop.permute.xlu0 %3881
      %3883 = vrot.lane.b32.xlu0 %v3800, 32
      %v3884 = vpop.permute.xlu0 %3883
      %3885 = vrot.lane.b32.xlu0 %v3801, 32
      %v3886 = vpop.permute.xlu0 %3885
      %3887 = vrot.lane.b32.xlu0 %v3802, 32
      %v3888 = vpop.permute.xlu0 %3887
      %3889 = vrot.lane.b32.xlu0 %v3803, 32
      %v3890 = vpop.permute.xlu0 %3889
      %3891 = vrot.lane.b32.xlu0 %v3804, 32
      %v3892 = vpop.permute.xlu0 %3891
      %3893 = vrot.lane.b32.xlu0 %v3805, 32
      %v3894 = vpop.permute.xlu0 %3893
      %3895 = vrot.lane.b32.xlu0 %v3806, 32
      %v3896 = vpop.permute.xlu0 %3895
      %3897 = vrot.lane.b32.xlu0 %v3807, 32
      %v3898 = vpop.permute.xlu0 %3897
      %3899 = vrot.lane.b32.xlu0 %v3808, 32
      %v3900 = vpop.permute.xlu0 %3899
      %3901 = vrot.lane.b32.xlu0 %v3809, 32
      %v3902 = vpop.permute.xlu0 %3901
      %3903 = vrot.lane.b32.xlu0 %v3810, 32
      %v3904 = vpop.permute.xlu0 %3903
      %3905 = vrot.lane.b32.xlu0 %v3811, 32
      %v3906 = vpop.permute.xlu0 %3905
      %3907 = vrot.lane.b32.xlu0 %v3812, 32
      %v3908 = vpop.permute.xlu0 %3907
      %3909 = vrot.lane.b32.xlu0 %v3813, 32
      %v3910 = vpop.permute.xlu0 %3909
      %3911 = vrot.lane.b32.xlu0 %v3814, 32
      %v3912 = vpop.permute.xlu0 %3911
      %3913 = vrot.lane.b32.xlu0 %v3815, 32
      %v3914 = vpop.permute.xlu0 %3913
      %vm3948 = vcmask 294146
      %3949 = vst.msk [vmem:[#allocation2 - $0x2] sm:$0xfc] %vm3948, %v3850
      %vm3950 = vcmask 294144
      %3951 = vst.msk [vmem:[#allocation2 + $0x6] sm:$0xff] %vm3950, %v3852
      %3952 = vst.msk [vmem:[#allocation2 + $0xe] sm:$0xff] %vm3950, %v3854
      %3953 = vst.msk [vmem:[#allocation2 + $0x16] sm:$0xff] %vm3950, %v3856
      %3954 = vst.msk [vmem:[#allocation2 + $0x1e] sm:$0xff] %vm3950, %v3858
      %3955 = vst.msk [vmem:[#allocation2 + $0x26] sm:$0xff] %vm3950, %v3860
      %3956 = vst.msk [vmem:[#allocation2 + $0x2e] sm:$0xff] %vm3950, %v3862
      %3957 = vst.msk [vmem:[#allocation2 + $0x36] sm:$0xff] %vm3950, %v3864
      %3958 = vst.msk [vmem:[#allocation2 + $0x3e] sm:$0xff] %vm3950, %v3866
      %3959 = vst.msk [vmem:[#allocation2 + $0x46] sm:$0xff] %vm3950, %v3868
      %3960 = vst.msk [vmem:[#allocation2 + $0x4e] sm:$0xff] %vm3950, %v3870
      %3961 = vst.msk [vmem:[#allocation2 + $0x56] sm:$0xff] %vm3950, %v3872
      %3962 = vst.msk [vmem:[#allocation2 + $0x5e] sm:$0xff] %vm3950, %v3874
      %3963 = vst.msk [vmem:[#allocation2 + $0x66] sm:$0xff] %vm3950, %v3876
      %3964 = vst.msk [vmem:[#allocation2 + $0x6e] sm:$0xff] %vm3950, %v3878
      %3965 = vst.msk [vmem:[#allocation2 + $0x76] sm:$0xff] %vm3950, %v3880
      %3966 = vst.msk [vmem:[#allocation2 + $0x7e] sm:$0xff] %vm3950, %v3882
      %3967 = vst.msk [vmem:[#allocation2 + $0x86] sm:$0xff] %vm3950, %v3884
      %3968 = vst.msk [vmem:[#allocation2 + $0x8e] sm:$0xff] %vm3950, %v3886
      %3969 = vst.msk [vmem:[#allocation2 + $0x96] sm:$0xff] %vm3950, %v3888
      %3970 = vst.msk [vmem:[#allocation2 + $0x9e] sm:$0xff] %vm3950, %v3890
      %3971 = vst.msk [vmem:[#allocation2 + $0xa6] sm:$0xff] %vm3950, %v3892
      %3972 = vst.msk [vmem:[#allocation2 + $0xae] sm:$0xff] %vm3950, %v3894
      %3973 = vst.msk [vmem:[#allocation2 + $0xb6] sm:$0xff] %vm3950, %v3896
      %3974 = vst.msk [vmem:[#allocation2 + $0xbe] sm:$0xff] %vm3950, %v3898
      %3975 = vst.msk [vmem:[#allocation2 + $0xc6] sm:$0xff] %vm3950, %v3900
      %3976 = vst.msk [vmem:[#allocation2 + $0xce] sm:$0xff] %vm3950, %v3902
      %3977 = vst.msk [vmem:[#allocation2 + $0xd6] sm:$0xff] %vm3950, %v3904
      %3978 = vst.msk [vmem:[#allocation2 + $0xde] sm:$0xff] %vm3950, %v3906
      %3979 = vst.msk [vmem:[#allocation2 + $0xe6] sm:$0xff] %vm3950, %v3908
      %3980 = vst.msk [vmem:[#allocation2 + $0xee] sm:$0xff] %vm3950, %v3910
      %3981 = vst.msk [vmem:[#allocation2 + $0xf6] sm:$0xff] %vm3950, %v3912
      %vm3982 = vcmask 288000
      %3983 = vst.msk [vmem:[#allocation2 + $0xfe] sm:$0x3] %vm3982, %v3914
      %v3984 = vld [vmem:[#allocation2] sm:$0xff]
      %v3985 = vld [vmem:[#allocation2 + $0x8] sm:$0xff]
      %v3986 = vld [vmem:[#allocation2 + $0x10] sm:$0xff]
      %v3987 = vld [vmem:[#allocation2 + $0x18] sm:$0xff]
      %v3988 = vld [vmem:[#allocation2 + $0x20] sm:$0xff]
      %v3989 = vld [vmem:[#allocation2 + $0x28] sm:$0xff]
      %v3990 = vld [vmem:[#allocation2 + $0x30] sm:$0xff]
      %v3991 = vld [vmem:[#allocation2 + $0x38] sm:$0xff]
      %v3992 = vld [vmem:[#allocation2 + $0x40] sm:$0xff]
      %v3993 = vld [vmem:[#allocation2 + $0x48] sm:$0xff]
      %v3994 = vld [vmem:[#allocation2 + $0x50] sm:$0xff]
      %v3995 = vld [vmem:[#allocation2 + $0x58] sm:$0xff]
      %v3996 = vld [vmem:[#allocation2 + $0x60] sm:$0xff]
      %v3997 = vld [vmem:[#allocation2 + $0x68] sm:$0xff]
      %v3998 = vld [vmem:[#allocation2 + $0x70] sm:$0xff]
      %v3999 = vld [vmem:[#allocation2 + $0x78] sm:$0xff]
      %v4000 = vld [vmem:[#allocation2 + $0x80] sm:$0xff]
      %v4001 = vld [vmem:[#allocation2 + $0x88] sm:$0xff]
      %v4002 = vld [vmem:[#allocation2 + $0x90] sm:$0xff]
      %v4003 = vld [vmem:[#allocation2 + $0x98] sm:$0xff]
      %v4004 = vld [vmem:[#allocation2 + $0xa0] sm:$0xff]
      %v4005 = vld [vmem:[#allocation2 + $0xa8] sm:$0xff]
      %v4006 = vld [vmem:[#allocation2 + $0xb0] sm:$0xff]
      %v4007 = vld [vmem:[#allocation2 + $0xb8] sm:$0xff]
      %v4008 = vld [vmem:[#allocation2 + $0xc0] sm:$0xff]
      %v4009 = vld [vmem:[#allocation2 + $0xc8] sm:$0xff]
      %v4010 = vld [vmem:[#allocation2 + $0xd0] sm:$0xff]
      %v4011 = vld [vmem:[#allocation2 + $0xd8] sm:$0xff]
      %v4012 = vld [vmem:[#allocation2 + $0xe0] sm:$0xff]
      %v4013 = vld [vmem:[#allocation2 + $0xe8] sm:$0xff]
      %v4014 = vld [vmem:[#allocation2 + $0xf0] sm:$0xff]
      %v4015 = vld [vmem:[#allocation2 + $0xf8] sm:$0xff]
      %v4016 = vpack.c.bf16 %v3985, %v3984
      %v4017 = vpack.c.bf16 %v3987, %v3986
      %v4018 = vpack.c.bf16 %v3989, %v3988
      %v4019 = vpack.c.bf16 %v3991, %v3990
      %v4020 = vpack.c.bf16 %v3993, %v3992
      %v4021 = vpack.c.bf16 %v3995, %v3994
      %v4022 = vpack.c.bf16 %v3997, %v3996
      %v4023 = vpack.c.bf16 %v3999, %v3998
      %v4024 = vpack.c.bf16 %v4001, %v4000
      %v4025 = vpack.c.bf16 %v4003, %v4002
      %v4026 = vpack.c.bf16 %v4005, %v4004
      %v4027 = vpack.c.bf16 %v4007, %v4006
      %v4028 = vpack.c.bf16 %v4009, %v4008
      %v4029 = vpack.c.bf16 %v4011, %v4010
      %v4030 = vpack.c.bf16 %v4013, %v4012
      %v4031 = vpack.c.bf16 %v4015, %v4014
      %v4032 = vld [vmem:[%s3] sm:$0xf]
      %v4033 = vld [vmem:[%s3 + $0x4] sm:$0xf]
      %v4034 = vld [vmem:[%s3 + $0x8] sm:$0xf]
      %v4035 = vld [vmem:[%s3 + $0xc] sm:$0xf]
      %v4036 = vld [vmem:[%s3 + $0x10] sm:$0x3]
      %v4042 = vunpack.c.l.b16 %v4032
      %v4043 = vunpack.c.l.b16 %v4033
      %v4044 = vunpack.c.l.b16 %v4034
      %v4045 = vunpack.c.l.b16 %v4035
      %v4046 = vunpack.c.l.b16 %v4036
      %v4047 = vpack.c.b16 %v4043, %v4042
      %v4048 = vpack.c.b16 %v4045, %v4044
      %v4049 = vpack.c.b16 %v4046, %v4046
      %vm4052 = vcmask 293888
      %v4054 = vsel %vm4052, %v4016, 0
      %v4057 = vsel %vm4052, %v4017, 0
      %v4060 = vsel %vm4052, %v4018, 0
      %v4063 = vsel %vm4052, %v4019, 0
      %v4066 = vsel %vm4052, %v4020, 0
      %v4069 = vsel %vm4052, %v4021, 0
      %v4072 = vsel %vm4052, %v4022, 0
      %v4075 = vsel %vm4052, %v4023, 0
      %v4078 = vsel %vm4052, %v4024, 0
      %v4081 = vsel %vm4052, %v4025, 0
      %v4084 = vsel %vm4052, %v4026, 0
      %v4087 = vsel %vm4052, %v4027, 0
      %v4090 = vsel %vm4052, %v4028, 0
      %v4093 = vsel %vm4052, %v4029, 0
      %v4096 = vsel %vm4052, %v4030, 0
      %v4099 = vsel %vm4052, %v4031, 0
      %v4102 = vsel %vm1408, %v4049, 0
      %4104 = vmatpush.bf16.msra.mxu0 0
      %4105 = vmatpush.bf16.msra.mxu0 0
      %4106 = vmatpush.bf16.msra.mxu0 0
      %4107 = vmatpush.bf16.msra.mxu0 0
      %4108 = vmatpush.bf16.msra.mxu0 0
      %4109 = vmatpush.bf16.msra.mxu0 %v4102
      %4110 = vmatpush.bf16.msra.mxu0 %v4048
      %4111 = vmatpush.bf16.msra.mxu0 %v4047
      %4112 = vmatmul.bf16.gmra.mxu0 %v4054
      %v4113 = vpop.f32.mrf.mxu0
      %v4114 = vadd.f32 0.0, %v4113
      %v4115 = vpop.f32.mrf.mxu0
      %v4116 = vadd.f32 0.0, %v4115
      %4117 = vmatmul.bf16.gmra.mxu0 %v4057
      %v4118 = vpop.f32.mrf.mxu0
      %v4119 = vadd.f32 0.0, %v4118
      %v4120 = vpop.f32.mrf.mxu0
      %v4121 = vadd.f32 0.0, %v4120
      %4122 = vmatmul.bf16.gmra.mxu0 %v4060
      %v4123 = vpop.f32.mrf.mxu0
      %v4124 = vadd.f32 0.0, %v4123
      %v4125 = vpop.f32.mrf.mxu0
      %v4126 = vadd.f32 0.0, %v4125
      %4127 = vmatmul.bf16.gmra.mxu0 %v4063
      %v4128 = vpop.f32.mrf.mxu0
      %v4129 = vadd.f32 0.0, %v4128
      %v4130 = vpop.f32.mrf.mxu0
      %v4131 = vadd.f32 0.0, %v4130
      %4132 = vmatmul.bf16.gmra.mxu0 %v4066
      %v4133 = vpop.f32.mrf.mxu0
      %v4134 = vadd.f32 0.0, %v4133
      %v4135 = vpop.f32.mrf.mxu0
      %v4136 = vadd.f32 0.0, %v4135
      %4137 = vmatmul.bf16.gmra.mxu0 %v4069
      %v4138 = vpop.f32.mrf.mxu0
      %v4139 = vadd.f32 0.0, %v4138
      %v4140 = vpop.f32.mrf.mxu0
      %v4141 = vadd.f32 0.0, %v4140
      %4142 = vmatmul.bf16.gmra.mxu0 %v4072
      %v4143 = vpop.f32.mrf.mxu0
      %v4144 = vadd.f32 0.0, %v4143
      %v4145 = vpop.f32.mrf.mxu0
      %v4146 = vadd.f32 0.0, %v4145
      %4147 = vmatmul.bf16.gmra.mxu0 %v4075
      %v4148 = vpop.f32.mrf.mxu0
      %v4149 = vadd.f32 0.0, %v4148
      %v4150 = vpop.f32.mrf.mxu0
      %v4151 = vadd.f32 0.0, %v4150
      %4152 = vmatmul.bf16.gmra.mxu0 %v4078
      %v4153 = vpop.f32.mrf.mxu0
      %v4154 = vadd.f32 0.0, %v4153
      %v4155 = vpop.f32.mrf.mxu0
      %v4156 = vadd.f32 0.0, %v4155
      %4157 = vmatmul.bf16.gmra.mxu0 %v4081
      %v4158 = vpop.f32.mrf.mxu0
      %v4159 = vadd.f32 0.0, %v4158
      %v4160 = vpop.f32.mrf.mxu0
      %v4161 = vadd.f32 0.0, %v4160
      %4162 = vmatmul.bf16.gmra.mxu0 %v4084
      %v4163 = vpop.f32.mrf.mxu0
      %v4164 = vadd.f32 0.0, %v4163
      %v4165 = vpop.f32.mrf.mxu0
      %v4166 = vadd.f32 0.0, %v4165
      %4167 = vmatmul.bf16.gmra.mxu0 %v4087
      %v4168 = vpop.f32.mrf.mxu0
      %v4169 = vadd.f32 0.0, %v4168
      %v4170 = vpop.f32.mrf.mxu0
      %v4171 = vadd.f32 0.0, %v4170
      %4172 = vmatmul.bf16.gmra.mxu0 %v4090
      %v4173 = vpop.f32.mrf.mxu0
      %v4174 = vadd.f32 0.0, %v4173
      %v4175 = vpop.f32.mrf.mxu0
      %v4176 = vadd.f32 0.0, %v4175
      %4177 = vmatmul.bf16.gmra.mxu0 %v4093
      %v4178 = vpop.f32.mrf.mxu0
      %v4179 = vadd.f32 0.0, %v4178
      %v4180 = vpop.f32.mrf.mxu0
      %v4181 = vadd.f32 0.0, %v4180
      %4182 = vmatmul.bf16.gmra.mxu0 %v4096
      %v4183 = vpop.f32.mrf.mxu0
      %v4184 = vadd.f32 0.0, %v4183
      %v4185 = vpop.f32.mrf.mxu0
      %v4186 = vadd.f32 0.0, %v4185
      %4187 = vmatmul.bf16.gmra.mxu0 %v4099
      %v4188 = vpop.f32.mrf.mxu0
      %v4189 = vadd.f32 0.0, %v4188
      %v4190 = vpop.f32.mrf.mxu0
      %v4191 = vadd.f32 0.0, %v4190
      %4192 = vdwg.mxu0
      %4193 = vst.msk [vmem:[%s260] sm:$0xff] %vm758, %v4114
      %4194 = vst.msk [vmem:[%s260 + $0x8] sm:$0xff] %vm758, %v4116
      %4195 = vst.msk [vmem:[%s260 + $0x10] sm:$0xff] %vm758, %v4119
      %4196 = vst.msk [vmem:[%s260 + $0x18] sm:$0xff] %vm758, %v4121
      %4197 = vst.msk [vmem:[%s260 + $0x20] sm:$0xff] %vm758, %v4124
      %4198 = vst.msk [vmem:[%s260 + $0x28] sm:$0xff] %vm758, %v4126
      %4199 = vst.msk [vmem:[%s260 + $0x30] sm:$0xff] %vm758, %v4129
      %4200 = vst.msk [vmem:[%s260 + $0x38] sm:$0xff] %vm758, %v4131
      %4201 = vst.msk [vmem:[%s260 + $0x40] sm:$0xff] %vm758, %v4134
      %4202 = vst.msk [vmem:[%s260 + $0x48] sm:$0xff] %vm758, %v4136
      %4203 = vst.msk [vmem:[%s260 + $0x50] sm:$0xff] %vm758, %v4139
      %4204 = vst.msk [vmem:[%s260 + $0x58] sm:$0xff] %vm758, %v4141
      %4205 = vst.msk [vmem:[%s260 + $0x60] sm:$0xff] %vm758, %v4144
      %4206 = vst.msk [vmem:[%s260 + $0x68] sm:$0xff] %vm758, %v4146
      %4207 = vst.msk [vmem:[%s260 + $0x70] sm:$0xff] %vm758, %v4149
      %4208 = vst.msk [vmem:[%s260 + $0x78] sm:$0xff] %vm758, %v4151
      %4209 = vst.msk [vmem:[%s260 + $0x80] sm:$0xff] %vm758, %v4154
      %4210 = vst.msk [vmem:[%s260 + $0x88] sm:$0xff] %vm758, %v4156
      %4211 = vst.msk [vmem:[%s260 + $0x90] sm:$0xff] %vm758, %v4159
      %4212 = vst.msk [vmem:[%s260 + $0x98] sm:$0xff] %vm758, %v4161
      %4213 = vst.msk [vmem:[%s260 + $0xa0] sm:$0xff] %vm758, %v4164
      %4214 = vst.msk [vmem:[%s260 + $0xa8] sm:$0xff] %vm758, %v4166
      %4215 = vst.msk [vmem:[%s260 + $0xb0] sm:$0xff] %vm758, %v4169
      %4216 = vst.msk [vmem:[%s260 + $0xb8] sm:$0xff] %vm758, %v4171
      %4217 = vst.msk [vmem:[%s260 + $0xc0] sm:$0xff] %vm758, %v4174
      %4218 = vst.msk [vmem:[%s260 + $0xc8] sm:$0xff] %vm758, %v4176
      %4219 = vst.msk [vmem:[%s260 + $0xd0] sm:$0xff] %vm758, %v4179
      %4220 = vst.msk [vmem:[%s260 + $0xd8] sm:$0xff] %vm758, %v4181
      %4221 = vst.msk [vmem:[%s260 + $0xe0] sm:$0xff] %vm758, %v4184
      %4222 = vst.msk [vmem:[%s260 + $0xe8] sm:$0xff] %vm758, %v4186
      %4223 = vst.msk [vmem:[%s260 + $0xf0] sm:$0xff] %vm758, %v4189
      %4224 = vst.msk [vmem:[%s260 + $0xf8] sm:$0xff] %vm758, %v4191
      %v4225 = vsel %vm758, %v4114, 0.0
      %v4226 = vsel %vm758, %v4116, 0.0
      %v4227 = vadd.f32 %v4225, %v4226
      %v4228 = vsel %vm758, %v4119, 0.0
      %v4229 = vadd.f32 %v4227, %v4228
      %v4230 = vsel %vm758, %v4121, 0.0
      %v4231 = vadd.f32 %v4229, %v4230
      %v4232 = vsel %vm758, %v4124, 0.0
      %v4233 = vadd.f32 %v4231, %v4232
      %v4234 = vsel %vm758, %v4126, 0.0
      %v4235 = vadd.f32 %v4233, %v4234
      %v4236 = vsel %vm758, %v4129, 0.0
      %v4237 = vadd.f32 %v4235, %v4236
      %v4238 = vsel %vm758, %v4131, 0.0
      %v4239 = vadd.f32 %v4237, %v4238
      %v4240 = vsel %vm758, %v4134, 0.0
      %v4241 = vadd.f32 %v4239, %v4240
      %v4242 = vsel %vm758, %v4136, 0.0
      %v4243 = vadd.f32 %v4241, %v4242
      %v4244 = vsel %vm758, %v4139, 0.0
      %v4245 = vadd.f32 %v4243, %v4244
      %v4246 = vsel %vm758, %v4141, 0.0
      %v4247 = vadd.f32 %v4245, %v4246
      %v4248 = vsel %vm758, %v4144, 0.0
      %v4249 = vadd.f32 %v4247, %v4248
      %v4250 = vsel %vm758, %v4146, 0.0
      %v4251 = vadd.f32 %v4249, %v4250
      %v4252 = vsel %vm758, %v4149, 0.0
      %v4253 = vadd.f32 %v4251, %v4252
      %v4254 = vsel %vm758, %v4151, 0.0
      %v4255 = vadd.f32 %v4253, %v4254
      %v4256 = vsel %vm758, %v4154, 0.0
      %v4257 = vadd.f32 %v4255, %v4256
      %v4258 = vsel %vm758, %v4156, 0.0
      %v4259 = vadd.f32 %v4257, %v4258
      %v4260 = vsel %vm758, %v4159, 0.0
      %v4261 = vadd.f32 %v4259, %v4260
      %v4262 = vsel %vm758, %v4161, 0.0
      %v4263 = vadd.f32 %v4261, %v4262
      %v4264 = vsel %vm758, %v4164, 0.0
      %v4265 = vadd.f32 %v4263, %v4264
      %v4266 = vsel %vm758, %v4166, 0.0
      %v4267 = vadd.f32 %v4265, %v4266
      %v4268 = vsel %vm758, %v4169, 0.0
      %v4269 = vadd.f32 %v4267, %v4268
      %v4270 = vsel %vm758, %v4171, 0.0
      %v4271 = vadd.f32 %v4269, %v4270
      %v4272 = vsel %vm758, %v4174, 0.0
      %v4273 = vadd.f32 %v4271, %v4272
      %v4274 = vsel %vm758, %v4176, 0.0
      %v4275 = vadd.f32 %v4273, %v4274
      %v4276 = vsel %vm758, %v4179, 0.0
      %v4277 = vadd.f32 %v4275, %v4276
      %v4278 = vsel %vm758, %v4181, 0.0
      %v4279 = vadd.f32 %v4277, %v4278
      %v4280 = vsel %vm758, %v4184, 0.0
      %v4281 = vadd.f32 %v4279, %v4280
      %v4282 = vsel %vm758, %v4186, 0.0
      %v4283 = vadd.f32 %v4281, %v4282
      %v4284 = vsel %vm758, %v4189, 0.0
      %v4285 = vadd.f32 %v4283, %v4284
      %v4286 = vsel %vm758, %v4191, 0.0
      %v4287 = vadd.f32 %v4285, %v4286
      %v4288 = vrot.slane %v4287, 4
      %v4289 = vadd.f32 %v4287, %v4288
      %v4290 = vrot.slane %v4289, 2
      %v4291 = vadd.f32 %v4289, %v4290
      %v4292 = vrot.slane %v4291, 1
      %v4293 = vadd.f32 %v4291, %v4292
      %v4294 = vmul.f32 %v4114, %v4114
      %v4295 = vmul.f32 %v4116, %v4116
      %v4296 = vmul.f32 %v4119, %v4119
      %v4297 = vmul.f32 %v4121, %v4121
      %v4298 = vmul.f32 %v4124, %v4124
      %v4299 = vmul.f32 %v4126, %v4126
      %v4300 = vmul.f32 %v4129, %v4129
      %v4301 = vmul.f32 %v4131, %v4131
      %v4302 = vmul.f32 %v4134, %v4134
      %v4303 = vmul.f32 %v4136, %v4136
      %v4304 = vmul.f32 %v4139, %v4139
      %v4305 = vmul.f32 %v4141, %v4141
      %v4306 = vmul.f32 %v4144, %v4144
      %v4307 = vmul.f32 %v4146, %v4146
      %v4308 = vmul.f32 %v4149, %v4149
      %v4309 = vmul.f32 %v4151, %v4151
      %v4310 = vmul.f32 %v4154, %v4154
      %v4311 = vmul.f32 %v4156, %v4156
      %v4312 = vmul.f32 %v4159, %v4159
      %v4313 = vmul.f32 %v4161, %v4161
      %v4314 = vmul.f32 %v4164, %v4164
      %v4315 = vmul.f32 %v4166, %v4166
      %v4316 = vmul.f32 %v4169, %v4169
      %v4317 = vmul.f32 %v4171, %v4171
      %v4318 = vmul.f32 %v4174, %v4174
      %v4319 = vmul.f32 %v4176, %v4176
      %v4320 = vmul.f32 %v4179, %v4179
      %v4321 = vmul.f32 %v4181, %v4181
      %v4322 = vmul.f32 %v4184, %v4184
      %v4323 = vmul.f32 %v4186, %v4186
      %v4324 = vmul.f32 %v4189, %v4189
      %v4325 = vmul.f32 %v4191, %v4191
      %v4326 = vsel %vm758, %v4294, 0.0
      %v4327 = vsel %vm758, %v4295, 0.0
      %v4328 = vadd.f32 %v4326, %v4327
      %v4329 = vsel %vm758, %v4296, 0.0
      %v4330 = vadd.f32 %v4328, %v4329
      %v4331 = vsel %vm758, %v4297, 0.0
      %v4332 = vadd.f32 %v4330, %v4331
      %v4333 = vsel %vm758, %v4298, 0.0
      %v4334 = vadd.f32 %v4332, %v4333
      %v4335 = vsel %vm758, %v4299, 0.0
      %v4336 = vadd.f32 %v4334, %v4335
      %v4337 = vsel %vm758, %v4300, 0.0
      %v4338 = vadd.f32 %v4336, %v4337
      %v4339 = vsel %vm758, %v4301, 0.0
      %v4340 = vadd.f32 %v4338, %v4339
      %v4341 = vsel %vm758, %v4302, 0.0
      %v4342 = vadd.f32 %v4340, %v4341
      %v4343 = vsel %vm758, %v4303, 0.0
      %v4344 = vadd.f32 %v4342, %v4343
      %v4345 = vsel %vm758, %v4304, 0.0
      %v4346 = vadd.f32 %v4344, %v4345
      %v4347 = vsel %vm758, %v4305, 0.0
      %v4348 = vadd.f32 %v4346, %v4347
      %v4349 = vsel %vm758, %v4306, 0.0
      %v4350 = vadd.f32 %v4348, %v4349
      %v4351 = vsel %vm758, %v4307, 0.0
      %v4352 = vadd.f32 %v4350, %v4351
      %v4353 = vsel %vm758, %v4308, 0.0
      %v4354 = vadd.f32 %v4352, %v4353
      %v4355 = vsel %vm758, %v4309, 0.0
      %v4356 = vadd.f32 %v4354, %v4355
      %v4357 = vsel %vm758, %v4310, 0.0
      %v4358 = vadd.f32 %v4356, %v4357
      %v4359 = vsel %vm758, %v4311, 0.0
      %v4360 = vadd.f32 %v4358, %v4359
      %v4361 = vsel %vm758, %v4312, 0.0
      %v4362 = vadd.f32 %v4360, %v4361
      %v4363 = vsel %vm758, %v4313, 0.0
      %v4364 = vadd.f32 %v4362, %v4363
      %v4365 = vsel %vm758, %v4314, 0.0
      %v4366 = vadd.f32 %v4364, %v4365
      %v4367 = vsel %vm758, %v4315, 0.0
      %v4368 = vadd.f32 %v4366, %v4367
      %v4369 = vsel %vm758, %v4316, 0.0
      %v4370 = vadd.f32 %v4368, %v4369
      %v4371 = vsel %vm758, %v4317, 0.0
      %v4372 = vadd.f32 %v4370, %v4371
      %v4373 = vsel %vm758, %v4318, 0.0
      %v4374 = vadd.f32 %v4372, %v4373
      %v4375 = vsel %vm758, %v4319, 0.0
      %v4376 = vadd.f32 %v4374, %v4375
      %v4377 = vsel %vm758, %v4320, 0.0
      %v4378 = vadd.f32 %v4376, %v4377
      %v4379 = vsel %vm758, %v4321, 0.0
      %v4380 = vadd.f32 %v4378, %v4379
      %v4381 = vsel %vm758, %v4322, 0.0
      %v4382 = vadd.f32 %v4380, %v4381
      %v4383 = vsel %vm758, %v4323, 0.0
      %v4384 = vadd.f32 %v4382, %v4383
      %v4385 = vsel %vm758, %v4324, 0.0
      %v4386 = vadd.f32 %v4384, %v4385
      %v4387 = vsel %vm758, %v4325, 0.0
      %v4388 = vadd.f32 %v4386, %v4387
      %v4389 = vrot.slane %v4388, 4
      %v4390 = vadd.f32 %v4388, %v4389
      %v4391 = vrot.slane %v4390, 2
      %v4392 = vadd.f32 %v4390, %v4391
      %v4393 = vrot.slane %v4392, 1
      %v4394 = vadd.f32 %v4392, %v4393
      %v4395 = vsel %vm435, %v4293, %v4394
      %vm4396 = vcmask 25600
      %4397 = vst.msk [vmem:[%s265] sm:$0x3] %vm4396, %v4395
      %s4398 = smul.u32 32, %s18
      %p4399 = scmp.lt.s32.totalorder %s4398, 63
      %s4400 = scalar_select %p4399, %s4398, 63
      %s4401 = smul.addr %s4400, 8
      %s4402 = scalar_lea.vmem %s5, %s4401
      %p4403 = scmp.lt.s32.totalorder %s18, 1
      %s4404 = scalar_select %p4403, %s18, 1
      %s4405 = smul.addr %s4404, 2
      %s4406 = scalar_lea.vmem %s6, %s4405
      // Predicated region
      $region41: #{bottleneck_forward.5} parent=39 // pred_check
        %p4407 = pneg %p146
      $region42: #{bottleneck_forward.5} parent=39 // pred_check_branch
        %4409 = sbr.rel (%p4407) target = $region44
      $region43: #{bottleneck_forward.5} parent=39 // pred_region
        %s4410 = smul.u32 32, %s18
      $region44: #{bottleneck_forward.5} parent=39 // pred_fallthru
        _
      // Predicated region
      $region45: #{bottleneck_forward.5} parent=39 // pred_check
        %p4411 = pneg %p172
      $region46: #{bottleneck_forward.5} parent=39 // pred_check_branch
        %4413 = sbr.rel (%p4411) target = $region48
      $region47: #{bottleneck_forward.5} parent=39 // pred_region
        _
      $region48: #{bottleneck_forward.5} parent=39 // pred_fallthru
        _
    $region40: #{bottleneck_forward.5} parent=5 // pred_fallthru
      _
    %p4414 = scmp.le.s32.totalorder 2, %s13
    // Predicated region
    $region49: #{bottleneck_forward.5} parent=5 // pred_check
      %p4415 = pneg %p4414
    $region50: #{bottleneck_forward.5} parent=5 // pred_check_branch
      %4417 = sbr.rel (%p4415) target = $region52
    $region51: #{bottleneck_forward.5} parent=5 // pred_region
      %s4418 = ssub.s32 %s13, 2
      // Predicated region
      $region53: #{bottleneck_forward.5} parent=51 // pred_check
        %p4419 = pneg %p152
      $region54: #{bottleneck_forward.5} parent=51 // pred_check_branch
        %4421 = sbr.rel (%p4419) target = $region56
      $region55: #{bottleneck_forward.5} parent=51 // pred_region
        %s4422 = smul.u32 32, %s19
        %p4423 = scmp.lt.s32.totalorder %s4422, 63
        %s4424 = scalar_select %p4423, %s4422, 63
        %s4425 = smul.addr %s4424, 8
        %s4426 = scalar_lea.vmem %s5, %s4425
      $region56: #{bottleneck_forward.5} parent=51 // pred_fallthru
        _
      // Predicated region
      $region57: #{bottleneck_forward.5} parent=51 // pred_check
        %p4427 = pneg %p178
      $region58: #{bottleneck_forward.5} parent=51 // pred_check_branch
        %4429 = sbr.rel (%p4427) target = $region60
      $region59: #{bottleneck_forward.5} parent=51 // pred_region
        %p4430 = scmp.lt.s32.totalorder %s19, 1
        %s4431 = scalar_select %p4430, %s19, 1
        %s4432 = smul.addr %s4431, 2
        %s4433 = scalar_lea.vmem %s6, %s4432
      $region60: #{bottleneck_forward.5} parent=51 // pred_fallthru
        _
    $region52: #{bottleneck_forward.5} parent=5 // pred_fallthru
      _
  $region6: #{bottleneck_forward.5} parent=0 // loop_footer
    %s17 = sadd.s32 1, %s13
  $region7: #{bottleneck_forward.5} parent=0 // loop_footer_branch
    %12 = sbr.rel target = $region3
  $region8: #{bottleneck_forward.5} parent=0 // loop_exit
    _

</llo_original>
